<compile_context>
chip_gen: v7x
topology: tpu7x:2x2x1
jax: 0.10.0
libtpu: 0.0.40
codegen_flags: <defaults>
</compile_context>

<pallas_src>
import jax
import jax.numpy as jnp
from jax.experimental import pallas as pl
from jax.experimental.pallas import tpu as pltpu


# ----------------------------- Pallas kernel --------------------------------

def _fused_rlhf_kernel(pol_x_ref, pw1_ref, pb1_ref, pw2_ref, pb2_ref,
                       cri_x_ref, cw1_ref, cb1_ref, cwvp_ref, cbv_ref,
                       logits_ref, values_ref, h_scratch):
    """Grid = (M tiles, V tiles); V is the inner ("arbitrary") axis.

    pol_x/cri_x: [tm, H] bf16   pw1/cw1: [H, F] bf16   pb1/cb1: [1, F] f32
    pw2: [F, tv] bf16           pb2: [1, tv] f32
    cwvp: [F, 128] bf16 (column 0 = wv, rest zero)
    cbv:  [1, 128] f32 (column 0 = bias, rest zero)
    logits: [tm, tv] bf16       values: [tm, 128] f32  h_scratch: [tm, F] bf16
    """
    j = pl.program_id(1)

    @pl.when(j == 0)
    def _once_per_m_tile():
        # Policy layer 1 — computed once per M tile, reused for every V tile.
        h = jnp.dot(pol_x_ref[...], pw1_ref[...],
                    preferred_element_type=jnp.float32)
        h = jax.nn.gelu(h + pb1_ref[...], approximate=True)   # tanh GELU (EUP)
        h_scratch[...] = h.astype(h_scratch.dtype)

        # Critic head.  Layer 1 has the same M*H*F MXU cost as policy layer 1;
        # only the F->1 projection is negligible.  hc is cast to bf16 so the
        # padded projection is a single-pass bf16 MXU matmul (not f32xf32).
        hc = jnp.dot(cri_x_ref[...], cw1_ref[...],
                     preferred_element_type=jnp.float32)
        hc = jnp.tanh(hc + cb1_ref[...]).astype(cwvp_ref.dtype)
        v = jnp.dot(hc, cwvp_ref[...], preferred_element_type=jnp.float32)
        # Lane-dense (tm, 128) slab written with unmasked 128-lane stores;
        # cbv is lane-padded so only column 0 carries bias (rest stay clean).
        values_ref[...] = v + cbv_ref[...]

    # Policy layer 2 for this (M, V) tile — bf16 operands, f32 accumulation,
    # bf16 writeback (halves the dominant logits HBM traffic).
    logits = jnp.dot(h_scratch[...], pw2_ref[...],
                     preferred_element_type=jnp.float32)
    logits_ref[...] = (logits + pb2_ref[...]).astype(logits_ref.dtype)


# -------------------- tile sizing / VMEM budget helpers -----------------------

def _vmem_budget_bytes():
    """Per-core VMEM budget, leaving headroom for compiler-internal scratch."""
    phys = None
    try:
        info = pltpu.get_tpu_info()
        for attr in ("vmem_capacity_bytes", "vmem_size_bytes", "vmem_bytes"):
            val = getattr(info, attr, None)
            if val:
                phys = int(val)
                break
    except Exception:
        phys = None
    if not phys:
        phys = 64 * 1024 * 1024           # conservative: v7x per-TC VMEM
    return (phys * 3) // 4                 # ~48 MiB on v7x, ~96 MiB on v5e/v6e


def _divisor_tiles(total, aligns):
    """Divisors of `total` that are multiples of the finest workable alignment,
    descending; falls back to the full extent (always a legal block shape)."""
    for align in aligns:
        cands = [t for t in range(align, total + 1, align) if total % t == 0]
        if cands:
            return sorted(cands, reverse=True)
    return [total]


def _footprint_bytes(tm, tv, H, F, resident_bufs, w2_bufs):
    act_in = 2 * (tm * H * 2) * 2                       # pol_x + cri_x, double-buffered
    resident = (2 * (H * F * 2) + 2 * (F * 4)           # policy+critic w1/b1
                + F * 128 * 2 + 128 * 4) * resident_bufs
    w2_stream = (F * tv * 2 + tv * 4) * w2_bufs         # pw2/pb2 V-tiles
    logits_out = (tm * tv * 2) * 2                      # bf16 logits, double-buffered
    values_out = (tm * 128 * 4) * 2
    scratch = tm * F * 2                                # h_scratch
    return act_in + resident + w2_stream + logits_out + values_out + scratch


def _choose_tiles(M, V, H, F, tm_max, tv_max, budget):
    all_tm = _divisor_tiles(M, (16, 8))                 # bf16 sublane-pair aligned
    all_tv = _divisor_tiles(V, (128,))                  # lane aligned
    tm_cands = [t for t in all_tm if t <= tm_max] or [all_tm[-1]]
    tv_cands = [t for t in all_tv if t <= tv_max] or [all_tv[-1]]
    # Keep >= 2 M tiles when possible so the "parallel" axis can shard across
    # v7x's two TensorCores (cheap on single-TC v5e/v6e).
    multi = [t for t in tm_cands if M // t >= 2]
    if multi:
        tm_cands = multi

    def fits(tm, tv, w2_bufs):
        return _footprint_bytes(tm, tv, H, F, 1, w2_bufs) <= budget

    tv_min = tv_cands[-1]
    tm = next((t for t in tm_cands if fits(t, tv_min, 2)), tm_cands[-1])
    tv = next((t for t in tv_cands if fits(tm, t, 2)), tv_cands[-1])
    # Deepen the w2/b2 stream to hide the heavy j == 0 step if VMEM allows.
    w2_bufs = 3 if fits(tm, tv, 3) else 2
    return tm, tv, w2_bufs


# ------------------------------ fused forward --------------------------------

def rlhf_fused_forward(pol_x, pw1, pb1, pw2, pb2,
                       cri_x, cw1, cb1, cwv_pad, cbv_pad,
                       *, tm_max=2048, tv_max=2048):
    """pol_x/cri_x: [M, H] bf16; returns (logits [M, V] bf16, values [M, 128] f32)."""
    M, H = pol_x.shape
    F = pw1.shape[1]
    V = pw2.shape[1]

    budget = _vmem_budget_bytes()
    tm, tv, w2_bufs = _choose_tiles(M, V, H, F, tm_max, tv_max, budget)
    grid = (M // tm, V // tv)

    def _spec(shape, index_map, buffers=None):
        if buffers is None:
            return pl.BlockSpec(shape, index_map)
        return pl.BlockSpec(shape, index_map, pipeline_mode=pl.Buffered(buffers))

    def _call(use_buffer_hints):
        res_b = 1 if use_buffer_hints else None          # resident weights: single-buffer
        w2_b = w2_bufs if (use_buffer_hints and w2_bufs != 2) else None
        in_specs = [
            _spec((tm, H), lambda i, j: (i, 0)),          # pol_x tile
            _spec((H, F), lambda i, j: (0, 0), res_b),    # policy w1 (resident)
            _spec((1, F), lambda i, j: (0, 0), res_b),    # policy b1 (resident)
            _spec((F, tv), lambda i, j: (0, j), w2_b),    # policy w2 (tiled over V)
            _spec((1, tv), lambda i, j: (0, j), w2_b),    # policy b2 (tiled over V)
            _spec((tm, H), lambda i, j: (i, 0)),          # cri_x tile
            _spec((H, F), lambda i, j: (0, 0), res_b),    # critic w1 (resident)
            _spec((1, F), lambda i, j: (0, 0), res_b),    # critic b1 (resident)
            _spec((F, 128), lambda i, j: (0, 0), res_b),  # critic wv padded (resident)
            _spec((1, 128), lambda i, j: (0, 0), res_b),  # critic bv padded (resident)
        ]
        out_specs = [
            pl.BlockSpec((tm, tv), lambda i, j: (i, j)),   # logits tile (bf16)
            pl.BlockSpec((tm, 128), lambda i, j: (i, 0)),  # critic values (lane-dense)
        ]
        return pl.pallas_call(
            _fused_rlhf_kernel,
            out_shape=(jax.ShapeDtypeStruct((M, V), jnp.bfloat16),
                       jax.ShapeDtypeStruct((M, 128), jnp.float32)),
            grid_spec=pltpu.PrefetchScalarGridSpec(
                num_scalar_prefetch=0,
                grid=grid,
                in_specs=in_specs,
                out_specs=out_specs,
                scratch_shapes=[pltpu.VMEM((tm, F), jnp.bfloat16)],
            ),
            compiler_params=pltpu.CompilerParams(
                # M tiles are independent (megacore-shardable on v7x); the V
                # axis must stay sequential because h_scratch and the critic
                # values are produced at j == 0.
                dimension_semantics=("parallel", "arbitrary"),
                vmem_limit_bytes=int(budget),
            ),
        )(pol_x, pw1, pb1, pw2, pb2, cri_x, cw1, cb1, cwv_pad, cbv_pad)

    try:
        out = _call(True)
        jax.block_until_ready(out)
        return out
    except Exception:
        # pl.Buffered pipeline hints unavailable on this jax/backend: fall back
        # to default double-buffering (identical results, more VMEM).
        return _call(False)


# --------------------------- wrapper (forward) -------------------------------

class RLHFTrainableModelWrapperPallas:
    """JAX/Pallas equivalent of RLHFTrainableModelWrapper.forward."""

    def __init__(self, params, tm_max=2048, tv_max=2048):
        self.p = params
        self.tm_max = tm_max
        self.tv_max = tv_max

    def __call__(self, decoder_input):
        # decoder_input: int32 token ids [B, S]
        p = self.p
        B, S = decoder_input.shape
        V = p["policy_w2"].shape[1]
        ids = decoder_input.reshape(B * S)

        # Embedding lookups (plain-JAX glue).
        # TODO(synk): fold the gather into the kernel (scalar-prefetched ids +
        # per-row DMA gather) to avoid the two [M, H] HBM round-trips.
        pol_x = jnp.take(p["policy_embed"], ids, axis=0)   # [M, H] bf16
        cri_x = jnp.take(p["critic_embed"], ids, axis=0)   # [M, H] bf16

        logits, values_pad = rlhf_fused_forward(
            pol_x, p["policy_w1"], p["policy_b1"], p["policy_w2"], p["policy_b2"],
            cri_x, p["critic_w1"], p["critic_b1"], p["critic_wv_pad"], p["critic_bv_pad"],
            tm_max=self.tm_max, tv_max=self.tv_max)

        policy_out = logits.reshape(B, S, V)          # policy_model(decoder_input=inputs), bf16
        critic_out = values_pad[:, 0].reshape(B, S)   # critic_model(..., rank_all=True), f32
        return (policy_out, critic_out)

    # train()/eval() only toggle torch training mode; no-ops for these kernels.
    def train(self, mode=True):
        return self

    def eval(self):
        return self


# ------------------------------- init / ref ----------------------------------

def init_params(key, vocab, hidden, ffn):
    ks = jax.random.split(key, 10)
    s = 0.02
    f32, bf16 = jnp.float32, jnp.bfloat16
    wv = s * jax.random.normal(ks[5], (ffn, 1), f32)
    # Lane-padded critic projection (bf16: single-pass MXU): column 0 = wv.
    wv_pad = jnp.zeros((ffn, 128), f32).at[:, :1].set(wv).astype(bf16)
    bv = s * jax.random.normal(ks[6], (), f32)
    bv_pad = jnp.zeros((1, 128), f32).at[0, 0].set(bv)
    return {
        "policy_embed": (s * jax.random.normal(ks[0], (vocab, hidden), f32)).astype(bf16),
        "policy_w1":    (s * jax.random.normal(ks[1], (hidden, ffn), f32)).astype(bf16),
        "policy_b1":    s * jax.random.normal(ks[7], (1, ffn), f32),
        "policy_w2":    (s * jax.random.normal(ks[2], (ffn, vocab), f32)).astype(bf16),
        "policy_b2":    s * jax.random.normal(ks[8], (1, vocab), f32),
        "critic_embed": (s * jax.random.normal(ks[3], (vocab, hidden), f32)).astype(bf16),
        "critic_w1":    (s * jax.random.normal(ks[4], (hidden, ffn), f32)).astype(bf16),
        "critic_b1":    s * jax.random.normal(ks[9], (1, ffn), f32),
        "critic_wv_pad": wv_pad,
        "critic_bv_pad": bv_pad,
    }


def reference_forward(params, decoder_input):
    """Pure-JAX reference mirroring the kernel's dtype strategy."""
    p = params
    B, S = decoder_input.shape
    ids = decoder_input.reshape(-1)
    f32 = jnp.float32

    pol_x = jnp.take(p["policy_embed"], ids, axis=0)
    h = jnp.dot(pol_x, p["policy_w1"], preferred_element_type=f32) + p["policy_b1"]
    h = jax.nn.gelu(h, approximate=True).astype(jnp.bfloat16)
    logits = jnp.dot(h, p["policy_w2"], preferred_element_type=f32) + p["policy_b2"]

    cri_x = jnp.take(p["critic_embed"], ids, axis=0)
    hc = jnp.dot(cri_x, p["critic_w1"], preferred_element_type=f32) + p["critic_b1"]
    hc = jnp.tanh(hc).astype(jnp.bfloat16)
    v = jnp.dot(hc, p["critic_wv_pad"][:, :1], preferred_element_type=f32)
    v = v + p["critic_bv_pad"][0, 0]

    V = p["policy_w2"].shape[1]
    return logits.reshape(B, S, V), v.reshape(B, S)


# ---------------------------------- demo -------------------------------------

if __name__ == "__main__":
    key = jax.random.PRNGKey(0)
    pkey, dkey = jax.random.split(key)

    # H and F are multiples of 256 so the 2x256x256 MXUs on v6e/v7x are fully
    # occupied (128-wide contractions only fully fill the v5e 128x128 MXU).
    VOCAB, HIDDEN, FFN = 1024, 256, 256
    B, S = 2, 256                                   # M = 512 tokens

    params = init_params(pkey, VOCAB, HIDDEN, FFN)
    # Tile caps chosen so the demo exercises a real (2, 2) grid.
    wrapper = RLHFTrainableModelWrapperPallas(params, tm_max=256, tv_max=512)

    decoder_input = jax.random.randint(dkey, (B, S), 0, VOCAB, dtype=jnp.int32)

    policy_out, critic_out = wrapper(decoder_input)
    jax.block_until_ready((policy_out, critic_out))

    assert policy_out.shape == (B, S, VOCAB)
    assert critic_out.shape == (B, S)

    ref_policy, ref_critic = reference_forward(params, decoder_input)
    ok_p = jnp.allclose(policy_out.astype(jnp.float32), ref_policy,
                        rtol=5e-2, atol=5e-3)        # bf16 logits tolerance
    ok_c = jnp.allclose(critic_out, ref_critic, rtol=2e-2, atol=2e-3)
    if not (bool(ok_p) and bool(ok_c)):
        raise AssertionError("Pallas output mismatch vs pure-JAX reference")

    print("KERNEL_OK")
</pallas_src>

<mosaic_0001>
module attributes {stable_mosaic.version = 11 : i64} {
  func.func @_fused_rlhf_kernel(%arg0: i32, %arg1: i32, %arg2: memref<256x256xbf16, #tpu.memory_space<vmem>>, %arg3: memref<256x256xbf16, #tpu.memory_space<vmem>>, %arg4: memref<1x256xf32, #tpu.memory_space<vmem>>, %arg5: memref<256x512xbf16, #tpu.memory_space<vmem>>, %arg6: memref<1x512xf32, #tpu.memory_space<vmem>>, %arg7: memref<256x256xbf16, #tpu.memory_space<vmem>>, %arg8: memref<256x256xbf16, #tpu.memory_space<vmem>>, %arg9: memref<1x256xf32, #tpu.memory_space<vmem>>, %arg10: memref<256x128xbf16, #tpu.memory_space<vmem>>, %arg11: memref<1x128xf32, #tpu.memory_space<vmem>>, %arg12: memref<256x512xbf16, #tpu.memory_space<vmem>>, %arg13: memref<256x128xf32, #tpu.memory_space<vmem>>, %arg14: memref<256x256xbf16, #tpu.memory_space<vmem>>) attributes {dimension_semantics = [#tpu.dimension_semantics<parallel>, #tpu.dimension_semantics<arbitrary>], iteration_bounds = array<i64: 2, 2>, scalar_prefetch = 0 : i64, scratch_operands = 1 : i64, tpu.core_type = #tpu.core_type<tc>, window_params = [{transform_indices = @transform_0, window_bounds = array<i64: 256, 256>}, {pipeline_mode = #tpu.pipeline_mode<synchronous>, transform_indices = @transform_1, window_bounds = array<i64: 256, 256>}, {pipeline_mode = #tpu.pipeline_mode<synchronous>, transform_indices = @transform_2, window_bounds = array<i64: 1, 256>}, {transform_indices = @transform_3, window_bounds = array<i64: 256, 512>}, {transform_indices = @transform_4, window_bounds = array<i64: 1, 512>}, {transform_indices = @transform_5, window_bounds = array<i64: 256, 256>}, {pipeline_mode = #tpu.pipeline_mode<synchronous>, transform_indices = @transform_6, window_bounds = array<i64: 256, 256>}, {pipeline_mode = #tpu.pipeline_mode<synchronous>, transform_indices = @transform_7, window_bounds = array<i64: 1, 256>}, {pipeline_mode = #tpu.pipeline_mode<synchronous>, transform_indices = @transform_8, window_bounds = array<i64: 256, 128>}, {pipeline_mode = #tpu.pipeline_mode<synchronous>, transform_indices = @transform_9, window_bounds = array<i64: 1, 128>}, {transform_indices = @transform_10, window_bounds = array<i64: 256, 512>}, {transform_indices = @transform_11, window_bounds = array<i64: 256, 128>}]} {
    %c0_i32 = arith.constant 0 : i32
    %0 = arith.cmpi eq, %arg1, %c0_i32 : i32
    %1 = arith.extui %0 : i1 to i32
    %c0_i32_0 = arith.constant 0 : i32
    %2 = arith.cmpi ne, %1, %c0_i32_0 : i32
    scf.if %2 {
      %c0_8 = arith.constant 0 : index
      %c0_9 = arith.constant 0 : index
      %11 = vector.load %arg2[%c0_8, %c0_9] : memref<256x256xbf16, #tpu.memory_space<vmem>>, vector<256x256xbf16>
      %c0_10 = arith.constant 0 : index
      %c0_11 = arith.constant 0 : index
      %12 = vector.load %arg3[%c0_10, %c0_11] : memref<256x256xbf16, #tpu.memory_space<vmem>>, vector<256x256xbf16>
      %cst_12 = arith.constant dense<0.000000e+00> : vector<256x256xf32>
      %13 = tpu.matmul %11, %12, %cst_12 {dimension_numbers = #tpu.dot_dimension_numbers<[1], [0], [0], [1], [0, 0, 1, 1], [], []>} : vector<256x256xbf16>, vector<256x256xbf16>, vector<256x256xf32> -> vector<256x256xf32>
      %c0_13 = arith.constant 0 : index
      %c0_14 = arith.constant 0 : index
      %14 = vector.load %arg4[%c0_13, %c0_14] : memref<1x256xf32, #tpu.memory_space<vmem>>, vector<1x256xf32>
      %15 = vector.broadcast %14 : vector<1x256xf32> to vector<256x256xf32>
      %16 = arith.addf %13, %15 : vector<256x256xf32>
      %17 = arith.mulf %16, %16 : vector<256x256xf32>
      %18 = arith.mulf %16, %17 : vector<256x256xf32>
      %cst_15 = arith.constant 4.471500e-02 : f32
      %19 = vector.broadcast %cst_15 : f32 to vector<256x256xf32>
      %20 = arith.mulf %19, %18 : vector<256x256xf32>
      %21 = arith.addf %16, %20 : vector<256x256xf32>
      %cst_16 = arith.constant 0.797884583 : f32
      %22 = vector.broadcast %cst_16 : f32 to vector<256x256xf32>
      %23 = arith.mulf %22, %21 : vector<256x256xf32>
      %24 = math.tanh %23 : vector<256x256xf32>
      %cst_17 = arith.constant 1.000000e+00 : f32
      %25 = vector.broadcast %cst_17 : f32 to vector<256x256xf32>
      %26 = arith.addf %25, %24 : vector<256x256xf32>
      %cst_18 = arith.constant 5.000000e-01 : f32
      %27 = vector.broadcast %cst_18 : f32 to vector<256x256xf32>
      %28 = arith.mulf %27, %26 : vector<256x256xf32>
      %29 = arith.mulf %16, %28 : vector<256x256xf32>
      %30 = arith.truncf %29 : vector<256x256xf32> to vector<256x256xbf16>
      %c0_19 = arith.constant 0 : index
      %c0_20 = arith.constant 0 : index
      %31 = vector.load %arg14[%c0_19, %c0_20] : memref<256x256xbf16, #tpu.memory_space<vmem>>, vector<256x256xbf16>
      tpu.vector_store %arg14[%c0_19, %c0_20], %30 {strides = array<i32>} : memref<256x256xbf16, #tpu.memory_space<vmem>>, vector<256x256xbf16>,
      %c0_21 = arith.constant 0 : index
      %c0_22 = arith.constant 0 : index
      %32 = vector.load %arg7[%c0_21, %c0_22] : memref<256x256xbf16, #tpu.memory_space<vmem>>, vector<256x256xbf16>
      %c0_23 = arith.constant 0 : index
      %c0_24 = arith.constant 0 : index
      %33 = vector.load %arg8[%c0_23, %c0_24] : memref<256x256xbf16, #tpu.memory_space<vmem>>, vector<256x256xbf16>
      %cst_25 = arith.constant dense<0.000000e+00> : vector<256x256xf32>
      %34 = tpu.matmul %32, %33, %cst_25 {dimension_numbers = #tpu.dot_dimension_numbers<[1], [0], [0], [1], [0, 0, 1, 1], [], []>} : vector<256x256xbf16>, vector<256x256xbf16>, vector<256x256xf32> -> vector<256x256xf32>
      %c0_26 = arith.constant 0 : index
      %c0_27 = arith.constant 0 : index
      %35 = vector.load %arg9[%c0_26, %c0_27] : memref<1x256xf32, #tpu.memory_space<vmem>>, vector<1x256xf32>
      %36 = vector.broadcast %35 : vector<1x256xf32> to vector<256x256xf32>
      %37 = arith.addf %34, %36 : vector<256x256xf32>
      %38 = math.tanh %37 : vector<256x256xf32>
      %39 = arith.truncf %38 : vector<256x256xf32> to vector<256x256xbf16>
      %c0_28 = arith.constant 0 : index
      %c0_29 = arith.constant 0 : index
      %40 = vector.load %arg10[%c0_28, %c0_29] : memref<256x128xbf16, #tpu.memory_space<vmem>>, vector<256x128xbf16>
      %cst_30 = arith.constant dense<0.000000e+00> : vector<256x128xf32>
      %41 = tpu.matmul %39, %40, %cst_30 {dimension_numbers = #tpu.dot_dimension_numbers<[1], [0], [0], [1], [0, 0, 1, 1], [], []>} : vector<256x256xbf16>, vector<256x128xbf16>, vector<256x128xf32> -> vector<256x128xf32>
      %c0_31 = arith.constant 0 : index
      %c0_32 = arith.constant 0 : index
      %42 = vector.load %arg11[%c0_31, %c0_32] : memref<1x128xf32, #tpu.memory_space<vmem>>, vector<1x128xf32>
      %43 = vector.broadcast %42 : vector<1x128xf32> to vector<256x128xf32>
      %44 = arith.addf %41, %43 : vector<256x128xf32>
      %c0_33 = arith.constant 0 : index
      %c0_34 = arith.constant 0 : index
      %45 = vector.load %arg13[%c0_33, %c0_34] : memref<256x128xf32, #tpu.memory_space<vmem>>, vector<256x128xf32>
      tpu.vector_store %arg13[%c0_33, %c0_34], %44 {strides = array<i32>} : memref<256x128xf32, #tpu.memory_space<vmem>>, vector<256x128xf32>,
    } else {
    }
    %c0 = arith.constant 0 : index
    %c0_1 = arith.constant 0 : index
    %3 = vector.load %arg14[%c0, %c0_1] : memref<256x256xbf16, #tpu.memory_space<vmem>>, vector<256x256xbf16>
    %c0_2 = arith.constant 0 : index
    %c0_3 = arith.constant 0 : index
    %4 = vector.load %arg5[%c0_2, %c0_3] : memref<256x512xbf16, #tpu.memory_space<vmem>>, vector<256x512xbf16>
    %cst = arith.constant dense<0.000000e+00> : vector<256x512xf32>
    %5 = tpu.matmul %3, %4, %cst {dimension_numbers = #tpu.dot_dimension_numbers<[1], [0], [0], [1], [0, 0, 1, 1], [], []>} : vector<256x256xbf16>, vector<256x512xbf16>, vector<256x512xf32> -> vector<256x512xf32>
    %c0_4 = arith.constant 0 : index
    %c0_5 = arith.constant 0 : index
    %6 = vector.load %arg6[%c0_4, %c0_5] : memref<1x512xf32, #tpu.memory_space<vmem>>, vector<1x512xf32>
    %7 = vector.broadcast %6 : vector<1x512xf32> to vector<256x512xf32>
    %8 = arith.addf %5, %7 : vector<256x512xf32>
    %9 = arith.truncf %8 : vector<256x512xf32> to vector<256x512xbf16>
    %c0_6 = arith.constant 0 : index
    %c0_7 = arith.constant 0 : index
    %10 = vector.load %arg12[%c0_6, %c0_7] : memref<256x512xbf16, #tpu.memory_space<vmem>>, vector<256x512xbf16>
    tpu.vector_store %arg12[%c0_6, %c0_7], %9 {strides = array<i32>} : memref<256x512xbf16, #tpu.memory_space<vmem>>, vector<256x512xbf16>,
    return
  }
  func.func @transform_0(%arg0: i32, %arg1: i32) -> (i32, i32) {
    %c0_i32 = arith.constant 0 : i32
    %c0_i32_0 = arith.constant 0 : i32
    return %arg0, %c0_i32 : i32, i32
  }
  func.func @transform_1(%arg0: i32, %arg1: i32) -> (i32, i32) {
    %c0_i32 = arith.constant 0 : i32
    %c0_i32_0 = arith.constant 0 : i32
    %c0_i32_1 = arith.constant 0 : i32
    return %c0_i32, %c0_i32_0 : i32, i32
  }
  func.func @transform_2(%arg0: i32, %arg1: i32) -> (i32, i32) {
    %c0_i32 = arith.constant 0 : i32
    %c0_i32_0 = arith.constant 0 : i32
    %c0_i32_1 = arith.constant 0 : i32
    return %c0_i32, %c0_i32_0 : i32, i32
  }
  func.func @transform_3(%arg0: i32, %arg1: i32) -> (i32, i32) {
    %c0_i32 = arith.constant 0 : i32
    %c0_i32_0 = arith.constant 0 : i32
    return %c0_i32, %arg1 : i32, i32
  }
  func.func @transform_4(%arg0: i32, %arg1: i32) -> (i32, i32) {
    %c0_i32 = arith.constant 0 : i32
    %c0_i32_0 = arith.constant 0 : i32
    return %c0_i32, %arg1 : i32, i32
  }
  func.func @transform_5(%arg0: i32, %arg1: i32) -> (i32, i32) {
    %c0_i32 = arith.constant 0 : i32
    %c0_i32_0 = arith.constant 0 : i32
    return %arg0, %c0_i32 : i32, i32
  }
  func.func @transform_6(%arg0: i32, %arg1: i32) -> (i32, i32) {
    %c0_i32 = arith.constant 0 : i32
    %c0_i32_0 = arith.constant 0 : i32
    %c0_i32_1 = arith.constant 0 : i32
    return %c0_i32, %c0_i32_0 : i32, i32
  }
  func.func @transform_7(%arg0: i32, %arg1: i32) -> (i32, i32) {
    %c0_i32 = arith.constant 0 : i32
    %c0_i32_0 = arith.constant 0 : i32
    %c0_i32_1 = arith.constant 0 : i32
    return %c0_i32, %c0_i32_0 : i32, i32
  }
  func.func @transform_8(%arg0: i32, %arg1: i32) -> (i32, i32) {
    %c0_i32 = arith.constant 0 : i32
    %c0_i32_0 = arith.constant 0 : i32
    %c0_i32_1 = arith.constant 0 : i32
    return %c0_i32, %c0_i32_0 : i32, i32
  }
  func.func @transform_9(%arg0: i32, %arg1: i32) -> (i32, i32) {
    %c0_i32 = arith.constant 0 : i32
    %c0_i32_0 = arith.constant 0 : i32
    %c0_i32_1 = arith.constant 0 : i32
    return %c0_i32, %c0_i32_0 : i32, i32
  }
  func.func @transform_10(%arg0: i32, %arg1: i32) -> (i32, i32) {
    %c0_i32 = arith.constant 0 : i32
    return %arg0, %arg1 : i32, i32
  }
  func.func @transform_11(%arg0: i32, %arg1: i32) -> (i32, i32) {
    %c0_i32 = arith.constant 0 : i32
    %c0_i32_0 = arith.constant 0 : i32
    return %arg0, %c0_i32 : i32, i32
  }
}

</mosaic_0001>

<llo_original>
// kernel: tpu_custom_call.1
$region0: #{tpu_custom_call.1}
  #allocation0 [shape = 'u32[]', space=smem, size = 0x4, offset = 0x4, fixed_abs, tag = 'smem constant byte address 0x4 - core index']
  #allocation1 [shape = 'u32[144,128]{1,0:T(1,128)}', space=vmem, size = 0x12000, scoped, tag = 'internal scratch']
  #allocation2 [shape = 'bf16[256,256]{1,0:T(16,128)(2,1)}', space=vmem, size = 0x20000, scoped, tag = 'scratch operand']
  %s0 = inlined_call_operand.hbm [shape: bf16[512,256], index: 0, kind: input, shape index: {}]
  %s1 = inlined_call_operand.hbm [shape: bf16[256,256], index: 1, kind: input, shape index: {}]
  %s2 = inlined_call_operand.vmem [shape: f32[1,256], index: 2, kind: input, shape index: {}]
  %s3 = inlined_call_operand.hbm [shape: bf16[256,1024], index: 3, kind: input, shape index: {}]
  %s4 = inlined_call_operand.vmem [shape: f32[1,1024], index: 4, kind: input, shape index: {}]
  %s5 = inlined_call_operand.hbm [shape: bf16[512,256], index: 5, kind: input, shape index: {}]
  %s6 = inlined_call_operand.hbm [shape: bf16[256,256], index: 6, kind: input, shape index: {}]
  %s7 = inlined_call_operand.vmem [shape: f32[1,256], index: 7, kind: input, shape index: {}]
  %s8 = inlined_call_operand.hbm [shape: bf16[256,128], index: 8, kind: input, shape index: {}]
  %s9 = inlined_call_operand.vmem [shape: f32[1,128], index: 9, kind: input, shape index: {}]
  %s10 = inlined_call_operand.hbm [shape: bf16[512,1024], index: 10, kind: output, shape index: {0}]
  %s11 = inlined_call_operand.hbm [shape: f32[512,128], index: 11, kind: output, shape index: {1}]
  %12 = xla_tuple %s10, %s11
  %s13 = sld [smem:[#allocation0]]
  $region109: #{tpu_custom_call.1} parent=0
    _
  %s15 = ssub.s32 1, %s13
  %s16 = scalar_select 0, %s15, %s13
  $region1: #{tpu_custom_call.1} parent=0
    #allocation3 [shape = 'u8[262144]{0}', space=vmem, size = 0x40000, scoped, tag = 'input window, operand 0']
    #allocation4 [shape = 's32[2]{0}', space=sflag, size = 0x8, scoped, tag = 'scoped memory for tpu_custom_call.1']
    #allocation5 [shape = 's32[2]{0}', space=sflag, size = 0x8, scoped, tag = 'scoped memory for tpu_custom_call.1']
    #allocation6 [shape = 'u8[131072]{0}', space=vmem, size = 0x20000, scoped, tag = 'input window, operand 1, single buffered']
    #allocation7 [shape = 's32[1]{0}', space=sflag, size = 0x4, scoped, tag = 'scoped memory for tpu_custom_call.1']
    #allocation8 [shape = 'u8[524288]{0}', space=vmem, size = 0x80000, scoped, tag = 'input window, operand 3']
    #allocation9 [shape = 'u8[262144]{0}', space=vmem, size = 0x40000, scoped, tag = 'input window, operand 5']
    #allocation10 [shape = 'u8[131072]{0}', space=vmem, size = 0x20000, scoped, tag = 'input window, operand 6, single buffered']
    #allocation11 [shape = 'u8[65536]{0}', space=vmem, size = 0x10000, scoped, tag = 'input window, operand 8, single buffered']
    #allocation12 [shape = 's32[1]{0}', space=sflag, size = 0x4, scoped, tag = 'scoped memory for tpu_custom_call.1']
    #allocation13 [shape = 'u8[524288]{0}', space=vmem, size = 0x80000, scoped, tag = 'output window, operand 0']
    #allocation14 [shape = 'u8[262144]{0}', space=vmem, size = 0x40000, scoped, tag = 'output window, operand 1']
    #allocation15 [shape = 's32[2]{0}', space=sflag, size = 0x8, scoped, tag = 'scoped memory for tpu_custom_call.1']
    %17 = vsyncpa [#allocation4], 0
    %s18 = scalar_lea.sflag [#allocation4], 1
    %19 = vsyncpa %s18, 0
    %20 = vsyncpa [#allocation7], 0
    %21 = vsyncpa [#allocation12], 0
    %22 = vsyncpa [#allocation5], 0
    %s23 = scalar_lea.sflag [#allocation5], 1
    %24 = vsyncpa %s23, 0
    %25 = vsyncpa [#allocation15], 0
    %s26 = scalar_lea.sflag [#allocation15], 1
    %27 = vsyncpa %s26, 0
    loop: start=0, step=1, limit=6
    $region2: #{tpu_custom_call.1} parent=1 // loop_pre_header
      _
    $region3: #{tpu_custom_call.1} parent=1 // loop_header
      %s29 = sphi 0, %s33
      %p30 = scmp.ge.s32.totalorder %s29, 6
      %s36 = sphi 0, %s48
      %s37 = sphi 0, %s44
      %s38 = sphi 0, %s36
      %s39 = sphi 0, %s37
      %s40 = sphi 0, %s38
      %s41 = sphi 0, %s39
      %s51 = sphi 0, %s53
      %s54 = sphi 0, %s51
      %s55 = sphi 0, %s54
      %s71 = sphi 0, %s55
      %s75 = sphi 0, %s75
      %s77 = sphi 0, %s75
      %s78 = sphi 0, %s77
      %s92 = sphi 0, %s78
      %s96 = sphi 0, %s96
      %s98 = sphi 0, %s96
      %s99 = sphi 0, %s98
      %s113 = sphi 0, %s99
      %s119 = sphi 0, %s121
      %s122 = sphi 0, %s119
      %s123 = sphi 0, %s122
      %s139 = sphi 0, %s123
      %s145 = sphi 0, %s147
      %s148 = sphi 0, %s145
      %s149 = sphi 0, %s148
      %s165 = sphi 0, %s149
      %s171 = sphi 0, %s173
      %s174 = sphi 0, %s171
      %s175 = sphi 0, %s174
      %s191 = sphi 0, %s175
      %s195 = sphi 0, %s195
      %s197 = sphi 0, %s195
      %s198 = sphi 0, %s197
      %s212 = sphi 0, %s198
      %s216 = sphi 0, %s216
      %s218 = sphi 0, %s216
      %s219 = sphi 0, %s218
      %s233 = sphi 0, %s219
      %s237 = sphi 0, %s237
      %s239 = sphi 0, %s237
      %s240 = sphi 0, %s239
      %s254 = sphi 0, %s240
      %s258 = sphi 0, %s258
      %s260 = sphi 0, %s258
      %s261 = sphi 0, %s260
      %s275 = sphi 0, %s261
      %s283 = sphi 0, %s285
      %s286 = sphi 0, %s283
      %s287 = sphi 0, %s286
      %s303 = sphi 0, %s287
      %s309 = sphi 0, %s311
      %s312 = sphi 0, %s309
      %s313 = sphi 0, %s312
      %s329 = sphi 0, %s313
    $region4: #{tpu_custom_call.1} parent=1 // loop_header_branch
      %32 = sbr.rel (%p30) target = $region8
    $region5: #{tpu_custom_call.1} parent=1 // loop_body
      %s34 = ssub.s32 %s29, 1
      %s35 = ssub.s32 %s29, 2
      %s42 = sadd.s32 1, %s37
      %p43 = scmp.ge.s32.totalorder %s42, 2
      %s44 = scalar_select %p43, 0, %s42
      %s45 = sadd.s32 1, %s36
      %s46 = scalar_select %p43, %s45, %s36
      %p47 = scmp.ge.s32.totalorder %s46, 2
      %s48 = scalar_select %p47, 0, %s46
      %s49 = ssub.s32 %s36, %s48
      %p50 = scmp.eq.s32.totalorder %s49, 0
      %s52 = sadd.s32 %s51, 1
      %s53 = scalar_select %p50, %s51, %s52
      %p56 = pneg %p50
      %p57 = scmp.eq.s32.totalorder %s29, 3
      %p58 = por %p56, %p57
      %p59 = scmp.ne.s32.totalorder %s51, %s54
      %p60 = scmp.eq.s32.totalorder %s29, 0
      %p61 = por %p59, %p60
      %p62 = scmp.ne.s32.totalorder %s51, %s54
      %p63 = scmp.eq.s32.totalorder %s34, 3
      %p64 = por %p62, %p63
      %p65 = scmp.ne.s32.totalorder %s54, %s55
      %p66 = scmp.eq.s32.totalorder %s34, 0
      %p67 = por %p65, %p66
      %p68 = scmp.ne.s32.totalorder %s54, %s55
      %p69 = scmp.eq.s32.totalorder %s35, 3
      %p70 = por %p68, %p69
      %p72 = scmp.ne.s32.totalorder %s55, %s71
      %p73 = scmp.eq.s32.totalorder %s35, 0
      %p74 = por %p72, %p73
      %s76 = sadd.s32 %s75, 1
      %p79 = scmp.eq.s32.totalorder %s29, 3
      %p80 = scmp.ne.s32.totalorder %s75, %s77
      %p81 = scmp.eq.s32.totalorder %s29, 0
      %p82 = por %p80, %p81
      %p83 = scmp.ne.s32.totalorder %s75, %s77
      %p84 = scmp.eq.s32.totalorder %s34, 3
      %p85 = por %p83, %p84
      %p86 = scmp.ne.s32.totalorder %s77, %s78
      %p87 = scmp.eq.s32.totalorder %s34, 0
      %p88 = por %p86, %p87
      %p89 = scmp.ne.s32.totalorder %s77, %s78
      %p90 = scmp.eq.s32.totalorder %s35, 3
      %p91 = por %p89, %p90
      %p93 = scmp.ne.s32.totalorder %s78, %s92
      %p94 = scmp.eq.s32.totalorder %s35, 0
      %p95 = por %p93, %p94
      %s97 = sadd.s32 %s96, 1
      %p100 = scmp.eq.s32.totalorder %s29, 3
      %p101 = scmp.ne.s32.totalorder %s96, %s98
      %p102 = scmp.eq.s32.totalorder %s29, 0
      %p103 = por %p101, %p102
      %p104 = scmp.ne.s32.totalorder %s96, %s98
      %p105 = scmp.eq.s32.totalorder %s34, 3
      %p106 = por %p104, %p105
      %p107 = scmp.ne.s32.totalorder %s98, %s99
      %p108 = scmp.eq.s32.totalorder %s34, 0
      %p109 = por %p107, %p108
      %p110 = scmp.ne.s32.totalorder %s98, %s99
      %p111 = scmp.eq.s32.totalorder %s35, 3
      %p112 = por %p110, %p111
      %p114 = scmp.ne.s32.totalorder %s99, %s113
      %p115 = scmp.eq.s32.totalorder %s35, 0
      %p116 = por %p114, %p115
      %s117 = ssub.s32 %s37, %s44
      %p118 = scmp.eq.s32.totalorder %s117, 0
      %s120 = sadd.s32 %s119, 1
      %s121 = scalar_select %p118, %s119, %s120
      %p124 = pneg %p118
      %p125 = scmp.eq.s32.totalorder %s29, 3
      %p126 = por %p124, %p125
      %p127 = scmp.ne.s32.totalorder %s119, %s122
      %p128 = scmp.eq.s32.totalorder %s29, 0
      %p129 = por %p127, %p128
      %p130 = scmp.ne.s32.totalorder %s119, %s122
      %p131 = scmp.eq.s32.totalorder %s34, 3
      %p132 = por %p130, %p131
      %p133 = scmp.ne.s32.totalorder %s122, %s123
      %p134 = scmp.eq.s32.totalorder %s34, 0
      %p135 = por %p133, %p134
      %p136 = scmp.ne.s32.totalorder %s122, %s123
      %p137 = scmp.eq.s32.totalorder %s35, 3
      %p138 = por %p136, %p137
      %p140 = scmp.ne.s32.totalorder %s123, %s139
      %p141 = scmp.eq.s32.totalorder %s35, 0
      %p142 = por %p140, %p141
      %s143 = ssub.s32 %s37, %s44
      %p144 = scmp.eq.s32.totalorder %s143, 0
      %s146 = sadd.s32 %s145, 1
      %s147 = scalar_select %p144, %s145, %s146
      %p150 = pneg %p144
      %p151 = scmp.eq.s32.totalorder %s29, 3
      %p152 = por %p150, %p151
      %p153 = scmp.ne.s32.totalorder %s145, %s148
      %p154 = scmp.eq.s32.totalorder %s29, 0
      %p155 = por %p153, %p154
      %p156 = scmp.ne.s32.totalorder %s145, %s148
      %p157 = scmp.eq.s32.totalorder %s34, 3
      %p158 = por %p156, %p157
      %p159 = scmp.ne.s32.totalorder %s148, %s149
      %p160 = scmp.eq.s32.totalorder %s34, 0
      %p161 = por %p159, %p160
      %p162 = scmp.ne.s32.totalorder %s148, %s149
      %p163 = scmp.eq.s32.totalorder %s35, 3
      %p164 = por %p162, %p163
      %p166 = scmp.ne.s32.totalorder %s149, %s165
      %p167 = scmp.eq.s32.totalorder %s35, 0
      %p168 = por %p166, %p167
      %s169 = ssub.s32 %s36, %s48
      %p170 = scmp.eq.s32.totalorder %s169, 0
      %s172 = sadd.s32 %s171, 1
      %s173 = scalar_select %p170, %s171, %s172
      %p176 = pneg %p170
      %p177 = scmp.eq.s32.totalorder %s29, 3
      %p178 = por %p176, %p177
      %p179 = scmp.ne.s32.totalorder %s171, %s174
      %p180 = scmp.eq.s32.totalorder %s29, 0
      %p181 = por %p179, %p180
      %p182 = scmp.ne.s32.totalorder %s171, %s174
      %p183 = scmp.eq.s32.totalorder %s34, 3
      %p184 = por %p182, %p183
      %p185 = scmp.ne.s32.totalorder %s174, %s175
      %p186 = scmp.eq.s32.totalorder %s34, 0
      %p187 = por %p185, %p186
      %p188 = scmp.ne.s32.totalorder %s174, %s175
      %p189 = scmp.eq.s32.totalorder %s35, 3
      %p190 = por %p188, %p189
      %p192 = scmp.ne.s32.totalorder %s175, %s191
      %p193 = scmp.eq.s32.totalorder %s35, 0
      %p194 = por %p192, %p193
      %s196 = sadd.s32 %s195, 1
      %p199 = scmp.eq.s32.totalorder %s29, 3
      %p200 = scmp.ne.s32.totalorder %s195, %s197
      %p201 = scmp.eq.s32.totalorder %s29, 0
      %p202 = por %p200, %p201
      %p203 = scmp.ne.s32.totalorder %s195, %s197
      %p204 = scmp.eq.s32.totalorder %s34, 3
      %p205 = por %p203, %p204
      %p206 = scmp.ne.s32.totalorder %s197, %s198
      %p207 = scmp.eq.s32.totalorder %s34, 0
      %p208 = por %p206, %p207
      %p209 = scmp.ne.s32.totalorder %s197, %s198
      %p210 = scmp.eq.s32.totalorder %s35, 3
      %p211 = por %p209, %p210
      %p213 = scmp.ne.s32.totalorder %s198, %s212
      %p214 = scmp.eq.s32.totalorder %s35, 0
      %p215 = por %p213, %p214
      %s217 = sadd.s32 %s216, 1
      %p220 = scmp.eq.s32.totalorder %s29, 3
      %p221 = scmp.ne.s32.totalorder %s216, %s218
      %p222 = scmp.eq.s32.totalorder %s29, 0
      %p223 = por %p221, %p222
      %p224 = scmp.ne.s32.totalorder %s216, %s218
      %p225 = scmp.eq.s32.totalorder %s34, 3
      %p226 = por %p224, %p225
      %p227 = scmp.ne.s32.totalorder %s218, %s219
      %p228 = scmp.eq.s32.totalorder %s34, 0
      %p229 = por %p227, %p228
      %p230 = scmp.ne.s32.totalorder %s218, %s219
      %p231 = scmp.eq.s32.totalorder %s35, 3
      %p232 = por %p230, %p231
      %p234 = scmp.ne.s32.totalorder %s219, %s233
      %p235 = scmp.eq.s32.totalorder %s35, 0
      %p236 = por %p234, %p235
      %s238 = sadd.s32 %s237, 1
      %p241 = scmp.eq.s32.totalorder %s29, 3
      %p242 = scmp.ne.s32.totalorder %s237, %s239
      %p243 = scmp.eq.s32.totalorder %s29, 0
      %p244 = por %p242, %p243
      %p245 = scmp.ne.s32.totalorder %s237, %s239
      %p246 = scmp.eq.s32.totalorder %s34, 3
      %p247 = por %p245, %p246
      %p248 = scmp.ne.s32.totalorder %s239, %s240
      %p249 = scmp.eq.s32.totalorder %s34, 0
      %p250 = por %p248, %p249
      %p251 = scmp.ne.s32.totalorder %s239, %s240
      %p252 = scmp.eq.s32.totalorder %s35, 3
      %p253 = por %p251, %p252
      %p255 = scmp.ne.s32.totalorder %s240, %s254
      %p256 = scmp.eq.s32.totalorder %s35, 0
      %p257 = por %p255, %p256
      %s259 = sadd.s32 %s258, 1
      %p262 = scmp.eq.s32.totalorder %s29, 3
      %p263 = scmp.ne.s32.totalorder %s258, %s260
      %p264 = scmp.eq.s32.totalorder %s29, 0
      %p265 = por %p263, %p264
      %p266 = scmp.ne.s32.totalorder %s258, %s260
      %p267 = scmp.eq.s32.totalorder %s34, 3
      %p268 = por %p266, %p267
      %p269 = scmp.ne.s32.totalorder %s260, %s261
      %p270 = scmp.eq.s32.totalorder %s34, 0
      %p271 = por %p269, %p270
      %p272 = scmp.ne.s32.totalorder %s260, %s261
      %p273 = scmp.eq.s32.totalorder %s35, 3
      %p274 = por %p272, %p273
      %p276 = scmp.ne.s32.totalorder %s261, %s275
      %p277 = scmp.eq.s32.totalorder %s35, 0
      %p278 = por %p276, %p277
      %s279 = ssub.s32 %s36, %s48
      %s280 = ssub.s32 %s37, %s44
      %s281 = sor.u32 %s279, %s280
      %p282 = scmp.eq.s32.totalorder %s281, 0
      %s284 = sadd.s32 %s283, 1
      %s285 = scalar_select %p282, %s283, %s284
      %p288 = pneg %p282
      %p289 = scmp.eq.s32.totalorder %s29, 3
      %p290 = por %p288, %p289
      %p291 = scmp.ne.s32.totalorder %s283, %s286
      %p292 = scmp.eq.s32.totalorder %s29, 0
      %p293 = por %p291, %p292
      %p294 = scmp.ne.s32.totalorder %s283, %s286
      %p295 = scmp.eq.s32.totalorder %s34, 3
      %p296 = por %p294, %p295
      %p297 = scmp.ne.s32.totalorder %s286, %s287
      %p298 = scmp.eq.s32.totalorder %s34, 0
      %p299 = por %p297, %p298
      %p300 = scmp.ne.s32.totalorder %s286, %s287
      %p301 = scmp.eq.s32.totalorder %s35, 3
      %p302 = por %p300, %p301
      %p304 = scmp.ne.s32.totalorder %s287, %s303
      %p305 = scmp.eq.s32.totalorder %s35, 0
      %p306 = por %p304, %p305
      %s307 = ssub.s32 %s36, %s48
      %p308 = scmp.eq.s32.totalorder %s307, 0
      %s310 = sadd.s32 %s309, 1
      %s311 = scalar_select %p308, %s309, %s310
      %p314 = pneg %p308
      %p315 = scmp.eq.s32.totalorder %s29, 3
      %p316 = por %p314, %p315
      %p317 = scmp.ne.s32.totalorder %s309, %s312
      %p318 = scmp.eq.s32.totalorder %s29, 0
      %p319 = por %p317, %p318
      %p320 = scmp.ne.s32.totalorder %s309, %s312
      %p321 = scmp.eq.s32.totalorder %s34, 3
      %p322 = por %p320, %p321
      %p323 = scmp.ne.s32.totalorder %s312, %s313
      %p324 = scmp.eq.s32.totalorder %s34, 0
      %p325 = por %p323, %p324
      %p326 = scmp.ne.s32.totalorder %s312, %s313
      %p327 = scmp.eq.s32.totalorder %s35, 3
      %p328 = por %p326, %p327
      %p330 = scmp.ne.s32.totalorder %s313, %s329
      %p331 = scmp.eq.s32.totalorder %s35, 0
      %p332 = por %p330, %p331
      %p333 = scmp.le.s32.totalorder 1, %s29
      %p334 = scmp.lt.s32.totalorder %s29, 5
      %p335 = pnand %p333, %p334
      %p336 = pneg %p335
      // Predicated region
      $region9: #{tpu_custom_call.1} parent=5 // pred_check
        _
      $region10: #{tpu_custom_call.1} parent=5 // pred_check_branch
        %338 = sbr.rel (%p335) target = $region12
      $region11: #{tpu_custom_call.1} parent=5 // pred_region
        %s339 = ssub.s32 %s29, 1
        // Predicated region
        $region13: #{tpu_custom_call.1} parent=11 // pred_check
          %p340 = pneg %p88
        $region14: #{tpu_custom_call.1} parent=11 // pred_check_branch
          %342 = sbr.rel (%p340) target = $region16
        $region15: #{tpu_custom_call.1} parent=11 // pred_region
          %s344 = ssub.s32 4096, 4096
          %345 = vsyncadd [#allocation7], %s344
          %s346 = sshll.u32 [#allocation6], 4
          %s347 = int_to_ptr.vmem [resolvable:$true] %s346
          %352 = dma.hbm_to_vmem [thread:$0]  %s1, 4096, %s347, [#allocation7], 128, 128, 8
        $region16: #{tpu_custom_call.1} parent=11 // pred_fallthru
          _
        // Predicated region
        $region17: #{tpu_custom_call.1} parent=11 // pred_check
          %p353 = pneg %p109
        $region18: #{tpu_custom_call.1} parent=11 // pred_check_branch
          %355 = sbr.rel (%p353) target = $region20
        $region19: #{tpu_custom_call.1} parent=11 // pred_region
          _
        $region20: #{tpu_custom_call.1} parent=11 // pred_fallthru
          _
        // Predicated region
        $region21: #{tpu_custom_call.1} parent=11 // pred_check
          %p356 = pneg %p208
        $region22: #{tpu_custom_call.1} parent=11 // pred_check_branch
          %358 = sbr.rel (%p356) target = $region24
        $region23: #{tpu_custom_call.1} parent=11 // pred_region
          %s360 = ssub.s32 4096, 4096
          %361 = vsyncadd [#allocation7], %s360
          %s362 = sshll.u32 [#allocation10], 4
          %s363 = int_to_ptr.vmem [resolvable:$true] %s362
          %368 = dma.hbm_to_vmem [thread:$0]  %s6, 4096, %s363, [#allocation7], 128, 128, 8
        $region24: #{tpu_custom_call.1} parent=11 // pred_fallthru
          _
        // Predicated region
        $region25: #{tpu_custom_call.1} parent=11 // pred_check
          %p369 = pneg %p229
        $region26: #{tpu_custom_call.1} parent=11 // pred_check_branch
          %371 = sbr.rel (%p369) target = $region28
        $region27: #{tpu_custom_call.1} parent=11 // pred_region
          _
        $region28: #{tpu_custom_call.1} parent=11 // pred_fallthru
          _
        // Predicated region
        $region29: #{tpu_custom_call.1} parent=11 // pred_check
          %p372 = pneg %p250
        $region30: #{tpu_custom_call.1} parent=11 // pred_check_branch
          %374 = sbr.rel (%p372) target = $region32
        $region31: #{tpu_custom_call.1} parent=11 // pred_region
          %s376 = ssub.s32 2048, 2048
          %377 = vsyncadd [#allocation12], %s376
          %s378 = sshll.u32 [#allocation11], 4
          %s379 = int_to_ptr.vmem [resolvable:$true] %s378
          %384 = dma.hbm_to_vmem [thread:$0]  %s8, 2048, %s379, [#allocation12], 64, 64, 4
        $region32: #{tpu_custom_call.1} parent=11 // pred_fallthru
          _
        // Predicated region
        $region33: #{tpu_custom_call.1} parent=11 // pred_check
          %p385 = pneg %p271
        $region34: #{tpu_custom_call.1} parent=11 // pred_check_branch
          %387 = sbr.rel (%p385) target = $region36
        $region35: #{tpu_custom_call.1} parent=11 // pred_region
          _
        $region36: #{tpu_custom_call.1} parent=11 // pred_fallthru
          _
      $region12: #{tpu_custom_call.1} parent=5 // pred_fallthru
        _
      %p388 = scmp.lt.s32.totalorder %s29, 4
      // Predicated region
      $region37: #{tpu_custom_call.1} parent=5 // pred_check
        %p389 = pneg %p388
      $region38: #{tpu_custom_call.1} parent=5 // pred_check_branch
        %391 = sbr.rel (%p389) target = $region40
      $region39: #{tpu_custom_call.1} parent=5 // pred_region
        // Predicated region
        $region41: #{tpu_custom_call.1} parent=39 // pred_check
          %p392 = pneg %p61
        $region42: #{tpu_custom_call.1} parent=39 // pred_check_branch
          %394 = sbr.rel (%p392) target = $region44
        $region43: #{tpu_custom_call.1} parent=39 // pred_region
          %s395 = sand.u32 %s29, 1
          %s396 = scalar_lea.sflag [#allocation4], %s395
          %s397 = sand.u32 %s51, 1
          %s398 = smul.addr %s397, 256
          %s399 = scalar_lea.vmem [#allocation3], %s398
          %s400 = smul.u32 32, %s36
          %s402 = ssub.s32 4096, 4096
          %403 = vsyncadd %s396, %s402
          %s404 = smul.addr %s400, 2
          %s405 = smul.addr %s404, 64
          %s406 = scalar_lea.hbm %s0, %s405
          %s407 = sshll.u32 %s399, 4
          %s408 = int_to_ptr.vmem [resolvable:$true] %s407
          %413 = dma.hbm_to_vmem [thread:$0]  %s406, 4096, %s408, %s396, 128, 128, 8
        $region44: #{tpu_custom_call.1} parent=39 // pred_fallthru
          _
        // Predicated region
        $region45: #{tpu_custom_call.1} parent=39 // pred_check
          %p414 = pneg %p129
        $region46: #{tpu_custom_call.1} parent=39 // pred_check_branch
          %416 = sbr.rel (%p414) target = $region48
        $region47: #{tpu_custom_call.1} parent=39 // pred_region
          %s417 = sand.u32 %s29, 1
          %s418 = scalar_lea.sflag [#allocation4], %s417
          %s419 = sand.u32 %s119, 1
          %s420 = smul.addr %s419, 512
          %s421 = scalar_lea.vmem [#allocation8], %s420
          %s422 = smul.u32 4, %s37
          %s424 = ssub.s32 8192, 8192
          %425 = vsyncadd %s418, %s424
          %s426 = smul.addr %s422, 64
          %s427 = scalar_lea.hbm %s3, %s426
          %s428 = sshll.u32 %s421, 4
          %s429 = int_to_ptr.vmem [resolvable:$true] %s428
          %434 = dma.hbm_to_vmem [thread:$0]  %s427, 8192, %s429, %s418, 512, 256, 16
        $region48: #{tpu_custom_call.1} parent=39 // pred_fallthru
          _
        // Predicated region
        $region49: #{tpu_custom_call.1} parent=39 // pred_check
          %p435 = pneg %p155
        $region50: #{tpu_custom_call.1} parent=39 // pred_check_branch
          %437 = sbr.rel (%p435) target = $region52
        $region51: #{tpu_custom_call.1} parent=39 // pred_region
          %s438 = smul.u32 4, %s37
          %p439 = scmp.lt.s32.totalorder %s438, 7
          %s440 = scalar_select %p439, %s438, 7
          %s441 = scalar_lea.vmem %s4, %s440
          %s442 = smul.u32 4, %s37
        $region52: #{tpu_custom_call.1} parent=39 // pred_fallthru
          _
        // Predicated region
        $region53: #{tpu_custom_call.1} parent=39 // pred_check
          %p443 = pneg %p181
        $region54: #{tpu_custom_call.1} parent=39 // pred_check_branch
          %445 = sbr.rel (%p443) target = $region56
        $region55: #{tpu_custom_call.1} parent=39 // pred_region
          %s446 = sand.u32 %s29, 1
          %s447 = scalar_lea.sflag [#allocation4], %s446
          %s448 = sand.u32 %s171, 1
          %s449 = smul.addr %s448, 256
          %s450 = scalar_lea.vmem [#allocation9], %s449
          %s451 = smul.u32 32, %s36
          %s453 = ssub.s32 4096, 4096
          %454 = vsyncadd %s447, %s453
          %s455 = smul.addr %s451, 2
          %s456 = smul.addr %s455, 64
          %s457 = scalar_lea.hbm %s5, %s456
          %s458 = sshll.u32 %s450, 4
          %s459 = int_to_ptr.vmem [resolvable:$true] %s458
          %464 = dma.hbm_to_vmem [thread:$0]  %s457, 4096, %s459, %s447, 128, 128, 8
        $region56: #{tpu_custom_call.1} parent=39 // pred_fallthru
          _
      $region40: #{tpu_custom_call.1} parent=5 // pred_fallthru
        _
      %p465 = scmp.le.s32.totalorder 1, %s29
      %p466 = scmp.lt.s32.totalorder %s29, 5
      %p467 = pnand %p465, %p466
      %p468 = pneg %p467
      // Predicated region
      $region57: #{tpu_custom_call.1} parent=5 // pred_check
        _
      $region58: #{tpu_custom_call.1} parent=5 // pred_check_branch
        %470 = sbr.rel (%p467) target = $region60
      $region59: #{tpu_custom_call.1} parent=5 // pred_region
        %s471 = ssub.s32 %s29, 1
        %s472 = sand.u32 %s34, 1
        %s473 = scalar_lea.sflag [#allocation4], %s472
        %s474 = sand.u32 %s54, 1
        %s475 = smul.addr %s474, 256
        %s476 = scalar_lea.vmem [#allocation3], %s475
        // Predicated region
        $region61: #{tpu_custom_call.1} parent=59 // pred_check
          %p477 = pneg %p67
        $region62: #{tpu_custom_call.1} parent=59 // pred_check_branch
          %479 = sbr.rel (%p477) target = $region64
        $region63: #{tpu_custom_call.1} parent=59 // pred_region
          %480 = dma.done %s473, 4096
        $region64: #{tpu_custom_call.1} parent=59 // pred_fallthru
          _
        // Predicated region
        $region65: #{tpu_custom_call.1} parent=59 // pred_check
          %p481 = pneg %p88
        $region66: #{tpu_custom_call.1} parent=59 // pred_check_branch
          %483 = sbr.rel (%p481) target = $region68
        $region67: #{tpu_custom_call.1} parent=59 // pred_region
          %484 = dma.done [#allocation7], 4096
        $region68: #{tpu_custom_call.1} parent=59 // pred_fallthru
          _
        %s485 = sand.u32 %s34, 1
        %s486 = scalar_lea.sflag [#allocation4], %s485
        %s487 = sand.u32 %s122, 1
        %s488 = smul.addr %s487, 512
        %s489 = scalar_lea.vmem [#allocation8], %s488
        // Predicated region
        $region69: #{tpu_custom_call.1} parent=59 // pred_check
          %p490 = pneg %p135
        $region70: #{tpu_custom_call.1} parent=59 // pred_check_branch
          %492 = sbr.rel (%p490) target = $region72
        $region71: #{tpu_custom_call.1} parent=59 // pred_region
          %493 = dma.done %s486, 8192
        $region72: #{tpu_custom_call.1} parent=59 // pred_fallthru
          _
        %s494 = sand.u32 %s34, 1
        %s495 = scalar_lea.sflag [#allocation4], %s494
        %s496 = sand.u32 %s174, 1
        %s497 = smul.addr %s496, 256
        %s498 = scalar_lea.vmem [#allocation9], %s497
        // Predicated region
        $region73: #{tpu_custom_call.1} parent=59 // pred_check
          %p499 = pneg %p187
        $region74: #{tpu_custom_call.1} parent=59 // pred_check_branch
          %501 = sbr.rel (%p499) target = $region76
        $region75: #{tpu_custom_call.1} parent=59 // pred_region
          %502 = dma.done %s495, 4096
        $region76: #{tpu_custom_call.1} parent=59 // pred_fallthru
          _
        // Predicated region
        $region77: #{tpu_custom_call.1} parent=59 // pred_check
          %p503 = pneg %p208
        $region78: #{tpu_custom_call.1} parent=59 // pred_check_branch
          %505 = sbr.rel (%p503) target = $region80
        $region79: #{tpu_custom_call.1} parent=59 // pred_region
          %506 = dma.done [#allocation7], 4096
        $region80: #{tpu_custom_call.1} parent=59 // pred_fallthru
          _
        // Predicated region
        $region81: #{tpu_custom_call.1} parent=59 // pred_check
          %p507 = pneg %p250
        $region82: #{tpu_custom_call.1} parent=59 // pred_check_branch
          %509 = sbr.rel (%p507) target = $region84
        $region83: #{tpu_custom_call.1} parent=59 // pred_region
          %510 = dma.done [#allocation12], 2048
        $region84: #{tpu_custom_call.1} parent=59 // pred_fallthru
          _
        %s511 = sand.u32 %s34, 1
        %s512 = scalar_lea.sflag [#allocation4], %s511
        %s513 = sand.u32 %s54, 1
        %s514 = smul.addr %s513, 256
        %s515 = scalar_lea.vmem [#allocation3], %s514
        %p516 = pneg %p67
        %p517 = pneg %p64
        %p518 = pneg %p88
        %p519 = pneg %p85
        %p520 = pneg %p109
        %p521 = pneg %p106
        %s522 = sand.u32 %s34, 1
        %s523 = scalar_lea.sflag [#allocation4], %s522
        %s524 = sand.u32 %s122, 1
        %s525 = smul.addr %s524, 512
        %s526 = scalar_lea.vmem [#allocation8], %s525
        %p527 = pneg %p135
        %p528 = pneg %p132
        %s529 = smul.u32 4, %s39
        %p530 = scmp.lt.s32.totalorder %s529, 7
        %s531 = scalar_select %p530, %s529, 7
        %s532 = scalar_lea.vmem %s4, %s531
        %p533 = pneg %p161
        %p534 = pneg %p158
        %s535 = sand.u32 %s34, 1
        %s536 = scalar_lea.sflag [#allocation4], %s535
        %s537 = sand.u32 %s174, 1
        %s538 = smul.addr %s537, 256
        %s539 = scalar_lea.vmem [#allocation9], %s538
        %p540 = pneg %p187
        %p541 = pneg %p184
        %p542 = pneg %p208
        %p543 = pneg %p205
        %p544 = pneg %p229
        %p545 = pneg %p226
        %p546 = pneg %p250
        %p547 = pneg %p247
        %p548 = pneg %p271
        %p549 = pneg %p268
        %p550 = pneg %p299
        %p551 = pneg %p296
        %s552 = sand.u32 %s286, 1
        %s553 = scalar_lea.sflag [#allocation5], %s552
        %s554 = sand.u32 %s286, 1
        %s555 = smul.addr %s554, 512
        %s556 = scalar_lea.vmem [#allocation13], %s555
        %p557 = pneg %p325
        %p558 = pneg %p322
        %s559 = sand.u32 %s312, 1
        %s560 = scalar_lea.sflag [#allocation15], %s559
        %s561 = sand.u32 %s312, 1
        %s562 = smul.addr %s561, 256
        %s563 = scalar_lea.vmem [#allocation14], %s562
        %s564 = smul.u32 32, %s38
        %s565 = smul.u32 4, %s39
        %s566 = smul.u32 4, %s39
        %p567 = scmp.lt.s32.totalorder %s566, 7
        %s568 = scalar_select %p567, %s566, 7
        %s569 = scalar_lea.vmem %s4, %s568
        %s570 = smul.u32 4, %s39
        %s571 = smul.u32 32, %s38
        %s572 = smul.u32 32, %s38
        %s573 = smul.u32 4, %s39
        %s574 = smul.u32 32, %s38
        %p576 = scmp.eq.s32.totalorder %s39, 0
        // Predicated region
        $region85: #{tpu_custom_call.1} parent=59 // pred_check
          %p577 = pneg %p576
        $region86: #{tpu_custom_call.1} parent=59 // pred_check_branch
          %579 = sbr.rel (%p577) target = $region88
        $region87: #{tpu_custom_call.1} parent=59 // pred_region
          %v580 = vld [vmem:[%s476] sm:$0xff]
          %v581 = vld [vmem:[%s476 + $0x8] sm:$0xff]
          %v582 = vld [vmem:[%s476 + $0x10] sm:$0xff]
          %v583 = vld [vmem:[%s476 + $0x18] sm:$0xff]
          %v584 = vld [vmem:[%s476 + $0x20] sm:$0xff]
          %v585 = vld [vmem:[%s476 + $0x28] sm:$0xff]
          %v586 = vld [vmem:[%s476 + $0x30] sm:$0xff]
          %v587 = vld [vmem:[%s476 + $0x38] sm:$0xff]
          %v588 = vld [vmem:[%s476 + $0x40] sm:$0xff]
          %v589 = vld [vmem:[%s476 + $0x48] sm:$0xff]
          %v590 = vld [vmem:[%s476 + $0x50] sm:$0xff]
          %v591 = vld [vmem:[%s476 + $0x58] sm:$0xff]
          %v592 = vld [vmem:[%s476 + $0x60] sm:$0xff]
          %v593 = vld [vmem:[%s476 + $0x68] sm:$0xff]
          %v594 = vld [vmem:[%s476 + $0x70] sm:$0xff]
          %v595 = vld [vmem:[%s476 + $0x78] sm:$0xff]
          %v596 = vld [vmem:[%s476 + $0x80] sm:$0xff]
          %v597 = vld [vmem:[%s476 + $0x88] sm:$0xff]
          %v598 = vld [vmem:[%s476 + $0x90] sm:$0xff]
          %v599 = vld [vmem:[%s476 + $0x98] sm:$0xff]
          %v600 = vld [vmem:[%s476 + $0xa0] sm:$0xff]
          %v601 = vld [vmem:[%s476 + $0xa8] sm:$0xff]
          %v602 = vld [vmem:[%s476 + $0xb0] sm:$0xff]
          %v603 = vld [vmem:[%s476 + $0xb8] sm:$0xff]
          %v604 = vld [vmem:[%s476 + $0xc0] sm:$0xff]
          %v605 = vld [vmem:[%s476 + $0xc8] sm:$0xff]
          %v606 = vld [vmem:[%s476 + $0xd0] sm:$0xff]
          %v607 = vld [vmem:[%s476 + $0xd8] sm:$0xff]
          %v608 = vld [vmem:[%s476 + $0xe0] sm:$0xff]
          %v609 = vld [vmem:[%s476 + $0xe8] sm:$0xff]
          %v610 = vld [vmem:[%s476 + $0xf0] sm:$0xff]
          %v611 = vld [vmem:[%s476 + $0xf8] sm:$0xff]
          %v612 = vld [vmem:[#allocation6] sm:$0xff]
          %v613 = vld [vmem:[#allocation6 + $0x8] sm:$0xff]
          %v614 = vld [vmem:[#allocation6 + $0x10] sm:$0xff]
          %v615 = vld [vmem:[#allocation6 + $0x18] sm:$0xff]
          %v616 = vld [vmem:[#allocation6 + $0x20] sm:$0xff]
          %v617 = vld [vmem:[#allocation6 + $0x28] sm:$0xff]
          %v618 = vld [vmem:[#allocation6 + $0x30] sm:$0xff]
          %v619 = vld [vmem:[#allocation6 + $0x38] sm:$0xff]
          %v620 = vld [vmem:[#allocation6 + $0x40] sm:$0xff]
          %v621 = vld [vmem:[#allocation6 + $0x48] sm:$0xff]
          %v622 = vld [vmem:[#allocation6 + $0x50] sm:$0xff]
          %v623 = vld [vmem:[#allocation6 + $0x58] sm:$0xff]
          %v624 = vld [vmem:[#allocation6 + $0x60] sm:$0xff]
          %v625 = vld [vmem:[#allocation6 + $0x68] sm:$0xff]
          %v626 = vld [vmem:[#allocation6 + $0x70] sm:$0xff]
          %v627 = vld [vmem:[#allocation6 + $0x78] sm:$0xff]
          %v628 = vld [vmem:[#allocation6 + $0x80] sm:$0xff]
          %v629 = vld [vmem:[#allocation6 + $0x88] sm:$0xff]
          %v630 = vld [vmem:[#allocation6 + $0x90] sm:$0xff]
          %v631 = vld [vmem:[#allocation6 + $0x98] sm:$0xff]
          %v632 = vld [vmem:[#allocation6 + $0xa0] sm:$0xff]
          %v633 = vld [vmem:[#allocation6 + $0xa8] sm:$0xff]
          %v634 = vld [vmem:[#allocation6 + $0xb0] sm:$0xff]
          %v635 = vld [vmem:[#allocation6 + $0xb8] sm:$0xff]
          %v636 = vld [vmem:[#allocation6 + $0xc0] sm:$0xff]
          %v637 = vld [vmem:[#allocation6 + $0xc8] sm:$0xff]
          %v638 = vld [vmem:[#allocation6 + $0xd0] sm:$0xff]
          %v639 = vld [vmem:[#allocation6 + $0xd8] sm:$0xff]
          %v640 = vld [vmem:[#allocation6 + $0xe0] sm:$0xff]
          %v641 = vld [vmem:[#allocation6 + $0xe8] sm:$0xff]
          %v642 = vld [vmem:[#allocation6 + $0xf0] sm:$0xff]
          %v643 = vld [vmem:[#allocation6 + $0xf8] sm:$0xff]
          %v644 = vld [vmem:[%s2] sm:$0x3]
          %v646 = vlaneseq
          %v647 = vshrl.u32 %v646, 7
          %v648 = vsub.s32 0, %v647
          %v649 = vrot.slane %v644, %v648
          %v650 = vlaneseq
          %v651 = vshrl.u32 %v650, 7
          %v652 = vsub.s32 1, %v651
          %v653 = vrot.slane %v644, %v652
          %v688 = vunpack.c.l.b16 %v580
          %v689 = vunpack.c.h.b16 %v580
          %v690 = vunpack.c.l.b16 %v581
          %v691 = vunpack.c.h.b16 %v581
          %v692 = vunpack.c.l.b16 %v582
          %v693 = vunpack.c.h.b16 %v582
          %v694 = vunpack.c.l.b16 %v583
          %v695 = vunpack.c.h.b16 %v583
          %v696 = vunpack.c.l.b16 %v584
          %v697 = vunpack.c.h.b16 %v584
          %v698 = vunpack.c.l.b16 %v585
          %v699 = vunpack.c.h.b16 %v585
          %v700 = vunpack.c.l.b16 %v586
          %v701 = vunpack.c.h.b16 %v586
          %v702 = vunpack.c.l.b16 %v587
          %v703 = vunpack.c.h.b16 %v587
          %v704 = vunpack.c.l.b16 %v588
          %v705 = vunpack.c.h.b16 %v588
          %v706 = vunpack.c.l.b16 %v589
          %v707 = vunpack.c.h.b16 %v589
          %v708 = vunpack.c.l.b16 %v590
          %v709 = vunpack.c.h.b16 %v590
          %v710 = vunpack.c.l.b16 %v591
          %v711 = vunpack.c.h.b16 %v591
          %v712 = vunpack.c.l.b16 %v592
          %v713 = vunpack.c.h.b16 %v592
          %v714 = vunpack.c.l.b16 %v593
          %v715 = vunpack.c.h.b16 %v593
          %v716 = vunpack.c.l.b16 %v594
          %v717 = vunpack.c.h.b16 %v594
          %v718 = vunpack.c.l.b16 %v595
          %v719 = vunpack.c.h.b16 %v595
          %v720 = vunpack.c.l.b16 %v596
          %v721 = vunpack.c.h.b16 %v596
          %v722 = vunpack.c.l.b16 %v597
          %v723 = vunpack.c.h.b16 %v597
          %v724 = vunpack.c.l.b16 %v598
          %v725 = vunpack.c.h.b16 %v598
          %v726 = vunpack.c.l.b16 %v599
          %v727 = vunpack.c.h.b16 %v599
          %v728 = vunpack.c.l.b16 %v600
          %v729 = vunpack.c.h.b16 %v600
          %v730 = vunpack.c.l.b16 %v601
          %v731 = vunpack.c.h.b16 %v601
          %v732 = vunpack.c.l.b16 %v602
          %v733 = vunpack.c.h.b16 %v602
          %v734 = vunpack.c.l.b16 %v603
          %v735 = vunpack.c.h.b16 %v603
          %v736 = vunpack.c.l.b16 %v604
          %v737 = vunpack.c.h.b16 %v604
          %v738 = vunpack.c.l.b16 %v605
          %v739 = vunpack.c.h.b16 %v605
          %v740 = vunpack.c.l.b16 %v606
          %v741 = vunpack.c.h.b16 %v606
          %v742 = vunpack.c.l.b16 %v607
          %v743 = vunpack.c.h.b16 %v607
          %v744 = vunpack.c.l.b16 %v608
          %v745 = vunpack.c.h.b16 %v608
          %v746 = vunpack.c.l.b16 %v609
          %v747 = vunpack.c.h.b16 %v609
          %v748 = vunpack.c.l.b16 %v610
          %v749 = vunpack.c.h.b16 %v610
          %v750 = vunpack.c.l.b16 %v611
          %v751 = vunpack.c.h.b16 %v611
          %v752 = vpack.c.b16 %v690, %v688
          %v753 = vpack.c.b16 %v691, %v689
          %v754 = vpack.c.b16 %v694, %v692
          %v755 = vpack.c.b16 %v695, %v693
          %v756 = vpack.c.b16 %v698, %v696
          %v757 = vpack.c.b16 %v699, %v697
          %v758 = vpack.c.b16 %v702, %v700
          %v759 = vpack.c.b16 %v703, %v701
          %v760 = vpack.c.b16 %v706, %v704
          %v761 = vpack.c.b16 %v707, %v705
          %v762 = vpack.c.b16 %v710, %v708
          %v763 = vpack.c.b16 %v711, %v709
          %v764 = vpack.c.b16 %v714, %v712
          %v765 = vpack.c.b16 %v715, %v713
          %v766 = vpack.c.b16 %v718, %v716
          %v767 = vpack.c.b16 %v719, %v717
          %v768 = vpack.c.b16 %v722, %v720
          %v769 = vpack.c.b16 %v723, %v721
          %v770 = vpack.c.b16 %v726, %v724
          %v771 = vpack.c.b16 %v727, %v725
          %v772 = vpack.c.b16 %v730, %v728
          %v773 = vpack.c.b16 %v731, %v729
          %v774 = vpack.c.b16 %v734, %v732
          %v775 = vpack.c.b16 %v735, %v733
          %v776 = vpack.c.b16 %v738, %v736
          %v777 = vpack.c.b16 %v739, %v737
          %v778 = vpack.c.b16 %v742, %v740
          %v779 = vpack.c.b16 %v743, %v741
          %v780 = vpack.c.b16 %v746, %v744
          %v781 = vpack.c.b16 %v747, %v745
          %v782 = vpack.c.b16 %v750, %v748
          %v783 = vpack.c.b16 %v751, %v749
          %v848 = vunpack.c.l.b16 %v612
          %v849 = vunpack.c.h.b16 %v612
          %v850 = vunpack.c.l.b16 %v613
          %v851 = vunpack.c.h.b16 %v613
          %v852 = vunpack.c.l.b16 %v614
          %v853 = vunpack.c.h.b16 %v614
          %v854 = vunpack.c.l.b16 %v615
          %v855 = vunpack.c.h.b16 %v615
          %v856 = vunpack.c.l.b16 %v616
          %v857 = vunpack.c.h.b16 %v616
          %v858 = vunpack.c.l.b16 %v617
          %v859 = vunpack.c.h.b16 %v617
          %v860 = vunpack.c.l.b16 %v618
          %v861 = vunpack.c.h.b16 %v618
          %v862 = vunpack.c.l.b16 %v619
          %v863 = vunpack.c.h.b16 %v619
          %v864 = vunpack.c.l.b16 %v620
          %v865 = vunpack.c.h.b16 %v620
          %v866 = vunpack.c.l.b16 %v621
          %v867 = vunpack.c.h.b16 %v621
          %v868 = vunpack.c.l.b16 %v622
          %v869 = vunpack.c.h.b16 %v622
          %v870 = vunpack.c.l.b16 %v623
          %v871 = vunpack.c.h.b16 %v623
          %v872 = vunpack.c.l.b16 %v624
          %v873 = vunpack.c.h.b16 %v624
          %v874 = vunpack.c.l.b16 %v625
          %v875 = vunpack.c.h.b16 %v625
          %v876 = vunpack.c.l.b16 %v626
          %v877 = vunpack.c.h.b16 %v626
          %v878 = vunpack.c.l.b16 %v627
          %v879 = vunpack.c.h.b16 %v627
          %v880 = vunpack.c.l.b16 %v628
          %v881 = vunpack.c.h.b16 %v628
          %v882 = vunpack.c.l.b16 %v629
          %v883 = vunpack.c.h.b16 %v629
          %v884 = vunpack.c.l.b16 %v630
          %v885 = vunpack.c.h.b16 %v630
          %v886 = vunpack.c.l.b16 %v631
          %v887 = vunpack.c.h.b16 %v631
          %v888 = vunpack.c.l.b16 %v632
          %v889 = vunpack.c.h.b16 %v632
          %v890 = vunpack.c.l.b16 %v633
          %v891 = vunpack.c.h.b16 %v633
          %v892 = vunpack.c.l.b16 %v634
          %v893 = vunpack.c.h.b16 %v634
          %v894 = vunpack.c.l.b16 %v635
          %v895 = vunpack.c.h.b16 %v635
          %v896 = vunpack.c.l.b16 %v636
          %v897 = vunpack.c.h.b16 %v636
          %v898 = vunpack.c.l.b16 %v637
          %v899 = vunpack.c.h.b16 %v637
          %v900 = vunpack.c.l.b16 %v638
          %v901 = vunpack.c.h.b16 %v638
          %v902 = vunpack.c.l.b16 %v639
          %v903 = vunpack.c.h.b16 %v639
          %v904 = vunpack.c.l.b16 %v640
          %v905 = vunpack.c.h.b16 %v640
          %v906 = vunpack.c.l.b16 %v641
          %v907 = vunpack.c.h.b16 %v641
          %v908 = vunpack.c.l.b16 %v642
          %v909 = vunpack.c.h.b16 %v642
          %v910 = vunpack.c.l.b16 %v643
          %v911 = vunpack.c.h.b16 %v643
          %v912 = vpack.c.b16 %v850, %v848
          %v913 = vpack.c.b16 %v851, %v849
          %v914 = vpack.c.b16 %v854, %v852
          %v915 = vpack.c.b16 %v855, %v853
          %v916 = vpack.c.b16 %v858, %v856
          %v917 = vpack.c.b16 %v859, %v857
          %v918 = vpack.c.b16 %v862, %v860
          %v919 = vpack.c.b16 %v863, %v861
          %v920 = vpack.c.b16 %v866, %v864
          %v921 = vpack.c.b16 %v867, %v865
          %v922 = vpack.c.b16 %v870, %v868
          %v923 = vpack.c.b16 %v871, %v869
          %v924 = vpack.c.b16 %v874, %v872
          %v925 = vpack.c.b16 %v875, %v873
          %v926 = vpack.c.b16 %v878, %v876
          %v927 = vpack.c.b16 %v879, %v877
          %v928 = vpack.c.b16 %v882, %v880
          %v929 = vpack.c.b16 %v883, %v881
          %v930 = vpack.c.b16 %v886, %v884
          %v931 = vpack.c.b16 %v887, %v885
          %v932 = vpack.c.b16 %v890, %v888
          %v933 = vpack.c.b16 %v891, %v889
          %v934 = vpack.c.b16 %v894, %v892
          %v935 = vpack.c.b16 %v895, %v893
          %v936 = vpack.c.b16 %v898, %v896
          %v937 = vpack.c.b16 %v899, %v897
          %v938 = vpack.c.b16 %v902, %v900
          %v939 = vpack.c.b16 %v903, %v901
          %v940 = vpack.c.b16 %v906, %v904
          %v941 = vpack.c.b16 %v907, %v905
          %v942 = vpack.c.b16 %v910, %v908
          %v943 = vpack.c.b16 %v911, %v909
          %976 = vmatprep.subr.bf16.mxu0 %v913
          %977 = vmatpush1.bf16.msra.mxu0 %v912
          %978 = vmatprep.subr.bf16.mxu0 %v915
          %979 = vmatpush1.bf16.msra.mxu0 %v914
          %980 = vmatprep.subr.bf16.mxu0 %v917
          %981 = vmatpush1.bf16.msra.mxu0 %v916
          %982 = vmatprep.subr.bf16.mxu0 %v919
          %983 = vmatpush1.bf16.msra.mxu0 %v918
          %984 = vmatprep.subr.bf16.mxu0 %v921
          %985 = vmatpush1.bf16.msra.mxu0 %v920
          %986 = vmatprep.subr.bf16.mxu0 %v923
          %987 = vmatpush1.bf16.msra.mxu0 %v922
          %988 = vmatprep.subr.bf16.mxu0 %v925
          %989 = vmatpush1.bf16.msra.mxu0 %v924
          %990 = vmatprep.subr.bf16.mxu0 %v927
          %991 = vmatpush1.bf16.msra.mxu0 %v926
          %992 = vmatprep.subr.bf16.mxu0 %v929
          %993 = vmatpush1.bf16.msra.mxu0 %v928
          %994 = vmatprep.subr.bf16.mxu0 %v931
          %995 = vmatpush1.bf16.msra.mxu0 %v930
          %996 = vmatprep.subr.bf16.mxu0 %v933
          %997 = vmatpush1.bf16.msra.mxu0 %v932
          %998 = vmatprep.subr.bf16.mxu0 %v935
          %999 = vmatpush1.bf16.msra.mxu0 %v934
          %1000 = vmatprep.subr.bf16.mxu0 %v937
          %1001 = vmatpush1.bf16.msra.mxu0 %v936
          %1002 = vmatprep.subr.bf16.mxu0 %v939
          %1003 = vmatpush1.bf16.msra.mxu0 %v938
          %1004 = vmatprep.subr.bf16.mxu0 %v941
          %1005 = vmatpush1.bf16.msra.mxu0 %v940
          %1006 = vmatprep.subr.bf16.mxu0 %v943
          %1007 = vmatpush1.bf16.msra.mxu0 %v942
          %1008 = vmatprep.mubr.bf16.mxu0 %v753
          %1009 = vmatmul.mubr.bf16.gmra.mrb[0].mxu0 %v752
          %v1010 = vpop.f32.mrb[0].mxu0
          %v1011 = vadd.f32 %v649, %v1010
          %v1012 = vpop.f32.mrb[0].mxu0
          %v1013 = vadd.f32 %v653, %v1012
          %v1014 = vpop.f32.mrb[0].mxu0
          %v1015 = vadd.f32 %v649, %v1014
          %v1016 = vpop.f32.mrb[0].mxu0
          %v1017 = vadd.f32 %v653, %v1016
          %1018 = vmatprep.mubr.bf16.mxu0 %v755
          %1019 = vmatmul.mubr.bf16.gmra.mrb[0].mxu0 %v754
          %v1020 = vpop.f32.mrb[0].mxu0
          %v1021 = vadd.f32 %v649, %v1020
          %v1022 = vpop.f32.mrb[0].mxu0
          %v1023 = vadd.f32 %v653, %v1022
          %v1024 = vpop.f32.mrb[0].mxu0
          %v1025 = vadd.f32 %v649, %v1024
          %v1026 = vpop.f32.mrb[0].mxu0
          %v1027 = vadd.f32 %v653, %v1026
          %1028 = vmatprep.mubr.bf16.mxu0 %v757
          %1029 = vmatmul.mubr.bf16.gmra.mrb[0].mxu0 %v756
          %v1030 = vpop.f32.mrb[0].mxu0
          %v1031 = vadd.f32 %v649, %v1030
          %v1032 = vpop.f32.mrb[0].mxu0
          %v1033 = vadd.f32 %v653, %v1032
          %v1034 = vpop.f32.mrb[0].mxu0
          %v1035 = vadd.f32 %v649, %v1034
          %v1036 = vpop.f32.mrb[0].mxu0
          %v1037 = vadd.f32 %v653, %v1036
          %1038 = vmatprep.mubr.bf16.mxu0 %v759
          %1039 = vmatmul.mubr.bf16.gmra.mrb[0].mxu0 %v758
          %v1040 = vpop.f32.mrb[0].mxu0
          %v1041 = vadd.f32 %v649, %v1040
          %v1042 = vpop.f32.mrb[0].mxu0
          %v1043 = vadd.f32 %v653, %v1042
          %v1044 = vpop.f32.mrb[0].mxu0
          %v1045 = vadd.f32 %v649, %v1044
          %v1046 = vpop.f32.mrb[0].mxu0
          %v1047 = vadd.f32 %v653, %v1046
          %1048 = vmatprep.mubr.bf16.mxu0 %v761
          %1049 = vmatmul.mubr.bf16.gmra.mrb[0].mxu0 %v760
          %v1050 = vpop.f32.mrb[0].mxu0
          %v1051 = vadd.f32 %v649, %v1050
          %v1052 = vpop.f32.mrb[0].mxu0
          %v1053 = vadd.f32 %v653, %v1052
          %v1054 = vpop.f32.mrb[0].mxu0
          %v1055 = vadd.f32 %v649, %v1054
          %v1056 = vpop.f32.mrb[0].mxu0
          %v1057 = vadd.f32 %v653, %v1056
          %1058 = vmatprep.mubr.bf16.mxu0 %v763
          %1059 = vmatmul.mubr.bf16.gmra.mrb[0].mxu0 %v762
          %v1060 = vpop.f32.mrb[0].mxu0
          %v1061 = vadd.f32 %v649, %v1060
          %v1062 = vpop.f32.mrb[0].mxu0
          %v1063 = vadd.f32 %v653, %v1062
          %v1064 = vpop.f32.mrb[0].mxu0
          %v1065 = vadd.f32 %v649, %v1064
          %v1066 = vpop.f32.mrb[0].mxu0
          %v1067 = vadd.f32 %v653, %v1066
          %1068 = vmatprep.mubr.bf16.mxu0 %v765
          %1069 = vmatmul.mubr.bf16.gmra.mrb[0].mxu0 %v764
          %v1070 = vpop.f32.mrb[0].mxu0
          %v1071 = vadd.f32 %v649, %v1070
          %v1072 = vpop.f32.mrb[0].mxu0
          %v1073 = vadd.f32 %v653, %v1072
          %v1074 = vpop.f32.mrb[0].mxu0
          %v1075 = vadd.f32 %v649, %v1074
          %v1076 = vpop.f32.mrb[0].mxu0
          %v1077 = vadd.f32 %v653, %v1076
          %1078 = vmatprep.mubr.bf16.mxu0 %v767
          %1079 = vmatmul.mubr.bf16.gmra.mrb[0].mxu0 %v766
          %v1080 = vpop.f32.mrb[0].mxu0
          %v1081 = vadd.f32 %v649, %v1080
          %v1082 = vpop.f32.mrb[0].mxu0
          %v1083 = vadd.f32 %v653, %v1082
          %v1084 = vpop.f32.mrb[0].mxu0
          %v1085 = vadd.f32 %v649, %v1084
          %v1086 = vpop.f32.mrb[0].mxu0
          %v1087 = vadd.f32 %v653, %v1086
          %1088 = vmatprep.mubr.bf16.mxu0 %v769
          %1089 = vmatmul.mubr.bf16.gmra.mrb[0].mxu0 %v768
          %v1090 = vpop.f32.mrb[0].mxu0
          %v1091 = vadd.f32 %v649, %v1090
          %v1092 = vpop.f32.mrb[0].mxu0
          %v1093 = vadd.f32 %v653, %v1092
          %v1094 = vpop.f32.mrb[0].mxu0
          %v1095 = vadd.f32 %v649, %v1094
          %v1096 = vpop.f32.mrb[0].mxu0
          %v1097 = vadd.f32 %v653, %v1096
          %1098 = vmatprep.mubr.bf16.mxu0 %v771
          %1099 = vmatmul.mubr.bf16.gmra.mrb[0].mxu0 %v770
          %v1100 = vpop.f32.mrb[0].mxu0
          %v1101 = vadd.f32 %v649, %v1100
          %v1102 = vpop.f32.mrb[0].mxu0
          %v1103 = vadd.f32 %v653, %v1102
          %v1104 = vpop.f32.mrb[0].mxu0
          %v1105 = vadd.f32 %v649, %v1104
          %v1106 = vpop.f32.mrb[0].mxu0
          %v1107 = vadd.f32 %v653, %v1106
          %1108 = vmatprep.mubr.bf16.mxu0 %v773
          %1109 = vmatmul.mubr.bf16.gmra.mrb[0].mxu0 %v772
          %v1110 = vpop.f32.mrb[0].mxu0
          %v1111 = vadd.f32 %v649, %v1110
          %v1112 = vpop.f32.mrb[0].mxu0
          %v1113 = vadd.f32 %v653, %v1112
          %v1114 = vpop.f32.mrb[0].mxu0
          %v1115 = vadd.f32 %v649, %v1114
          %v1116 = vpop.f32.mrb[0].mxu0
          %v1117 = vadd.f32 %v653, %v1116
          %1118 = vmatprep.mubr.bf16.mxu0 %v775
          %1119 = vmatmul.mubr.bf16.gmra.mrb[0].mxu0 %v774
          %v1120 = vpop.f32.mrb[0].mxu0
          %v1121 = vadd.f32 %v649, %v1120
          %v1122 = vpop.f32.mrb[0].mxu0
          %v1123 = vadd.f32 %v653, %v1122
          %v1124 = vpop.f32.mrb[0].mxu0
          %v1125 = vadd.f32 %v649, %v1124
          %v1126 = vpop.f32.mrb[0].mxu0
          %v1127 = vadd.f32 %v653, %v1126
          %1128 = vmatprep.mubr.bf16.mxu0 %v777
          %1129 = vmatmul.mubr.bf16.gmra.mrb[0].mxu0 %v776
          %v1130 = vpop.f32.mrb[0].mxu0
          %v1131 = vadd.f32 %v649, %v1130
          %v1132 = vpop.f32.mrb[0].mxu0
          %v1133 = vadd.f32 %v653, %v1132
          %v1134 = vpop.f32.mrb[0].mxu0
          %v1135 = vadd.f32 %v649, %v1134
          %v1136 = vpop.f32.mrb[0].mxu0
          %v1137 = vadd.f32 %v653, %v1136
          %1138 = vmatprep.mubr.bf16.mxu0 %v779
          %1139 = vmatmul.mubr.bf16.gmra.mrb[0].mxu0 %v778
          %v1140 = vpop.f32.mrb[0].mxu0
          %v1141 = vadd.f32 %v649, %v1140
          %v1142 = vpop.f32.mrb[0].mxu0
          %v1143 = vadd.f32 %v653, %v1142
          %v1144 = vpop.f32.mrb[0].mxu0
          %v1145 = vadd.f32 %v649, %v1144
          %v1146 = vpop.f32.mrb[0].mxu0
          %v1147 = vadd.f32 %v653, %v1146
          %1148 = vmatprep.mubr.bf16.mxu0 %v781
          %1149 = vmatmul.mubr.bf16.gmra.mrb[0].mxu0 %v780
          %v1150 = vpop.f32.mrb[0].mxu0
          %v1151 = vadd.f32 %v649, %v1150
          %v1152 = vpop.f32.mrb[0].mxu0
          %v1153 = vadd.f32 %v653, %v1152
          %v1154 = vpop.f32.mrb[0].mxu0
          %v1155 = vadd.f32 %v649, %v1154
          %v1156 = vpop.f32.mrb[0].mxu0
          %v1157 = vadd.f32 %v653, %v1156
          %1158 = vmatprep.mubr.bf16.mxu0 %v783
          %1159 = vmatmul.mubr.bf16.gmra.mrb[0].mxu0 %v782
          %v1160 = vpop.f32.mrb[0].mxu0
          %v1161 = vadd.f32 %v649, %v1160
          %v1162 = vpop.f32.mrb[0].mxu0
          %v1163 = vadd.f32 %v653, %v1162
          %v1164 = vpop.f32.mrb[0].mxu0
          %v1165 = vadd.f32 %v649, %v1164
          %v1166 = vpop.f32.mrb[0].mxu0
          %v1167 = vadd.f32 %v653, %v1166
          %1168 = vdwg.mxu0
          %v1169 = vmul.f32 %v1011, %v1011
          %v1170 = vmul.f32 %v1013, %v1013
          %v1171 = vmul.f32 %v1015, %v1015
          %v1172 = vmul.f32 %v1017, %v1017
          %v1173 = vmul.f32 %v1021, %v1021
          %v1174 = vmul.f32 %v1023, %v1023
          %v1175 = vmul.f32 %v1025, %v1025
          %v1176 = vmul.f32 %v1027, %v1027
          %v1177 = vmul.f32 %v1031, %v1031
          %v1178 = vmul.f32 %v1033, %v1033
          %v1179 = vmul.f32 %v1035, %v1035
          %v1180 = vmul.f32 %v1037, %v1037
          %v1181 = vmul.f32 %v1041, %v1041
          %v1182 = vmul.f32 %v1043, %v1043
          %v1183 = vmul.f32 %v1045, %v1045
          %v1184 = vmul.f32 %v1047, %v1047
          %v1185 = vmul.f32 %v1051, %v1051
          %v1186 = vmul.f32 %v1053, %v1053
          %v1187 = vmul.f32 %v1055, %v1055
          %v1188 = vmul.f32 %v1057, %v1057
          %v1189 = vmul.f32 %v1061, %v1061
          %v1190 = vmul.f32 %v1063, %v1063
          %v1191 = vmul.f32 %v1065, %v1065
          %v1192 = vmul.f32 %v1067, %v1067
          %v1193 = vmul.f32 %v1071, %v1071
          %v1194 = vmul.f32 %v1073, %v1073
          %v1195 = vmul.f32 %v1075, %v1075
          %v1196 = vmul.f32 %v1077, %v1077
          %v1197 = vmul.f32 %v1081, %v1081
          %v1198 = vmul.f32 %v1083, %v1083
          %v1199 = vmul.f32 %v1085, %v1085
          %v1200 = vmul.f32 %v1087, %v1087
          %v1201 = vmul.f32 %v1091, %v1091
          %v1202 = vmul.f32 %v1093, %v1093
          %v1203 = vmul.f32 %v1095, %v1095
          %v1204 = vmul.f32 %v1097, %v1097
          %v1205 = vmul.f32 %v1101, %v1101
          %v1206 = vmul.f32 %v1103, %v1103
          %v1207 = vmul.f32 %v1105, %v1105
          %v1208 = vmul.f32 %v1107, %v1107
          %v1209 = vmul.f32 %v1111, %v1111
          %v1210 = vmul.f32 %v1113, %v1113
          %v1211 = vmul.f32 %v1115, %v1115
          %v1212 = vmul.f32 %v1117, %v1117
          %v1213 = vmul.f32 %v1121, %v1121
          %v1214 = vmul.f32 %v1123, %v1123
          %v1215 = vmul.f32 %v1125, %v1125
          %v1216 = vmul.f32 %v1127, %v1127
          %v1217 = vmul.f32 %v1131, %v1131
          %v1218 = vmul.f32 %v1133, %v1133
          %v1219 = vmul.f32 %v1135, %v1135
          %v1220 = vmul.f32 %v1137, %v1137
          %v1221 = vmul.f32 %v1141, %v1141
          %v1222 = vmul.f32 %v1143, %v1143
          %v1223 = vmul.f32 %v1145, %v1145
          %v1224 = vmul.f32 %v1147, %v1147
          %v1225 = vmul.f32 %v1151, %v1151
          %v1226 = vmul.f32 %v1153, %v1153
          %v1227 = vmul.f32 %v1155, %v1155
          %v1228 = vmul.f32 %v1157, %v1157
          %v1229 = vmul.f32 %v1161, %v1161
          %v1230 = vmul.f32 %v1163, %v1163
          %v1231 = vmul.f32 %v1165, %v1165
          %v1232 = vmul.f32 %v1167, %v1167
          %v1233 = vmul.f32 %v1011, %v1169
          %v1234 = vmul.f32 %v1013, %v1170
          %v1235 = vmul.f32 %v1015, %v1171
          %v1236 = vmul.f32 %v1017, %v1172
          %v1237 = vmul.f32 %v1021, %v1173
          %v1238 = vmul.f32 %v1023, %v1174
          %v1239 = vmul.f32 %v1025, %v1175
          %v1240 = vmul.f32 %v1027, %v1176
          %v1241 = vmul.f32 %v1031, %v1177
          %v1242 = vmul.f32 %v1033, %v1178
          %v1243 = vmul.f32 %v1035, %v1179
          %v1244 = vmul.f32 %v1037, %v1180
          %v1245 = vmul.f32 %v1041, %v1181
          %v1246 = vmul.f32 %v1043, %v1182
          %v1247 = vmul.f32 %v1045, %v1183
          %v1248 = vmul.f32 %v1047, %v1184
          %v1249 = vmul.f32 %v1051, %v1185
          %v1250 = vmul.f32 %v1053, %v1186
          %v1251 = vmul.f32 %v1055, %v1187
          %v1252 = vmul.f32 %v1057, %v1188
          %v1253 = vmul.f32 %v1061, %v1189
          %v1254 = vmul.f32 %v1063, %v1190
          %v1255 = vmul.f32 %v1065, %v1191
          %v1256 = vmul.f32 %v1067, %v1192
          %v1257 = vmul.f32 %v1071, %v1193
          %v1258 = vmul.f32 %v1073, %v1194
          %v1259 = vmul.f32 %v1075, %v1195
          %v1260 = vmul.f32 %v1077, %v1196
          %v1261 = vmul.f32 %v1081, %v1197
          %v1262 = vmul.f32 %v1083, %v1198
          %v1263 = vmul.f32 %v1085, %v1199
          %v1264 = vmul.f32 %v1087, %v1200
          %v1265 = vmul.f32 %v1091, %v1201
          %v1266 = vmul.f32 %v1093, %v1202
          %v1267 = vmul.f32 %v1095, %v1203
          %v1268 = vmul.f32 %v1097, %v1204
          %v1269 = vmul.f32 %v1101, %v1205
          %v1270 = vmul.f32 %v1103, %v1206
          %v1271 = vmul.f32 %v1105, %v1207
          %v1272 = vmul.f32 %v1107, %v1208
          %v1273 = vmul.f32 %v1111, %v1209
          %v1274 = vmul.f32 %v1113, %v1210
          %v1275 = vmul.f32 %v1115, %v1211
          %v1276 = vmul.f32 %v1117, %v1212
          %v1277 = vmul.f32 %v1121, %v1213
          %v1278 = vmul.f32 %v1123, %v1214
          %v1279 = vmul.f32 %v1125, %v1215
          %v1280 = vmul.f32 %v1127, %v1216
          %v1281 = vmul.f32 %v1131, %v1217
          %v1282 = vmul.f32 %v1133, %v1218
          %v1283 = vmul.f32 %v1135, %v1219
          %v1284 = vmul.f32 %v1137, %v1220
          %v1285 = vmul.f32 %v1141, %v1221
          %v1286 = vmul.f32 %v1143, %v1222
          %v1287 = vmul.f32 %v1145, %v1223
          %v1288 = vmul.f32 %v1147, %v1224
          %v1289 = vmul.f32 %v1151, %v1225
          %v1290 = vmul.f32 %v1153, %v1226
          %v1291 = vmul.f32 %v1155, %v1227
          %v1292 = vmul.f32 %v1157, %v1228
          %v1293 = vmul.f32 %v1161, %v1229
          %v1294 = vmul.f32 %v1163, %v1230
          %v1295 = vmul.f32 %v1165, %v1231
          %v1296 = vmul.f32 %v1167, %v1232
          %v1297 = vmul.f32 %v1233, 0.044715
          %v1298 = vmul.f32 %v1234, 0.044715
          %v1299 = vmul.f32 %v1235, 0.044715
          %v1300 = vmul.f32 %v1236, 0.044715
          %v1301 = vmul.f32 %v1237, 0.044715
          %v1302 = vmul.f32 %v1238, 0.044715
          %v1303 = vmul.f32 %v1239, 0.044715
          %v1304 = vmul.f32 %v1240, 0.044715
          %v1305 = vmul.f32 %v1241, 0.044715
          %v1306 = vmul.f32 %v1242, 0.044715
          %v1307 = vmul.f32 %v1243, 0.044715
          %v1308 = vmul.f32 %v1244, 0.044715
          %v1309 = vmul.f32 %v1245, 0.044715
          %v1310 = vmul.f32 %v1246, 0.044715
          %v1311 = vmul.f32 %v1247, 0.044715
          %v1312 = vmul.f32 %v1248, 0.044715
          %v1313 = vmul.f32 %v1249, 0.044715
          %v1314 = vmul.f32 %v1250, 0.044715
          %v1315 = vmul.f32 %v1251, 0.044715
          %v1316 = vmul.f32 %v1252, 0.044715
          %v1317 = vmul.f32 %v1253, 0.044715
          %v1318 = vmul.f32 %v1254, 0.044715
          %v1319 = vmul.f32 %v1255, 0.044715
          %v1320 = vmul.f32 %v1256, 0.044715
          %v1321 = vmul.f32 %v1257, 0.044715
          %v1322 = vmul.f32 %v1258, 0.044715
          %v1323 = vmul.f32 %v1259, 0.044715
          %v1324 = vmul.f32 %v1260, 0.044715
          %v1325 = vmul.f32 %v1261, 0.044715
          %v1326 = vmul.f32 %v1262, 0.044715
          %v1327 = vmul.f32 %v1263, 0.044715
          %v1328 = vmul.f32 %v1264, 0.044715
          %v1329 = vmul.f32 %v1265, 0.044715
          %v1330 = vmul.f32 %v1266, 0.044715
          %v1331 = vmul.f32 %v1267, 0.044715
          %v1332 = vmul.f32 %v1268, 0.044715
          %v1333 = vmul.f32 %v1269, 0.044715
          %v1334 = vmul.f32 %v1270, 0.044715
          %v1335 = vmul.f32 %v1271, 0.044715
          %v1336 = vmul.f32 %v1272, 0.044715
          %v1337 = vmul.f32 %v1273, 0.044715
          %v1338 = vmul.f32 %v1274, 0.044715
          %v1339 = vmul.f32 %v1275, 0.044715
          %v1340 = vmul.f32 %v1276, 0.044715
          %v1341 = vmul.f32 %v1277, 0.044715
          %v1342 = vmul.f32 %v1278, 0.044715
          %v1343 = vmul.f32 %v1279, 0.044715
          %v1344 = vmul.f32 %v1280, 0.044715
          %v1345 = vmul.f32 %v1281, 0.044715
          %v1346 = vmul.f32 %v1282, 0.044715
          %v1347 = vmul.f32 %v1283, 0.044715
          %v1348 = vmul.f32 %v1284, 0.044715
          %v1349 = vmul.f32 %v1285, 0.044715
          %v1350 = vmul.f32 %v1286, 0.044715
          %v1351 = vmul.f32 %v1287, 0.044715
          %v1352 = vmul.f32 %v1288, 0.044715
          %v1353 = vmul.f32 %v1289, 0.044715
          %v1354 = vmul.f32 %v1290, 0.044715
          %v1355 = vmul.f32 %v1291, 0.044715
          %v1356 = vmul.f32 %v1292, 0.044715
          %v1357 = vmul.f32 %v1293, 0.044715
          %v1358 = vmul.f32 %v1294, 0.044715
          %v1359 = vmul.f32 %v1295, 0.044715
          %v1360 = vmul.f32 %v1296, 0.044715
          %v1361 = vadd.f32 %v1011, %v1297
          %v1362 = vadd.f32 %v1013, %v1298
          %v1363 = vadd.f32 %v1015, %v1299
          %v1364 = vadd.f32 %v1017, %v1300
          %v1365 = vadd.f32 %v1021, %v1301
          %v1366 = vadd.f32 %v1023, %v1302
          %v1367 = vadd.f32 %v1025, %v1303
          %v1368 = vadd.f32 %v1027, %v1304
          %v1369 = vadd.f32 %v1031, %v1305
          %v1370 = vadd.f32 %v1033, %v1306
          %v1371 = vadd.f32 %v1035, %v1307
          %v1372 = vadd.f32 %v1037, %v1308
          %v1373 = vadd.f32 %v1041, %v1309
          %v1374 = vadd.f32 %v1043, %v1310
          %v1375 = vadd.f32 %v1045, %v1311
          %v1376 = vadd.f32 %v1047, %v1312
          %v1377 = vadd.f32 %v1051, %v1313
          %v1378 = vadd.f32 %v1053, %v1314
          %v1379 = vadd.f32 %v1055, %v1315
          %v1380 = vadd.f32 %v1057, %v1316
          %v1381 = vadd.f32 %v1061, %v1317
          %v1382 = vadd.f32 %v1063, %v1318
          %v1383 = vadd.f32 %v1065, %v1319
          %v1384 = vadd.f32 %v1067, %v1320
          %v1385 = vadd.f32 %v1071, %v1321
          %v1386 = vadd.f32 %v1073, %v1322
          %v1387 = vadd.f32 %v1075, %v1323
          %v1388 = vadd.f32 %v1077, %v1324
          %v1389 = vadd.f32 %v1081, %v1325
          %v1390 = vadd.f32 %v1083, %v1326
          %v1391 = vadd.f32 %v1085, %v1327
          %v1392 = vadd.f32 %v1087, %v1328
          %v1393 = vadd.f32 %v1091, %v1329
          %v1394 = vadd.f32 %v1093, %v1330
          %v1395 = vadd.f32 %v1095, %v1331
          %v1396 = vadd.f32 %v1097, %v1332
          %v1397 = vadd.f32 %v1101, %v1333
          %v1398 = vadd.f32 %v1103, %v1334
          %v1399 = vadd.f32 %v1105, %v1335
          %v1400 = vadd.f32 %v1107, %v1336
          %v1401 = vadd.f32 %v1111, %v1337
          %v1402 = vadd.f32 %v1113, %v1338
          %v1403 = vadd.f32 %v1115, %v1339
          %v1404 = vadd.f32 %v1117, %v1340
          %v1405 = vadd.f32 %v1121, %v1341
          %v1406 = vadd.f32 %v1123, %v1342
          %v1407 = vadd.f32 %v1125, %v1343
          %v1408 = vadd.f32 %v1127, %v1344
          %v1409 = vadd.f32 %v1131, %v1345
          %v1410 = vadd.f32 %v1133, %v1346
          %v1411 = vadd.f32 %v1135, %v1347
          %v1412 = vadd.f32 %v1137, %v1348
          %v1413 = vadd.f32 %v1141, %v1349
          %v1414 = vadd.f32 %v1143, %v1350
          %v1415 = vadd.f32 %v1145, %v1351
          %v1416 = vadd.f32 %v1147, %v1352
          %v1417 = vadd.f32 %v1151, %v1353
          %v1418 = vadd.f32 %v1153, %v1354
          %v1419 = vadd.f32 %v1155, %v1355
          %v1420 = vadd.f32 %v1157, %v1356
          %v1421 = vadd.f32 %v1161, %v1357
          %v1422 = vadd.f32 %v1163, %v1358
          %v1423 = vadd.f32 %v1165, %v1359
          %v1424 = vadd.f32 %v1167, %v1360
          %v1425 = vmul.f32 %v1361, 0.7978846
          %v1426 = vmul.f32 %v1362, 0.7978846
          %v1427 = vmul.f32 %v1363, 0.7978846
          %v1428 = vmul.f32 %v1364, 0.7978846
          %v1429 = vmul.f32 %v1365, 0.7978846
          %v1430 = vmul.f32 %v1366, 0.7978846
          %v1431 = vmul.f32 %v1367, 0.7978846
          %v1432 = vmul.f32 %v1368, 0.7978846
          %v1433 = vmul.f32 %v1369, 0.7978846
          %v1434 = vmul.f32 %v1370, 0.7978846
          %v1435 = vmul.f32 %v1371, 0.7978846
          %v1436 = vmul.f32 %v1372, 0.7978846
          %v1437 = vmul.f32 %v1373, 0.7978846
          %v1438 = vmul.f32 %v1374, 0.7978846
          %v1439 = vmul.f32 %v1375, 0.7978846
          %v1440 = vmul.f32 %v1376, 0.7978846
          %v1441 = vmul.f32 %v1377, 0.7978846
          %v1442 = vmul.f32 %v1378, 0.7978846
          %v1443 = vmul.f32 %v1379, 0.7978846
          %v1444 = vmul.f32 %v1380, 0.7978846
          %v1445 = vmul.f32 %v1381, 0.7978846
          %v1446 = vmul.f32 %v1382, 0.7978846
          %v1447 = vmul.f32 %v1383, 0.7978846
          %v1448 = vmul.f32 %v1384, 0.7978846
          %v1449 = vmul.f32 %v1385, 0.7978846
          %v1450 = vmul.f32 %v1386, 0.7978846
          %v1451 = vmul.f32 %v1387, 0.7978846
          %v1452 = vmul.f32 %v1388, 0.7978846
          %v1453 = vmul.f32 %v1389, 0.7978846
          %v1454 = vmul.f32 %v1390, 0.7978846
          %v1455 = vmul.f32 %v1391, 0.7978846
          %v1456 = vmul.f32 %v1392, 0.7978846
          %v1457 = vmul.f32 %v1393, 0.7978846
          %v1458 = vmul.f32 %v1394, 0.7978846
          %v1459 = vmul.f32 %v1395, 0.7978846
          %v1460 = vmul.f32 %v1396, 0.7978846
          %v1461 = vmul.f32 %v1397, 0.7978846
          %v1462 = vmul.f32 %v1398, 0.7978846
          %v1463 = vmul.f32 %v1399, 0.7978846
          %v1464 = vmul.f32 %v1400, 0.7978846
          %v1465 = vmul.f32 %v1401, 0.7978846
          %v1466 = vmul.f32 %v1402, 0.7978846
          %v1467 = vmul.f32 %v1403, 0.7978846
          %v1468 = vmul.f32 %v1404, 0.7978846
          %v1469 = vmul.f32 %v1405, 0.7978846
          %v1470 = vmul.f32 %v1406, 0.7978846
          %v1471 = vmul.f32 %v1407, 0.7978846
          %v1472 = vmul.f32 %v1408, 0.7978846
          %v1473 = vmul.f32 %v1409, 0.7978846
          %v1474 = vmul.f32 %v1410, 0.7978846
          %v1475 = vmul.f32 %v1411, 0.7978846
          %v1476 = vmul.f32 %v1412, 0.7978846
          %v1477 = vmul.f32 %v1413, 0.7978846
          %v1478 = vmul.f32 %v1414, 0.7978846
          %v1479 = vmul.f32 %v1415, 0.7978846
          %v1480 = vmul.f32 %v1416, 0.7978846
          %v1481 = vmul.f32 %v1417, 0.7978846
          %v1482 = vmul.f32 %v1418, 0.7978846
          %v1483 = vmul.f32 %v1419, 0.7978846
          %v1484 = vmul.f32 %v1420, 0.7978846
          %v1485 = vmul.f32 %v1421, 0.7978846
          %v1486 = vmul.f32 %v1422, 0.7978846
          %v1487 = vmul.f32 %v1423, 0.7978846
          %v1488 = vmul.f32 %v1424, 0.7978846
          %v1489 = vtanh.pop %v1425
          %v1490 = vtanh.pop %v1426
          %v1491 = vtanh.pop %v1427
          %v1492 = vtanh.pop %v1428
          %v1493 = vtanh.pop %v1429
          %v1494 = vtanh.pop %v1430
          %v1495 = vtanh.pop %v1431
          %v1496 = vtanh.pop %v1432
          %v1497 = vtanh.pop %v1433
          %v1498 = vtanh.pop %v1434
          %v1499 = vtanh.pop %v1435
          %v1500 = vtanh.pop %v1436
          %v1501 = vtanh.pop %v1437
          %v1502 = vtanh.pop %v1438
          %v1503 = vtanh.pop %v1439
          %v1504 = vtanh.pop %v1440
          %v1505 = vtanh.pop %v1441
          %v1506 = vtanh.pop %v1442
          %v1507 = vtanh.pop %v1443
          %v1508 = vtanh.pop %v1444
          %v1509 = vtanh.pop %v1445
          %v1510 = vtanh.pop %v1446
          %v1511 = vtanh.pop %v1447
          %v1512 = vtanh.pop %v1448
          %v1513 = vtanh.pop %v1449
          %v1514 = vtanh.pop %v1450
          %v1515 = vtanh.pop %v1451
          %v1516 = vtanh.pop %v1452
          %v1517 = vtanh.pop %v1453
          %v1518 = vtanh.pop %v1454
          %v1519 = vtanh.pop %v1455
          %v1520 = vtanh.pop %v1456
          %v1521 = vtanh.pop %v1457
          %v1522 = vtanh.pop %v1458
          %v1523 = vtanh.pop %v1459
          %v1524 = vtanh.pop %v1460
          %v1525 = vtanh.pop %v1461
          %v1526 = vtanh.pop %v1462
          %v1527 = vtanh.pop %v1463
          %v1528 = vtanh.pop %v1464
          %v1529 = vtanh.pop %v1465
          %v1530 = vtanh.pop %v1466
          %v1531 = vtanh.pop %v1467
          %v1532 = vtanh.pop %v1468
          %v1533 = vtanh.pop %v1469
          %v1534 = vtanh.pop %v1470
          %v1535 = vtanh.pop %v1471
          %v1536 = vtanh.pop %v1472
          %v1537 = vtanh.pop %v1473
          %v1538 = vtanh.pop %v1474
          %v1539 = vtanh.pop %v1475
          %v1540 = vtanh.pop %v1476
          %v1541 = vtanh.pop %v1477
          %v1542 = vtanh.pop %v1478
          %v1543 = vtanh.pop %v1479
          %v1544 = vtanh.pop %v1480
          %v1545 = vtanh.pop %v1481
          %v1546 = vtanh.pop %v1482
          %v1547 = vtanh.pop %v1483
          %v1548 = vtanh.pop %v1484
          %v1549 = vtanh.pop %v1485
          %v1550 = vtanh.pop %v1486
          %v1551 = vtanh.pop %v1487
          %v1552 = vtanh.pop %v1488
          %v1553 = vadd.f32 %v1489, 1.0
          %v1554 = vadd.f32 %v1490, 1.0
          %v1555 = vadd.f32 %v1491, 1.0
          %v1556 = vadd.f32 %v1492, 1.0
          %v1557 = vadd.f32 %v1493, 1.0
          %v1558 = vadd.f32 %v1494, 1.0
          %v1559 = vadd.f32 %v1495, 1.0
          %v1560 = vadd.f32 %v1496, 1.0
          %v1561 = vadd.f32 %v1497, 1.0
          %v1562 = vadd.f32 %v1498, 1.0
          %v1563 = vadd.f32 %v1499, 1.0
          %v1564 = vadd.f32 %v1500, 1.0
          %v1565 = vadd.f32 %v1501, 1.0
          %v1566 = vadd.f32 %v1502, 1.0
          %v1567 = vadd.f32 %v1503, 1.0
          %v1568 = vadd.f32 %v1504, 1.0
          %v1569 = vadd.f32 %v1505, 1.0
          %v1570 = vadd.f32 %v1506, 1.0
          %v1571 = vadd.f32 %v1507, 1.0
          %v1572 = vadd.f32 %v1508, 1.0
          %v1573 = vadd.f32 %v1509, 1.0
          %v1574 = vadd.f32 %v1510, 1.0
          %v1575 = vadd.f32 %v1511, 1.0
          %v1576 = vadd.f32 %v1512, 1.0
          %v1577 = vadd.f32 %v1513, 1.0
          %v1578 = vadd.f32 %v1514, 1.0
          %v1579 = vadd.f32 %v1515, 1.0
          %v1580 = vadd.f32 %v1516, 1.0
          %v1581 = vadd.f32 %v1517, 1.0
          %v1582 = vadd.f32 %v1518, 1.0
          %v1583 = vadd.f32 %v1519, 1.0
          %v1584 = vadd.f32 %v1520, 1.0
          %v1585 = vadd.f32 %v1521, 1.0
          %v1586 = vadd.f32 %v1522, 1.0
          %v1587 = vadd.f32 %v1523, 1.0
          %v1588 = vadd.f32 %v1524, 1.0
          %v1589 = vadd.f32 %v1525, 1.0
          %v1590 = vadd.f32 %v1526, 1.0
          %v1591 = vadd.f32 %v1527, 1.0
          %v1592 = vadd.f32 %v1528, 1.0
          %v1593 = vadd.f32 %v1529, 1.0
          %v1594 = vadd.f32 %v1530, 1.0
          %v1595 = vadd.f32 %v1531, 1.0
          %v1596 = vadd.f32 %v1532, 1.0
          %v1597 = vadd.f32 %v1533, 1.0
          %v1598 = vadd.f32 %v1534, 1.0
          %v1599 = vadd.f32 %v1535, 1.0
          %v1600 = vadd.f32 %v1536, 1.0
          %v1601 = vadd.f32 %v1537, 1.0
          %v1602 = vadd.f32 %v1538, 1.0
          %v1603 = vadd.f32 %v1539, 1.0
          %v1604 = vadd.f32 %v1540, 1.0
          %v1605 = vadd.f32 %v1541, 1.0
          %v1606 = vadd.f32 %v1542, 1.0
          %v1607 = vadd.f32 %v1543, 1.0
          %v1608 = vadd.f32 %v1544, 1.0
          %v1609 = vadd.f32 %v1545, 1.0
          %v1610 = vadd.f32 %v1546, 1.0
          %v1611 = vadd.f32 %v1547, 1.0
          %v1612 = vadd.f32 %v1548, 1.0
          %v1613 = vadd.f32 %v1549, 1.0
          %v1614 = vadd.f32 %v1550, 1.0
          %v1615 = vadd.f32 %v1551, 1.0
          %v1616 = vadd.f32 %v1552, 1.0
          %v1617 = vmul.f32 %v1553, 0.5
          %v1618 = vmul.f32 %v1554, 0.5
          %v1619 = vmul.f32 %v1555, 0.5
          %v1620 = vmul.f32 %v1556, 0.5
          %v1621 = vmul.f32 %v1557, 0.5
          %v1622 = vmul.f32 %v1558, 0.5
          %v1623 = vmul.f32 %v1559, 0.5
          %v1624 = vmul.f32 %v1560, 0.5
          %v1625 = vmul.f32 %v1561, 0.5
          %v1626 = vmul.f32 %v1562, 0.5
          %v1627 = vmul.f32 %v1563, 0.5
          %v1628 = vmul.f32 %v1564, 0.5
          %v1629 = vmul.f32 %v1565, 0.5
          %v1630 = vmul.f32 %v1566, 0.5
          %v1631 = vmul.f32 %v1567, 0.5
          %v1632 = vmul.f32 %v1568, 0.5
          %v1633 = vmul.f32 %v1569, 0.5
          %v1634 = vmul.f32 %v1570, 0.5
          %v1635 = vmul.f32 %v1571, 0.5
          %v1636 = vmul.f32 %v1572, 0.5
          %v1637 = vmul.f32 %v1573, 0.5
          %v1638 = vmul.f32 %v1574, 0.5
          %v1639 = vmul.f32 %v1575, 0.5
          %v1640 = vmul.f32 %v1576, 0.5
          %v1641 = vmul.f32 %v1577, 0.5
          %v1642 = vmul.f32 %v1578, 0.5
          %v1643 = vmul.f32 %v1579, 0.5
          %v1644 = vmul.f32 %v1580, 0.5
          %v1645 = vmul.f32 %v1581, 0.5
          %v1646 = vmul.f32 %v1582, 0.5
          %v1647 = vmul.f32 %v1583, 0.5
          %v1648 = vmul.f32 %v1584, 0.5
          %v1649 = vmul.f32 %v1585, 0.5
          %v1650 = vmul.f32 %v1586, 0.5
          %v1651 = vmul.f32 %v1587, 0.5
          %v1652 = vmul.f32 %v1588, 0.5
          %v1653 = vmul.f32 %v1589, 0.5
          %v1654 = vmul.f32 %v1590, 0.5
          %v1655 = vmul.f32 %v1591, 0.5
          %v1656 = vmul.f32 %v1592, 0.5
          %v1657 = vmul.f32 %v1593, 0.5
          %v1658 = vmul.f32 %v1594, 0.5
          %v1659 = vmul.f32 %v1595, 0.5
          %v1660 = vmul.f32 %v1596, 0.5
          %v1661 = vmul.f32 %v1597, 0.5
          %v1662 = vmul.f32 %v1598, 0.5
          %v1663 = vmul.f32 %v1599, 0.5
          %v1664 = vmul.f32 %v1600, 0.5
          %v1665 = vmul.f32 %v1601, 0.5
          %v1666 = vmul.f32 %v1602, 0.5
          %v1667 = vmul.f32 %v1603, 0.5
          %v1668 = vmul.f32 %v1604, 0.5
          %v1669 = vmul.f32 %v1605, 0.5
          %v1670 = vmul.f32 %v1606, 0.5
          %v1671 = vmul.f32 %v1607, 0.5
          %v1672 = vmul.f32 %v1608, 0.5
          %v1673 = vmul.f32 %v1609, 0.5
          %v1674 = vmul.f32 %v1610, 0.5
          %v1675 = vmul.f32 %v1611, 0.5
          %v1676 = vmul.f32 %v1612, 0.5
          %v1677 = vmul.f32 %v1613, 0.5
          %v1678 = vmul.f32 %v1614, 0.5
          %v1679 = vmul.f32 %v1615, 0.5
          %v1680 = vmul.f32 %v1616, 0.5
          %v1681 = vmul.f32 %v1011, %v1617
          %v1682 = vmul.f32 %v1013, %v1618
          %v1683 = vmul.f32 %v1015, %v1619
          %v1684 = vmul.f32 %v1017, %v1620
          %v1685 = vmul.f32 %v1021, %v1621
          %v1686 = vmul.f32 %v1023, %v1622
          %v1687 = vmul.f32 %v1025, %v1623
          %v1688 = vmul.f32 %v1027, %v1624
          %v1689 = vmul.f32 %v1031, %v1625
          %v1690 = vmul.f32 %v1033, %v1626
          %v1691 = vmul.f32 %v1035, %v1627
          %v1692 = vmul.f32 %v1037, %v1628
          %v1693 = vmul.f32 %v1041, %v1629
          %v1694 = vmul.f32 %v1043, %v1630
          %v1695 = vmul.f32 %v1045, %v1631
          %v1696 = vmul.f32 %v1047, %v1632
          %v1697 = vmul.f32 %v1051, %v1633
          %v1698 = vmul.f32 %v1053, %v1634
          %v1699 = vmul.f32 %v1055, %v1635
          %v1700 = vmul.f32 %v1057, %v1636
          %v1701 = vmul.f32 %v1061, %v1637
          %v1702 = vmul.f32 %v1063, %v1638
          %v1703 = vmul.f32 %v1065, %v1639
          %v1704 = vmul.f32 %v1067, %v1640
          %v1705 = vmul.f32 %v1071, %v1641
          %v1706 = vmul.f32 %v1073, %v1642
          %v1707 = vmul.f32 %v1075, %v1643
          %v1708 = vmul.f32 %v1077, %v1644
          %v1709 = vmul.f32 %v1081, %v1645
          %v1710 = vmul.f32 %v1083, %v1646
          %v1711 = vmul.f32 %v1085, %v1647
          %v1712 = vmul.f32 %v1087, %v1648
          %v1713 = vmul.f32 %v1091, %v1649
          %v1714 = vmul.f32 %v1093, %v1650
          %v1715 = vmul.f32 %v1095, %v1651
          %v1716 = vmul.f32 %v1097, %v1652
          %v1717 = vmul.f32 %v1101, %v1653
          %v1718 = vmul.f32 %v1103, %v1654
          %v1719 = vmul.f32 %v1105, %v1655
          %v1720 = vmul.f32 %v1107, %v1656
          %v1721 = vmul.f32 %v1111, %v1657
          %v1722 = vmul.f32 %v1113, %v1658
          %v1723 = vmul.f32 %v1115, %v1659
          %v1724 = vmul.f32 %v1117, %v1660
          %v1725 = vmul.f32 %v1121, %v1661
          %v1726 = vmul.f32 %v1123, %v1662
          %v1727 = vmul.f32 %v1125, %v1663
          %v1728 = vmul.f32 %v1127, %v1664
          %v1729 = vmul.f32 %v1131, %v1665
          %v1730 = vmul.f32 %v1133, %v1666
          %v1731 = vmul.f32 %v1135, %v1667
          %v1732 = vmul.f32 %v1137, %v1668
          %v1733 = vmul.f32 %v1141, %v1669
          %v1734 = vmul.f32 %v1143, %v1670
          %v1735 = vmul.f32 %v1145, %v1671
          %v1736 = vmul.f32 %v1147, %v1672
          %v1737 = vmul.f32 %v1151, %v1673
          %v1738 = vmul.f32 %v1153, %v1674
          %v1739 = vmul.f32 %v1155, %v1675
          %v1740 = vmul.f32 %v1157, %v1676
          %v1741 = vmul.f32 %v1161, %v1677
          %v1742 = vmul.f32 %v1163, %v1678
          %v1743 = vmul.f32 %v1165, %v1679
          %v1744 = vmul.f32 %v1167, %v1680
          %v1745 = vpack.c.bf16 %v1683, %v1681
          %v1746 = vpack.c.bf16 %v1684, %v1682
          %v1747 = vpack.c.bf16 %v1687, %v1685
          %v1748 = vpack.c.bf16 %v1688, %v1686
          %v1749 = vpack.c.bf16 %v1691, %v1689
          %v1750 = vpack.c.bf16 %v1692, %v1690
          %v1751 = vpack.c.bf16 %v1695, %v1693
          %v1752 = vpack.c.bf16 %v1696, %v1694
          %v1753 = vpack.c.bf16 %v1699, %v1697
          %v1754 = vpack.c.bf16 %v1700, %v1698
          %v1755 = vpack.c.bf16 %v1703, %v1701
          %v1756 = vpack.c.bf16 %v1704, %v1702
          %v1757 = vpack.c.bf16 %v1707, %v1705
          %v1758 = vpack.c.bf16 %v1708, %v1706
          %v1759 = vpack.c.bf16 %v1711, %v1709
          %v1760 = vpack.c.bf16 %v1712, %v1710
          %v1761 = vpack.c.bf16 %v1715, %v1713
          %v1762 = vpack.c.bf16 %v1716, %v1714
          %v1763 = vpack.c.bf16 %v1719, %v1717
          %v1764 = vpack.c.bf16 %v1720, %v1718
          %v1765 = vpack.c.bf16 %v1723, %v1721
          %v1766 = vpack.c.bf16 %v1724, %v1722
          %v1767 = vpack.c.bf16 %v1727, %v1725
          %v1768 = vpack.c.bf16 %v1728, %v1726
          %v1769 = vpack.c.bf16 %v1731, %v1729
          %v1770 = vpack.c.bf16 %v1732, %v1730
          %v1771 = vpack.c.bf16 %v1735, %v1733
          %v1772 = vpack.c.bf16 %v1736, %v1734
          %v1773 = vpack.c.bf16 %v1739, %v1737
          %v1774 = vpack.c.bf16 %v1740, %v1738
          %v1775 = vpack.c.bf16 %v1743, %v1741
          %v1776 = vpack.c.bf16 %v1744, %v1742
          %1777 = vst [vmem:[#allocation2] sm:$0xff] %v1745
          %1778 = vst [vmem:[#allocation2 + $0x8] sm:$0xff] %v1746
          %1779 = vst [vmem:[#allocation2 + $0x10] sm:$0xff] %v1747
          %1780 = vst [vmem:[#allocation2 + $0x18] sm:$0xff] %v1748
          %1781 = vst [vmem:[#allocation2 + $0x20] sm:$0xff] %v1749
          %1782 = vst [vmem:[#allocation2 + $0x28] sm:$0xff] %v1750
          %1783 = vst [vmem:[#allocation2 + $0x30] sm:$0xff] %v1751
          %1784 = vst [vmem:[#allocation2 + $0x38] sm:$0xff] %v1752
          %1785 = vst [vmem:[#allocation2 + $0x40] sm:$0xff] %v1753
          %1786 = vst [vmem:[#allocation2 + $0x48] sm:$0xff] %v1754
          %1787 = vst [vmem:[#allocation2 + $0x50] sm:$0xff] %v1755
          %1788 = vst [vmem:[#allocation2 + $0x58] sm:$0xff] %v1756
          %1789 = vst [vmem:[#allocation2 + $0x60] sm:$0xff] %v1757
          %1790 = vst [vmem:[#allocation2 + $0x68] sm:$0xff] %v1758
          %1791 = vst [vmem:[#allocation2 + $0x70] sm:$0xff] %v1759
          %1792 = vst [vmem:[#allocation2 + $0x78] sm:$0xff] %v1760
          %1793 = vst [vmem:[#allocation2 + $0x80] sm:$0xff] %v1761
          %1794 = vst [vmem:[#allocation2 + $0x88] sm:$0xff] %v1762
          %1795 = vst [vmem:[#allocation2 + $0x90] sm:$0xff] %v1763
          %1796 = vst [vmem:[#allocation2 + $0x98] sm:$0xff] %v1764
          %1797 = vst [vmem:[#allocation2 + $0xa0] sm:$0xff] %v1765
          %1798 = vst [vmem:[#allocation2 + $0xa8] sm:$0xff] %v1766
          %1799 = vst [vmem:[#allocation2 + $0xb0] sm:$0xff] %v1767
          %1800 = vst [vmem:[#allocation2 + $0xb8] sm:$0xff] %v1768
          %1801 = vst [vmem:[#allocation2 + $0xc0] sm:$0xff] %v1769
          %1802 = vst [vmem:[#allocation2 + $0xc8] sm:$0xff] %v1770
          %1803 = vst [vmem:[#allocation2 + $0xd0] sm:$0xff] %v1771
          %1804 = vst [vmem:[#allocation2 + $0xd8] sm:$0xff] %v1772
          %1805 = vst [vmem:[#allocation2 + $0xe0] sm:$0xff] %v1773
          %1806 = vst [vmem:[#allocation2 + $0xe8] sm:$0xff] %v1774
          %1807 = vst [vmem:[#allocation2 + $0xf0] sm:$0xff] %v1775
          %1808 = vst [vmem:[#allocation2 + $0xf8] sm:$0xff] %v1776
          %v1809 = vld [vmem:[%s498] sm:$0xff]
          %v1810 = vld [vmem:[%s498 + $0x8] sm:$0xff]
          %v1811 = vld [vmem:[%s498 + $0x10] sm:$0xff]
          %v1812 = vld [vmem:[%s498 + $0x18] sm:$0xff]
          %v1813 = vld [vmem:[%s498 + $0x20] sm:$0xff]
          %v1814 = vld [vmem:[%s498 + $0x28] sm:$0xff]
          %v1815 = vld [vmem:[%s498 + $0x30] sm:$0xff]
          %v1816 = vld [vmem:[%s498 + $0x38] sm:$0xff]
          %v1817 = vld [vmem:[%s498 + $0x40] sm:$0xff]
          %v1818 = vld [vmem:[%s498 + $0x48] sm:$0xff]
          %v1819 = vld [vmem:[%s498 + $0x50] sm:$0xff]
          %v1820 = vld [vmem:[%s498 + $0x58] sm:$0xff]
          %v1821 = vld [vmem:[%s498 + $0x60] sm:$0xff]
          %v1822 = vld [vmem:[%s498 + $0x68] sm:$0xff]
          %v1823 = vld [vmem:[%s498 + $0x70] sm:$0xff]
          %v1824 = vld [vmem:[%s498 + $0x78] sm:$0xff]
          %v1825 = vld [vmem:[%s498 + $0x80] sm:$0xff]
          %v1826 = vld [vmem:[%s498 + $0x88] sm:$0xff]
          %v1827 = vld [vmem:[%s498 + $0x90] sm:$0xff]
          %v1828 = vld [vmem:[%s498 + $0x98] sm:$0xff]
          %v1829 = vld [vmem:[%s498 + $0xa0] sm:$0xff]
          %v1830 = vld [vmem:[%s498 + $0xa8] sm:$0xff]
          %v1831 = vld [vmem:[%s498 + $0xb0] sm:$0xff]
          %v1832 = vld [vmem:[%s498 + $0xb8] sm:$0xff]
          %v1833 = vld [vmem:[%s498 + $0xc0] sm:$0xff]
          %v1834 = vld [vmem:[%s498 + $0xc8] sm:$0xff]
          %v1835 = vld [vmem:[%s498 + $0xd0] sm:$0xff]
          %v1836 = vld [vmem:[%s498 + $0xd8] sm:$0xff]
          %v1837 = vld [vmem:[%s498 + $0xe0] sm:$0xff]
          %v1838 = vld [vmem:[%s498 + $0xe8] sm:$0xff]
          %v1839 = vld [vmem:[%s498 + $0xf0] sm:$0xff]
          %v1840 = vld [vmem:[%s498 + $0xf8] sm:$0xff]
          %v1841 = vld [vmem:[#allocation10] sm:$0xff]
          %v1842 = vld [vmem:[#allocation10 + $0x8] sm:$0xff]
          %v1843 = vld [vmem:[#allocation10 + $0x10] sm:$0xff]
          %v1844 = vld [vmem:[#allocation10 + $0x18] sm:$0xff]
          %v1845 = vld [vmem:[#allocation10 + $0x20] sm:$0xff]
          %v1846 = vld [vmem:[#allocation10 + $0x28] sm:$0xff]
          %v1847 = vld [vmem:[#allocation10 + $0x30] sm:$0xff]
          %v1848 = vld [vmem:[#allocation10 + $0x38] sm:$0xff]
          %v1849 = vld [vmem:[#allocation10 + $0x40] sm:$0xff]
          %v1850 = vld [vmem:[#allocation10 + $0x48] sm:$0xff]
          %v1851 = vld [vmem:[#allocation10 + $0x50] sm:$0xff]
          %v1852 = vld [vmem:[#allocation10 + $0x58] sm:$0xff]
          %v1853 = vld [vmem:[#allocation10 + $0x60] sm:$0xff]
          %v1854 = vld [vmem:[#allocation10 + $0x68] sm:$0xff]
          %v1855 = vld [vmem:[#allocation10 + $0x70] sm:$0xff]
          %v1856 = vld [vmem:[#allocation10 + $0x78] sm:$0xff]
          %v1857 = vld [vmem:[#allocation10 + $0x80] sm:$0xff]
          %v1858 = vld [vmem:[#allocation10 + $0x88] sm:$0xff]
          %v1859 = vld [vmem:[#allocation10 + $0x90] sm:$0xff]
          %v1860 = vld [vmem:[#allocation10 + $0x98] sm:$0xff]
          %v1861 = vld [vmem:[#allocation10 + $0xa0] sm:$0xff]
          %v1862 = vld [vmem:[#allocation10 + $0xa8] sm:$0xff]
          %v1863 = vld [vmem:[#allocation10 + $0xb0] sm:$0xff]
          %v1864 = vld [vmem:[#allocation10 + $0xb8] sm:$0xff]
          %v1865 = vld [vmem:[#allocation10 + $0xc0] sm:$0xff]
          %v1866 = vld [vmem:[#allocation10 + $0xc8] sm:$0xff]
          %v1867 = vld [vmem:[#allocation10 + $0xd0] sm:$0xff]
          %v1868 = vld [vmem:[#allocation10 + $0xd8] sm:$0xff]
          %v1869 = vld [vmem:[#allocation10 + $0xe0] sm:$0xff]
          %v1870 = vld [vmem:[#allocation10 + $0xe8] sm:$0xff]
          %v1871 = vld [vmem:[#allocation10 + $0xf0] sm:$0xff]
          %v1872 = vld [vmem:[#allocation10 + $0xf8] sm:$0xff]
          %v1873 = vld [vmem:[%s7] sm:$0x3]
          %v1875 = vlaneseq
          %v1876 = vshrl.u32 %v1875, 7
          %v1877 = vsub.s32 0, %v1876
          %v1878 = vrot.slane %v1873, %v1877
          %v1879 = vlaneseq
          %v1880 = vshrl.u32 %v1879, 7
          %v1881 = vsub.s32 1, %v1880
          %v1882 = vrot.slane %v1873, %v1881
          %v1917 = vunpack.c.l.b16 %v1809
          %v1918 = vunpack.c.h.b16 %v1809
          %v1919 = vunpack.c.l.b16 %v1810
          %v1920 = vunpack.c.h.b16 %v1810
          %v1921 = vunpack.c.l.b16 %v1811
          %v1922 = vunpack.c.h.b16 %v1811
          %v1923 = vunpack.c.l.b16 %v1812
          %v1924 = vunpack.c.h.b16 %v1812
          %v1925 = vunpack.c.l.b16 %v1813
          %v1926 = vunpack.c.h.b16 %v1813
          %v1927 = vunpack.c.l.b16 %v1814
          %v1928 = vunpack.c.h.b16 %v1814
          %v1929 = vunpack.c.l.b16 %v1815
          %v1930 = vunpack.c.h.b16 %v1815
          %v1931 = vunpack.c.l.b16 %v1816
          %v1932 = vunpack.c.h.b16 %v1816
          %v1933 = vunpack.c.l.b16 %v1817
          %v1934 = vunpack.c.h.b16 %v1817
          %v1935 = vunpack.c.l.b16 %v1818
          %v1936 = vunpack.c.h.b16 %v1818
          %v1937 = vunpack.c.l.b16 %v1819
          %v1938 = vunpack.c.h.b16 %v1819
          %v1939 = vunpack.c.l.b16 %v1820
          %v1940 = vunpack.c.h.b16 %v1820
          %v1941 = vunpack.c.l.b16 %v1821
          %v1942 = vunpack.c.h.b16 %v1821
          %v1943 = vunpack.c.l.b16 %v1822
          %v1944 = vunpack.c.h.b16 %v1822
          %v1945 = vunpack.c.l.b16 %v1823
          %v1946 = vunpack.c.h.b16 %v1823
          %v1947 = vunpack.c.l.b16 %v1824
          %v1948 = vunpack.c.h.b16 %v1824
          %v1949 = vunpack.c.l.b16 %v1825
          %v1950 = vunpack.c.h.b16 %v1825
          %v1951 = vunpack.c.l.b16 %v1826
          %v1952 = vunpack.c.h.b16 %v1826
          %v1953 = vunpack.c.l.b16 %v1827
          %v1954 = vunpack.c.h.b16 %v1827
          %v1955 = vunpack.c.l.b16 %v1828
          %v1956 = vunpack.c.h.b16 %v1828
          %v1957 = vunpack.c.l.b16 %v1829
          %v1958 = vunpack.c.h.b16 %v1829
          %v1959 = vunpack.c.l.b16 %v1830
          %v1960 = vunpack.c.h.b16 %v1830
          %v1961 = vunpack.c.l.b16 %v1831
          %v1962 = vunpack.c.h.b16 %v1831
          %v1963 = vunpack.c.l.b16 %v1832
          %v1964 = vunpack.c.h.b16 %v1832
          %v1965 = vunpack.c.l.b16 %v1833
          %v1966 = vunpack.c.h.b16 %v1833
          %v1967 = vunpack.c.l.b16 %v1834
          %v1968 = vunpack.c.h.b16 %v1834
          %v1969 = vunpack.c.l.b16 %v1835
          %v1970 = vunpack.c.h.b16 %v1835
          %v1971 = vunpack.c.l.b16 %v1836
          %v1972 = vunpack.c.h.b16 %v1836
          %v1973 = vunpack.c.l.b16 %v1837
          %v1974 = vunpack.c.h.b16 %v1837
          %v1975 = vunpack.c.l.b16 %v1838
          %v1976 = vunpack.c.h.b16 %v1838
          %v1977 = vunpack.c.l.b16 %v1839
          %v1978 = vunpack.c.h.b16 %v1839
          %v1979 = vunpack.c.l.b16 %v1840
          %v1980 = vunpack.c.h.b16 %v1840
          %v1981 = vpack.c.b16 %v1919, %v1917
          %v1982 = vpack.c.b16 %v1920, %v1918
          %v1983 = vpack.c.b16 %v1923, %v1921
          %v1984 = vpack.c.b16 %v1924, %v1922
          %v1985 = vpack.c.b16 %v1927, %v1925
          %v1986 = vpack.c.b16 %v1928, %v1926
          %v1987 = vpack.c.b16 %v1931, %v1929
          %v1988 = vpack.c.b16 %v1932, %v1930
          %v1989 = vpack.c.b16 %v1935, %v1933
          %v1990 = vpack.c.b16 %v1936, %v1934
          %v1991 = vpack.c.b16 %v1939, %v1937
          %v1992 = vpack.c.b16 %v1940, %v1938
          %v1993 = vpack.c.b16 %v1943, %v1941
          %v1994 = vpack.c.b16 %v1944, %v1942
          %v1995 = vpack.c.b16 %v1947, %v1945
          %v1996 = vpack.c.b16 %v1948, %v1946
          %v1997 = vpack.c.b16 %v1951, %v1949
          %v1998 = vpack.c.b16 %v1952, %v1950
          %v1999 = vpack.c.b16 %v1955, %v1953
          %v2000 = vpack.c.b16 %v1956, %v1954
          %v2001 = vpack.c.b16 %v1959, %v1957
          %v2002 = vpack.c.b16 %v1960, %v1958
          %v2003 = vpack.c.b16 %v1963, %v1961
          %v2004 = vpack.c.b16 %v1964, %v1962
          %v2005 = vpack.c.b16 %v1967, %v1965
          %v2006 = vpack.c.b16 %v1968, %v1966
          %v2007 = vpack.c.b16 %v1971, %v1969
          %v2008 = vpack.c.b16 %v1972, %v1970
          %v2009 = vpack.c.b16 %v1975, %v1973
          %v2010 = vpack.c.b16 %v1976, %v1974
          %v2011 = vpack.c.b16 %v1979, %v1977
          %v2012 = vpack.c.b16 %v1980, %v1978
          %v2077 = vunpack.c.l.b16 %v1841
          %v2078 = vunpack.c.h.b16 %v1841
          %v2079 = vunpack.c.l.b16 %v1842
          %v2080 = vunpack.c.h.b16 %v1842
          %v2081 = vunpack.c.l.b16 %v1843
          %v2082 = vunpack.c.h.b16 %v1843
          %v2083 = vunpack.c.l.b16 %v1844
          %v2084 = vunpack.c.h.b16 %v1844
          %v2085 = vunpack.c.l.b16 %v1845
          %v2086 = vunpack.c.h.b16 %v1845
          %v2087 = vunpack.c.l.b16 %v1846
          %v2088 = vunpack.c.h.b16 %v1846
          %v2089 = vunpack.c.l.b16 %v1847
          %v2090 = vunpack.c.h.b16 %v1847
          %v2091 = vunpack.c.l.b16 %v1848
          %v2092 = vunpack.c.h.b16 %v1848
          %v2093 = vunpack.c.l.b16 %v1849
          %v2094 = vunpack.c.h.b16 %v1849
          %v2095 = vunpack.c.l.b16 %v1850
          %v2096 = vunpack.c.h.b16 %v1850
          %v2097 = vunpack.c.l.b16 %v1851
          %v2098 = vunpack.c.h.b16 %v1851
          %v2099 = vunpack.c.l.b16 %v1852
          %v2100 = vunpack.c.h.b16 %v1852
          %v2101 = vunpack.c.l.b16 %v1853
          %v2102 = vunpack.c.h.b16 %v1853
          %v2103 = vunpack.c.l.b16 %v1854
          %v2104 = vunpack.c.h.b16 %v1854
          %v2105 = vunpack.c.l.b16 %v1855
          %v2106 = vunpack.c.h.b16 %v1855
          %v2107 = vunpack.c.l.b16 %v1856
          %v2108 = vunpack.c.h.b16 %v1856
          %v2109 = vunpack.c.l.b16 %v1857
          %v2110 = vunpack.c.h.b16 %v1857
          %v2111 = vunpack.c.l.b16 %v1858
          %v2112 = vunpack.c.h.b16 %v1858
          %v2113 = vunpack.c.l.b16 %v1859
          %v2114 = vunpack.c.h.b16 %v1859
          %v2115 = vunpack.c.l.b16 %v1860
          %v2116 = vunpack.c.h.b16 %v1860
          %v2117 = vunpack.c.l.b16 %v1861
          %v2118 = vunpack.c.h.b16 %v1861
          %v2119 = vunpack.c.l.b16 %v1862
          %v2120 = vunpack.c.h.b16 %v1862
          %v2121 = vunpack.c.l.b16 %v1863
          %v2122 = vunpack.c.h.b16 %v1863
          %v2123 = vunpack.c.l.b16 %v1864
          %v2124 = vunpack.c.h.b16 %v1864
          %v2125 = vunpack.c.l.b16 %v1865
          %v2126 = vunpack.c.h.b16 %v1865
          %v2127 = vunpack.c.l.b16 %v1866
          %v2128 = vunpack.c.h.b16 %v1866
          %v2129 = vunpack.c.l.b16 %v1867
          %v2130 = vunpack.c.h.b16 %v1867
          %v2131 = vunpack.c.l.b16 %v1868
          %v2132 = vunpack.c.h.b16 %v1868
          %v2133 = vunpack.c.l.b16 %v1869
          %v2134 = vunpack.c.h.b16 %v1869
          %v2135 = vunpack.c.l.b16 %v1870
          %v2136 = vunpack.c.h.b16 %v1870
          %v2137 = vunpack.c.l.b16 %v1871
          %v2138 = vunpack.c.h.b16 %v1871
          %v2139 = vunpack.c.l.b16 %v1872
          %v2140 = vunpack.c.h.b16 %v1872
          %v2141 = vpack.c.b16 %v2079, %v2077
          %v2142 = vpack.c.b16 %v2080, %v2078
          %v2143 = vpack.c.b16 %v2083, %v2081
          %v2144 = vpack.c.b16 %v2084, %v2082
          %v2145 = vpack.c.b16 %v2087, %v2085
          %v2146 = vpack.c.b16 %v2088, %v2086
          %v2147 = vpack.c.b16 %v2091, %v2089
          %v2148 = vpack.c.b16 %v2092, %v2090
          %v2149 = vpack.c.b16 %v2095, %v2093
          %v2150 = vpack.c.b16 %v2096, %v2094
          %v2151 = vpack.c.b16 %v2099, %v2097
          %v2152 = vpack.c.b16 %v2100, %v2098
          %v2153 = vpack.c.b16 %v2103, %v2101
          %v2154 = vpack.c.b16 %v2104, %v2102
          %v2155 = vpack.c.b16 %v2107, %v2105
          %v2156 = vpack.c.b16 %v2108, %v2106
          %v2157 = vpack.c.b16 %v2111, %v2109
          %v2158 = vpack.c.b16 %v2112, %v2110
          %v2159 = vpack.c.b16 %v2115, %v2113
          %v2160 = vpack.c.b16 %v2116, %v2114
          %v2161 = vpack.c.b16 %v2119, %v2117
          %v2162 = vpack.c.b16 %v2120, %v2118
          %v2163 = vpack.c.b16 %v2123, %v2121
          %v2164 = vpack.c.b16 %v2124, %v2122
          %v2165 = vpack.c.b16 %v2127, %v2125
          %v2166 = vpack.c.b16 %v2128, %v2126
          %v2167 = vpack.c.b16 %v2131, %v2129
          %v2168 = vpack.c.b16 %v2132, %v2130
          %v2169 = vpack.c.b16 %v2135, %v2133
          %v2170 = vpack.c.b16 %v2136, %v2134
          %v2171 = vpack.c.b16 %v2139, %v2137
          %v2172 = vpack.c.b16 %v2140, %v2138
          %2205 = vmatprep.subr.bf16.mxu0 %v2142
          %2206 = vmatpush1.bf16.msra.mxu0 %v2141
          %2207 = vmatprep.subr.bf16.mxu0 %v2144
          %2208 = vmatpush1.bf16.msra.mxu0 %v2143
          %2209 = vmatprep.subr.bf16.mxu0 %v2146
          %2210 = vmatpush1.bf16.msra.mxu0 %v2145
          %2211 = vmatprep.subr.bf16.mxu0 %v2148
          %2212 = vmatpush1.bf16.msra.mxu0 %v2147
          %2213 = vmatprep.subr.bf16.mxu0 %v2150
          %2214 = vmatpush1.bf16.msra.mxu0 %v2149
          %2215 = vmatprep.subr.bf16.mxu0 %v2152
          %2216 = vmatpush1.bf16.msra.mxu0 %v2151
          %2217 = vmatprep.subr.bf16.mxu0 %v2154
          %2218 = vmatpush1.bf16.msra.mxu0 %v2153
          %2219 = vmatprep.subr.bf16.mxu0 %v2156
          %2220 = vmatpush1.bf16.msra.mxu0 %v2155
          %2221 = vmatprep.subr.bf16.mxu0 %v2158
          %2222 = vmatpush1.bf16.msra.mxu0 %v2157
          %2223 = vmatprep.subr.bf16.mxu0 %v2160
          %2224 = vmatpush1.bf16.msra.mxu0 %v2159
          %2225 = vmatprep.subr.bf16.mxu0 %v2162
          %2226 = vmatpush1.bf16.msra.mxu0 %v2161
          %2227 = vmatprep.subr.bf16.mxu0 %v2164
          %2228 = vmatpush1.bf16.msra.mxu0 %v2163
          %2229 = vmatprep.subr.bf16.mxu0 %v2166
          %2230 = vmatpush1.bf16.msra.mxu0 %v2165
          %2231 = vmatprep.subr.bf16.mxu0 %v2168
          %2232 = vmatpush1.bf16.msra.mxu0 %v2167
          %2233 = vmatprep.subr.bf16.mxu0 %v2170
          %2234 = vmatpush1.bf16.msra.mxu0 %v2169
          %2235 = vmatprep.subr.bf16.mxu0 %v2172
          %2236 = vmatpush1.bf16.msra.mxu0 %v2171
          %2237 = vmatprep.mubr.bf16.mxu0 %v1982
          %2238 = vmatmul.mubr.bf16.gmra.mrb[0].mxu0 %v1981
          %v2239 = vpop.f32.mrb[0].mxu0
          %v2240 = vadd.f32 %v1878, %v2239
          %v2241 = vpop.f32.mrb[0].mxu0
          %v2242 = vadd.f32 %v1882, %v2241
          %v2243 = vpop.f32.mrb[0].mxu0
          %v2244 = vadd.f32 %v1878, %v2243
          %v2245 = vpop.f32.mrb[0].mxu0
          %v2246 = vadd.f32 %v1882, %v2245
          %2247 = vmatprep.mubr.bf16.mxu0 %v1984
          %2248 = vmatmul.mubr.bf16.gmra.mrb[0].mxu0 %v1983
          %v2249 = vpop.f32.mrb[0].mxu0
          %v2250 = vadd.f32 %v1878, %v2249
          %v2251 = vpop.f32.mrb[0].mxu0
          %v2252 = vadd.f32 %v1882, %v2251
          %v2253 = vpop.f32.mrb[0].mxu0
          %v2254 = vadd.f32 %v1878, %v2253
          %v2255 = vpop.f32.mrb[0].mxu0
          %v2256 = vadd.f32 %v1882, %v2255
          %2257 = vmatprep.mubr.bf16.mxu0 %v1986
          %2258 = vmatmul.mubr.bf16.gmra.mrb[0].mxu0 %v1985
          %v2259 = vpop.f32.mrb[0].mxu0
          %v2260 = vadd.f32 %v1878, %v2259
          %v2261 = vpop.f32.mrb[0].mxu0
          %v2262 = vadd.f32 %v1882, %v2261
          %v2263 = vpop.f32.mrb[0].mxu0
          %v2264 = vadd.f32 %v1878, %v2263
          %v2265 = vpop.f32.mrb[0].mxu0
          %v2266 = vadd.f32 %v1882, %v2265
          %2267 = vmatprep.mubr.bf16.mxu0 %v1988
          %2268 = vmatmul.mubr.bf16.gmra.mrb[0].mxu0 %v1987
          %v2269 = vpop.f32.mrb[0].mxu0
          %v2270 = vadd.f32 %v1878, %v2269
          %v2271 = vpop.f32.mrb[0].mxu0
          %v2272 = vadd.f32 %v1882, %v2271
          %v2273 = vpop.f32.mrb[0].mxu0
          %v2274 = vadd.f32 %v1878, %v2273
          %v2275 = vpop.f32.mrb[0].mxu0
          %v2276 = vadd.f32 %v1882, %v2275
          %2277 = vmatprep.mubr.bf16.mxu0 %v1990
          %2278 = vmatmul.mubr.bf16.gmra.mrb[0].mxu0 %v1989
          %v2279 = vpop.f32.mrb[0].mxu0
          %v2280 = vadd.f32 %v1878, %v2279
          %v2281 = vpop.f32.mrb[0].mxu0
          %v2282 = vadd.f32 %v1882, %v2281
          %v2283 = vpop.f32.mrb[0].mxu0
          %v2284 = vadd.f32 %v1878, %v2283
          %v2285 = vpop.f32.mrb[0].mxu0
          %v2286 = vadd.f32 %v1882, %v2285
          %2287 = vmatprep.mubr.bf16.mxu0 %v1992
          %2288 = vmatmul.mubr.bf16.gmra.mrb[0].mxu0 %v1991
          %v2289 = vpop.f32.mrb[0].mxu0
          %v2290 = vadd.f32 %v1878, %v2289
          %v2291 = vpop.f32.mrb[0].mxu0
          %v2292 = vadd.f32 %v1882, %v2291
          %v2293 = vpop.f32.mrb[0].mxu0
          %v2294 = vadd.f32 %v1878, %v2293
          %v2295 = vpop.f32.mrb[0].mxu0
          %v2296 = vadd.f32 %v1882, %v2295
          %2297 = vmatprep.mubr.bf16.mxu0 %v1994
          %2298 = vmatmul.mubr.bf16.gmra.mrb[0].mxu0 %v1993
          %v2299 = vpop.f32.mrb[0].mxu0
          %v2300 = vadd.f32 %v1878, %v2299
          %v2301 = vpop.f32.mrb[0].mxu0
          %v2302 = vadd.f32 %v1882, %v2301
          %v2303 = vpop.f32.mrb[0].mxu0
          %v2304 = vadd.f32 %v1878, %v2303
          %v2305 = vpop.f32.mrb[0].mxu0
          %v2306 = vadd.f32 %v1882, %v2305
          %2307 = vmatprep.mubr.bf16.mxu0 %v1996
          %2308 = vmatmul.mubr.bf16.gmra.mrb[0].mxu0 %v1995
          %v2309 = vpop.f32.mrb[0].mxu0
          %v2310 = vadd.f32 %v1878, %v2309
          %v2311 = vpop.f32.mrb[0].mxu0
          %v2312 = vadd.f32 %v1882, %v2311
          %v2313 = vpop.f32.mrb[0].mxu0
          %v2314 = vadd.f32 %v1878, %v2313
          %v2315 = vpop.f32.mrb[0].mxu0
          %v2316 = vadd.f32 %v1882, %v2315
          %2317 = vmatprep.mubr.bf16.mxu0 %v1998
          %2318 = vmatmul.mubr.bf16.gmra.mrb[0].mxu0 %v1997
          %v2319 = vpop.f32.mrb[0].mxu0
          %v2320 = vadd.f32 %v1878, %v2319
          %v2321 = vpop.f32.mrb[0].mxu0
          %v2322 = vadd.f32 %v1882, %v2321
          %v2323 = vpop.f32.mrb[0].mxu0
          %v2324 = vadd.f32 %v1878, %v2323
          %v2325 = vpop.f32.mrb[0].mxu0
          %v2326 = vadd.f32 %v1882, %v2325
          %2327 = vmatprep.mubr.bf16.mxu0 %v2000
          %2328 = vmatmul.mubr.bf16.gmra.mrb[0].mxu0 %v1999
          %v2329 = vpop.f32.mrb[0].mxu0
          %v2330 = vadd.f32 %v1878, %v2329
          %v2331 = vpop.f32.mrb[0].mxu0
          %v2332 = vadd.f32 %v1882, %v2331
          %v2333 = vpop.f32.mrb[0].mxu0
          %v2334 = vadd.f32 %v1878, %v2333
          %v2335 = vpop.f32.mrb[0].mxu0
          %v2336 = vadd.f32 %v1882, %v2335
          %2337 = vmatprep.mubr.bf16.mxu0 %v2002
          %2338 = vmatmul.mubr.bf16.gmra.mrb[0].mxu0 %v2001
          %v2339 = vpop.f32.mrb[0].mxu0
          %v2340 = vadd.f32 %v1878, %v2339
          %v2341 = vpop.f32.mrb[0].mxu0
          %v2342 = vadd.f32 %v1882, %v2341
          %v2343 = vpop.f32.mrb[0].mxu0
          %v2344 = vadd.f32 %v1878, %v2343
          %v2345 = vpop.f32.mrb[0].mxu0
          %v2346 = vadd.f32 %v1882, %v2345
          %2347 = vmatprep.mubr.bf16.mxu0 %v2004
          %2348 = vmatmul.mubr.bf16.gmra.mrb[0].mxu0 %v2003
          %v2349 = vpop.f32.mrb[0].mxu0
          %v2350 = vadd.f32 %v1878, %v2349
          %v2351 = vpop.f32.mrb[0].mxu0
          %v2352 = vadd.f32 %v1882, %v2351
          %v2353 = vpop.f32.mrb[0].mxu0
          %v2354 = vadd.f32 %v1878, %v2353
          %v2355 = vpop.f32.mrb[0].mxu0
          %v2356 = vadd.f32 %v1882, %v2355
          %2357 = vmatprep.mubr.bf16.mxu0 %v2006
          %2358 = vmatmul.mubr.bf16.gmra.mrb[0].mxu0 %v2005
          %v2359 = vpop.f32.mrb[0].mxu0
          %v2360 = vadd.f32 %v1878, %v2359
          %v2361 = vpop.f32.mrb[0].mxu0
          %v2362 = vadd.f32 %v1882, %v2361
          %v2363 = vpop.f32.mrb[0].mxu0
          %v2364 = vadd.f32 %v1878, %v2363
          %v2365 = vpop.f32.mrb[0].mxu0
          %v2366 = vadd.f32 %v1882, %v2365
          %2367 = vmatprep.mubr.bf16.mxu0 %v2008
          %2368 = vmatmul.mubr.bf16.gmra.mrb[0].mxu0 %v2007
          %v2369 = vpop.f32.mrb[0].mxu0
          %v2370 = vadd.f32 %v1878, %v2369
          %v2371 = vpop.f32.mrb[0].mxu0
          %v2372 = vadd.f32 %v1882, %v2371
          %v2373 = vpop.f32.mrb[0].mxu0
          %v2374 = vadd.f32 %v1878, %v2373
          %v2375 = vpop.f32.mrb[0].mxu0
          %v2376 = vadd.f32 %v1882, %v2375
          %2377 = vmatprep.mubr.bf16.mxu0 %v2010
          %2378 = vmatmul.mubr.bf16.gmra.mrb[0].mxu0 %v2009
          %v2379 = vpop.f32.mrb[0].mxu0
          %v2380 = vadd.f32 %v1878, %v2379
          %v2381 = vpop.f32.mrb[0].mxu0
          %v2382 = vadd.f32 %v1882, %v2381
          %v2383 = vpop.f32.mrb[0].mxu0
          %v2384 = vadd.f32 %v1878, %v2383
          %v2385 = vpop.f32.mrb[0].mxu0
          %v2386 = vadd.f32 %v1882, %v2385
          %2387 = vmatprep.mubr.bf16.mxu0 %v2012
          %2388 = vmatmul.mubr.bf16.gmra.mrb[0].mxu0 %v2011
          %v2389 = vpop.f32.mrb[0].mxu0
          %v2390 = vadd.f32 %v1878, %v2389
          %v2391 = vpop.f32.mrb[0].mxu0
          %v2392 = vadd.f32 %v1882, %v2391
          %v2393 = vpop.f32.mrb[0].mxu0
          %v2394 = vadd.f32 %v1878, %v2393
          %v2395 = vpop.f32.mrb[0].mxu0
          %v2396 = vadd.f32 %v1882, %v2395
          %2397 = vdwg.mxu0
          %v2398 = vtanh.pop %v2240
          %v2399 = vtanh.pop %v2242
          %v2400 = vtanh.pop %v2244
          %v2401 = vtanh.pop %v2246
          %v2402 = vtanh.pop %v2250
          %v2403 = vtanh.pop %v2252
          %v2404 = vtanh.pop %v2254
          %v2405 = vtanh.pop %v2256
          %v2406 = vtanh.pop %v2260
          %v2407 = vtanh.pop %v2262
          %v2408 = vtanh.pop %v2264
          %v2409 = vtanh.pop %v2266
          %v2410 = vtanh.pop %v2270
          %v2411 = vtanh.pop %v2272
          %v2412 = vtanh.pop %v2274
          %v2413 = vtanh.pop %v2276
          %v2414 = vtanh.pop %v2280
          %v2415 = vtanh.pop %v2282
          %v2416 = vtanh.pop %v2284
          %v2417 = vtanh.pop %v2286
          %v2418 = vtanh.pop %v2290
          %v2419 = vtanh.pop %v2292
          %v2420 = vtanh.pop %v2294
          %v2421 = vtanh.pop %v2296
          %v2422 = vtanh.pop %v2300
          %v2423 = vtanh.pop %v2302
          %v2424 = vtanh.pop %v2304
          %v2425 = vtanh.pop %v2306
          %v2426 = vtanh.pop %v2310
          %v2427 = vtanh.pop %v2312
          %v2428 = vtanh.pop %v2314
          %v2429 = vtanh.pop %v2316
          %v2430 = vtanh.pop %v2320
          %v2431 = vtanh.pop %v2322
          %v2432 = vtanh.pop %v2324
          %v2433 = vtanh.pop %v2326
          %v2434 = vtanh.pop %v2330
          %v2435 = vtanh.pop %v2332
          %v2436 = vtanh.pop %v2334
          %v2437 = vtanh.pop %v2336
          %v2438 = vtanh.pop %v2340
          %v2439 = vtanh.pop %v2342
          %v2440 = vtanh.pop %v2344
          %v2441 = vtanh.pop %v2346
          %v2442 = vtanh.pop %v2350
          %v2443 = vtanh.pop %v2352
          %v2444 = vtanh.pop %v2354
          %v2445 = vtanh.pop %v2356
          %v2446 = vtanh.pop %v2360
          %v2447 = vtanh.pop %v2362
          %v2448 = vtanh.pop %v2364
          %v2449 = vtanh.pop %v2366
          %v2450 = vtanh.pop %v2370
          %v2451 = vtanh.pop %v2372
          %v2452 = vtanh.pop %v2374
          %v2453 = vtanh.pop %v2376
          %v2454 = vtanh.pop %v2380
          %v2455 = vtanh.pop %v2382
          %v2456 = vtanh.pop %v2384
          %v2457 = vtanh.pop %v2386
          %v2458 = vtanh.pop %v2390
          %v2459 = vtanh.pop %v2392
          %v2460 = vtanh.pop %v2394
          %v2461 = vtanh.pop %v2396
          %v2462 = vpack.c.bf16 %v2400, %v2398
          %v2463 = vpack.c.bf16 %v2401, %v2399
          %v2464 = vpack.c.bf16 %v2404, %v2402
          %v2465 = vpack.c.bf16 %v2405, %v2403
          %v2466 = vpack.c.bf16 %v2408, %v2406
          %v2467 = vpack.c.bf16 %v2409, %v2407
          %v2468 = vpack.c.bf16 %v2412, %v2410
          %v2469 = vpack.c.bf16 %v2413, %v2411
          %v2470 = vpack.c.bf16 %v2416, %v2414
          %v2471 = vpack.c.bf16 %v2417, %v2415
          %v2472 = vpack.c.bf16 %v2420, %v2418
          %v2473 = vpack.c.bf16 %v2421, %v2419
          %v2474 = vpack.c.bf16 %v2424, %v2422
          %v2475 = vpack.c.bf16 %v2425, %v2423
          %v2476 = vpack.c.bf16 %v2428, %v2426
          %v2477 = vpack.c.bf16 %v2429, %v2427
          %v2478 = vpack.c.bf16 %v2432, %v2430
          %v2479 = vpack.c.bf16 %v2433, %v2431
          %v2480 = vpack.c.bf16 %v2436, %v2434
          %v2481 = vpack.c.bf16 %v2437, %v2435
          %v2482 = vpack.c.bf16 %v2440, %v2438
          %v2483 = vpack.c.bf16 %v2441, %v2439
          %v2484 = vpack.c.bf16 %v2444, %v2442
          %v2485 = vpack.c.bf16 %v2445, %v2443
          %v2486 = vpack.c.bf16 %v2448, %v2446
          %v2487 = vpack.c.bf16 %v2449, %v2447
          %v2488 = vpack.c.bf16 %v2452, %v2450
          %v2489 = vpack.c.bf16 %v2453, %v2451
          %v2490 = vpack.c.bf16 %v2456, %v2454
          %v2491 = vpack.c.bf16 %v2457, %v2455
          %v2492 = vpack.c.bf16 %v2460, %v2458
          %v2493 = vpack.c.bf16 %v2461, %v2459
          %v2494 = vld [vmem:[#allocation11] sm:$0xf]
          %v2495 = vld [vmem:[#allocation11 + $0x4] sm:$0xf]
          %v2496 = vld [vmem:[#allocation11 + $0x8] sm:$0xf]
          %v2497 = vld [vmem:[#allocation11 + $0xc] sm:$0xf]
          %v2498 = vld [vmem:[#allocation11 + $0x10] sm:$0xf]
          %v2499 = vld [vmem:[#allocation11 + $0x14] sm:$0xf]
          %v2500 = vld [vmem:[#allocation11 + $0x18] sm:$0xf]
          %v2501 = vld [vmem:[#allocation11 + $0x1c] sm:$0xf]
          %v2502 = vld [vmem:[#allocation11 + $0x20] sm:$0xf]
          %v2503 = vld [vmem:[#allocation11 + $0x24] sm:$0xf]
          %v2504 = vld [vmem:[#allocation11 + $0x28] sm:$0xf]
          %v2505 = vld [vmem:[#allocation11 + $0x2c] sm:$0xf]
          %v2506 = vld [vmem:[#allocation11 + $0x30] sm:$0xf]
          %v2507 = vld [vmem:[#allocation11 + $0x34] sm:$0xf]
          %v2508 = vld [vmem:[#allocation11 + $0x38] sm:$0xf]
          %v2509 = vld [vmem:[#allocation11 + $0x3c] sm:$0xf]
          %v2510 = vld [vmem:[#allocation11 + $0x40] sm:$0xf]
          %v2511 = vld [vmem:[#allocation11 + $0x44] sm:$0xf]
          %v2512 = vld [vmem:[#allocation11 + $0x48] sm:$0xf]
          %v2513 = vld [vmem:[#allocation11 + $0x4c] sm:$0xf]
          %v2514 = vld [vmem:[#allocation11 + $0x50] sm:$0xf]
          %v2515 = vld [vmem:[#allocation11 + $0x54] sm:$0xf]
          %v2516 = vld [vmem:[#allocation11 + $0x58] sm:$0xf]
          %v2517 = vld [vmem:[#allocation11 + $0x5c] sm:$0xf]
          %v2518 = vld [vmem:[#allocation11 + $0x60] sm:$0xf]
          %v2519 = vld [vmem:[#allocation11 + $0x64] sm:$0xf]
          %v2520 = vld [vmem:[#allocation11 + $0x68] sm:$0xf]
          %v2521 = vld [vmem:[#allocation11 + $0x6c] sm:$0xf]
          %v2522 = vld [vmem:[#allocation11 + $0x70] sm:$0xf]
          %v2523 = vld [vmem:[#allocation11 + $0x74] sm:$0xf]
          %v2524 = vld [vmem:[#allocation11 + $0x78] sm:$0xf]
          %v2525 = vld [vmem:[#allocation11 + $0x7c] sm:$0xf]
          %v2526 = vld [vmem:[%s9] sm:$0x1]
          %v2528 = vlaneseq
          %v2529 = vshrl.u32 %v2528, 7
          %v2530 = vsub.s32 0, %v2529
          %v2531 = vrot.slane %v2526, %v2530
          %v2565 = vunpack.c.l.b16 %v2494
          %v2566 = vunpack.c.l.b16 %v2495
          %v2567 = vunpack.c.l.b16 %v2496
          %v2568 = vunpack.c.l.b16 %v2497
          %v2569 = vunpack.c.l.b16 %v2498
          %v2570 = vunpack.c.l.b16 %v2499
          %v2571 = vunpack.c.l.b16 %v2500
          %v2572 = vunpack.c.l.b16 %v2501
          %v2573 = vunpack.c.l.b16 %v2502
          %v2574 = vunpack.c.l.b16 %v2503
          %v2575 = vunpack.c.l.b16 %v2504
          %v2576 = vunpack.c.l.b16 %v2505
          %v2577 = vunpack.c.l.b16 %v2506
          %v2578 = vunpack.c.l.b16 %v2507
          %v2579 = vunpack.c.l.b16 %v2508
          %v2580 = vunpack.c.l.b16 %v2509
          %v2581 = vunpack.c.l.b16 %v2510
          %v2582 = vunpack.c.l.b16 %v2511
          %v2583 = vunpack.c.l.b16 %v2512
          %v2584 = vunpack.c.l.b16 %v2513
          %v2585 = vunpack.c.l.b16 %v2514
          %v2586 = vunpack.c.l.b16 %v2515
          %v2587 = vunpack.c.l.b16 %v2516
          %v2588 = vunpack.c.l.b16 %v2517
          %v2589 = vunpack.c.l.b16 %v2518
          %v2590 = vunpack.c.l.b16 %v2519
          %v2591 = vunpack.c.l.b16 %v2520
          %v2592 = vunpack.c.l.b16 %v2521
          %v2593 = vunpack.c.l.b16 %v2522
          %v2594 = vunpack.c.l.b16 %v2523
          %v2595 = vunpack.c.l.b16 %v2524
          %v2596 = vunpack.c.l.b16 %v2525
          %v2597 = vpack.c.b16 %v2566, %v2565
          %v2598 = vpack.c.b16 %v2568, %v2567
          %v2599 = vpack.c.b16 %v2570, %v2569
          %v2600 = vpack.c.b16 %v2572, %v2571
          %v2601 = vpack.c.b16 %v2574, %v2573
          %v2602 = vpack.c.b16 %v2576, %v2575
          %v2603 = vpack.c.b16 %v2578, %v2577
          %v2604 = vpack.c.b16 %v2580, %v2579
          %v2605 = vpack.c.b16 %v2582, %v2581
          %v2606 = vpack.c.b16 %v2584, %v2583
          %v2607 = vpack.c.b16 %v2586, %v2585
          %v2608 = vpack.c.b16 %v2588, %v2587
          %v2609 = vpack.c.b16 %v2590, %v2589
          %v2610 = vpack.c.b16 %v2592, %v2591
          %v2611 = vpack.c.b16 %v2594, %v2593
          %v2612 = vpack.c.b16 %v2596, %v2595
          %2629 = vmatprep.subr.bf16.mxu0 0
          %2630 = vmatpush1.bf16.msra.mxu0 %v2597
          %2631 = vmatprep.subr.bf16.mxu0 0
          %2632 = vmatpush1.bf16.msra.mxu0 %v2598
          %2633 = vmatprep.subr.bf16.mxu0 0
          %2634 = vmatpush1.bf16.msra.mxu0 %v2599
          %2635 = vmatprep.subr.bf16.mxu0 0
          %2636 = vmatpush1.bf16.msra.mxu0 %v2600
          %2637 = vmatprep.subr.bf16.mxu0 0
          %2638 = vmatpush1.bf16.msra.mxu0 %v2601
          %2639 = vmatprep.subr.bf16.mxu0 0
          %2640 = vmatpush1.bf16.msra.mxu0 %v2602
          %2641 = vmatprep.subr.bf16.mxu0 0
          %2642 = vmatpush1.bf16.msra.mxu0 %v2603
          %2643 = vmatprep.subr.bf16.mxu0 0
          %2644 = vmatpush1.bf16.msra.mxu0 %v2604
          %2645 = vmatprep.subr.bf16.mxu0 0
          %2646 = vmatpush1.bf16.msra.mxu0 %v2605
          %2647 = vmatprep.subr.bf16.mxu0 0
          %2648 = vmatpush1.bf16.msra.mxu0 %v2606
          %2649 = vmatprep.subr.bf16.mxu0 0
          %2650 = vmatpush1.bf16.msra.mxu0 %v2607
          %2651 = vmatprep.subr.bf16.mxu0 0
          %2652 = vmatpush1.bf16.msra.mxu0 %v2608
          %2653 = vmatprep.subr.bf16.mxu0 0
          %2654 = vmatpush1.bf16.msra.mxu0 %v2609
          %2655 = vmatprep.subr.bf16.mxu0 0
          %2656 = vmatpush1.bf16.msra.mxu0 %v2610
          %2657 = vmatprep.subr.bf16.mxu0 0
          %2658 = vmatpush1.bf16.msra.mxu0 %v2611
          %2659 = vmatprep.subr.bf16.mxu0 0
          %2660 = vmatpush1.bf16.msra.mxu0 %v2612
          %2661 = vmatprep.mubr.bf16.mxu0 %v2463
          %2662 = vmatmul.mubr.bf16.gmra.mrb[0].mxu0 %v2462
          %v2663 = vpop.f32.mrb[0].mxu0
          %v2664 = vadd.f32 %v2531, %v2663
          %v2665 = vpop.f32.mrb[0].mxu0
          %v2666 = vpop.f32.mrb[0].mxu0
          %v2667 = vadd.f32 %v2531, %v2666
          %v2668 = vpop.f32.mrb[0].mxu0
          %2669 = vmatprep.mubr.bf16.mxu0 %v2465
          %2670 = vmatmul.mubr.bf16.gmra.mrb[0].mxu0 %v2464
          %v2671 = vpop.f32.mrb[0].mxu0
          %v2672 = vadd.f32 %v2531, %v2671
          %v2673 = vpop.f32.mrb[0].mxu0
          %v2674 = vpop.f32.mrb[0].mxu0
          %v2675 = vadd.f32 %v2531, %v2674
          %v2676 = vpop.f32.mrb[0].mxu0
          %2677 = vmatprep.mubr.bf16.mxu0 %v2467
          %2678 = vmatmul.mubr.bf16.gmra.mrb[0].mxu0 %v2466
          %v2679 = vpop.f32.mrb[0].mxu0
          %v2680 = vadd.f32 %v2531, %v2679
          %v2681 = vpop.f32.mrb[0].mxu0
          %v2682 = vpop.f32.mrb[0].mxu0
          %v2683 = vadd.f32 %v2531, %v2682
          %v2684 = vpop.f32.mrb[0].mxu0
          %2685 = vmatprep.mubr.bf16.mxu0 %v2469
          %2686 = vmatmul.mubr.bf16.gmra.mrb[0].mxu0 %v2468
          %v2687 = vpop.f32.mrb[0].mxu0
          %v2688 = vadd.f32 %v2531, %v2687
          %v2689 = vpop.f32.mrb[0].mxu0
          %v2690 = vpop.f32.mrb[0].mxu0
          %v2691 = vadd.f32 %v2531, %v2690
          %v2692 = vpop.f32.mrb[0].mxu0
          %2693 = vmatprep.mubr.bf16.mxu0 %v2471
          %2694 = vmatmul.mubr.bf16.gmra.mrb[0].mxu0 %v2470
          %v2695 = vpop.f32.mrb[0].mxu0
          %v2696 = vadd.f32 %v2531, %v2695
          %v2697 = vpop.f32.mrb[0].mxu0
          %v2698 = vpop.f32.mrb[0].mxu0
          %v2699 = vadd.f32 %v2531, %v2698
          %v2700 = vpop.f32.mrb[0].mxu0
          %2701 = vmatprep.mubr.bf16.mxu0 %v2473
          %2702 = vmatmul.mubr.bf16.gmra.mrb[0].mxu0 %v2472
          %v2703 = vpop.f32.mrb[0].mxu0
          %v2704 = vadd.f32 %v2531, %v2703
          %v2705 = vpop.f32.mrb[0].mxu0
          %v2706 = vpop.f32.mrb[0].mxu0
          %v2707 = vadd.f32 %v2531, %v2706
          %v2708 = vpop.f32.mrb[0].mxu0
          %2709 = vmatprep.mubr.bf16.mxu0 %v2475
          %2710 = vmatmul.mubr.bf16.gmra.mrb[0].mxu0 %v2474
          %v2711 = vpop.f32.mrb[0].mxu0
          %v2712 = vadd.f32 %v2531, %v2711
          %v2713 = vpop.f32.mrb[0].mxu0
          %v2714 = vpop.f32.mrb[0].mxu0
          %v2715 = vadd.f32 %v2531, %v2714
          %v2716 = vpop.f32.mrb[0].mxu0
          %2717 = vmatprep.mubr.bf16.mxu0 %v2477
          %2718 = vmatmul.mubr.bf16.gmra.mrb[0].mxu0 %v2476
          %v2719 = vpop.f32.mrb[0].mxu0
          %v2720 = vadd.f32 %v2531, %v2719
          %v2721 = vpop.f32.mrb[0].mxu0
          %v2722 = vpop.f32.mrb[0].mxu0
          %v2723 = vadd.f32 %v2531, %v2722
          %v2724 = vpop.f32.mrb[0].mxu0
          %2725 = vmatprep.mubr.bf16.mxu0 %v2479
          %2726 = vmatmul.mubr.bf16.gmra.mrb[0].mxu0 %v2478
          %v2727 = vpop.f32.mrb[0].mxu0
          %v2728 = vadd.f32 %v2531, %v2727
          %v2729 = vpop.f32.mrb[0].mxu0
          %v2730 = vpop.f32.mrb[0].mxu0
          %v2731 = vadd.f32 %v2531, %v2730
          %v2732 = vpop.f32.mrb[0].mxu0
          %2733 = vmatprep.mubr.bf16.mxu0 %v2481
          %2734 = vmatmul.mubr.bf16.gmra.mrb[0].mxu0 %v2480
          %v2735 = vpop.f32.mrb[0].mxu0
          %v2736 = vadd.f32 %v2531, %v2735
          %v2737 = vpop.f32.mrb[0].mxu0
          %v2738 = vpop.f32.mrb[0].mxu0
          %v2739 = vadd.f32 %v2531, %v2738
          %v2740 = vpop.f32.mrb[0].mxu0
          %2741 = vmatprep.mubr.bf16.mxu0 %v2483
          %2742 = vmatmul.mubr.bf16.gmra.mrb[0].mxu0 %v2482
          %v2743 = vpop.f32.mrb[0].mxu0
          %v2744 = vadd.f32 %v2531, %v2743
          %v2745 = vpop.f32.mrb[0].mxu0
          %v2746 = vpop.f32.mrb[0].mxu0
          %v2747 = vadd.f32 %v2531, %v2746
          %v2748 = vpop.f32.mrb[0].mxu0
          %2749 = vmatprep.mubr.bf16.mxu0 %v2485
          %2750 = vmatmul.mubr.bf16.gmra.mrb[0].mxu0 %v2484
          %v2751 = vpop.f32.mrb[0].mxu0
          %v2752 = vadd.f32 %v2531, %v2751
          %v2753 = vpop.f32.mrb[0].mxu0
          %v2754 = vpop.f32.mrb[0].mxu0
          %v2755 = vadd.f32 %v2531, %v2754
          %v2756 = vpop.f32.mrb[0].mxu0
          %2757 = vmatprep.mubr.bf16.mxu0 %v2487
          %2758 = vmatmul.mubr.bf16.gmra.mrb[0].mxu0 %v2486
          %v2759 = vpop.f32.mrb[0].mxu0
          %v2760 = vadd.f32 %v2531, %v2759
          %v2761 = vpop.f32.mrb[0].mxu0
          %v2762 = vpop.f32.mrb[0].mxu0
          %v2763 = vadd.f32 %v2531, %v2762
          %v2764 = vpop.f32.mrb[0].mxu0
          %2765 = vmatprep.mubr.bf16.mxu0 %v2489
          %2766 = vmatmul.mubr.bf16.gmra.mrb[0].mxu0 %v2488
          %v2767 = vpop.f32.mrb[0].mxu0
          %v2768 = vadd.f32 %v2531, %v2767
          %v2769 = vpop.f32.mrb[0].mxu0
          %v2770 = vpop.f32.mrb[0].mxu0
          %v2771 = vadd.f32 %v2531, %v2770
          %v2772 = vpop.f32.mrb[0].mxu0
          %2773 = vmatprep.mubr.bf16.mxu0 %v2491
          %2774 = vmatmul.mubr.bf16.gmra.mrb[0].mxu0 %v2490
          %v2775 = vpop.f32.mrb[0].mxu0
          %v2776 = vadd.f32 %v2531, %v2775
          %v2777 = vpop.f32.mrb[0].mxu0
          %v2778 = vpop.f32.mrb[0].mxu0
          %v2779 = vadd.f32 %v2531, %v2778
          %v2780 = vpop.f32.mrb[0].mxu0
          %2781 = vmatprep.mubr.bf16.mxu0 %v2493
          %2782 = vmatmul.mubr.bf16.gmra.mrb[0].mxu0 %v2492
          %v2783 = vpop.f32.mrb[0].mxu0
          %v2784 = vadd.f32 %v2531, %v2783
          %v2785 = vpop.f32.mrb[0].mxu0
          %v2786 = vpop.f32.mrb[0].mxu0
          %v2787 = vadd.f32 %v2531, %v2786
          %v2788 = vpop.f32.mrb[0].mxu0
          %2789 = vdwg.mxu0
          %2790 = vst [vmem:[%s563] sm:$0xff] %v2664
          %2791 = vst [vmem:[%s563 + $0x8] sm:$0xff] %v2667
          %2792 = vst [vmem:[%s563 + $0x10] sm:$0xff] %v2672
          %2793 = vst [vmem:[%s563 + $0x18] sm:$0xff] %v2675
          %2794 = vst [vmem:[%s563 + $0x20] sm:$0xff] %v2680
          %2795 = vst [vmem:[%s563 + $0x28] sm:$0xff] %v2683
          %2796 = vst [vmem:[%s563 + $0x30] sm:$0xff] %v2688
          %2797 = vst [vmem:[%s563 + $0x38] sm:$0xff] %v2691
          %2798 = vst [vmem:[%s563 + $0x40] sm:$0xff] %v2696
          %2799 = vst [vmem:[%s563 + $0x48] sm:$0xff] %v2699
          %2800 = vst [vmem:[%s563 + $0x50] sm:$0xff] %v2704
          %2801 = vst [vmem:[%s563 + $0x58] sm:$0xff] %v2707
          %2802 = vst [vmem:[%s563 + $0x60] sm:$0xff] %v2712
          %2803 = vst [vmem:[%s563 + $0x68] sm:$0xff] %v2715
          %2804 = vst [vmem:[%s563 + $0x70] sm:$0xff] %v2720
          %2805 = vst [vmem:[%s563 + $0x78] sm:$0xff] %v2723
          %2806 = vst [vmem:[%s563 + $0x80] sm:$0xff] %v2728
          %2807 = vst [vmem:[%s563 + $0x88] sm:$0xff] %v2731
          %2808 = vst [vmem:[%s563 + $0x90] sm:$0xff] %v2736
          %2809 = vst [vmem:[%s563 + $0x98] sm:$0xff] %v2739
          %2810 = vst [vmem:[%s563 + $0xa0] sm:$0xff] %v2744
          %2811 = vst [vmem:[%s563 + $0xa8] sm:$0xff] %v2747
          %2812 = vst [vmem:[%s563 + $0xb0] sm:$0xff] %v2752
          %2813 = vst [vmem:[%s563 + $0xb8] sm:$0xff] %v2755
          %2814 = vst [vmem:[%s563 + $0xc0] sm:$0xff] %v2760
          %2815 = vst [vmem:[%s563 + $0xc8] sm:$0xff] %v2763
          %2816 = vst [vmem:[%s563 + $0xd0] sm:$0xff] %v2768
          %2817 = vst [vmem:[%s563 + $0xd8] sm:$0xff] %v2771
          %2818 = vst [vmem:[%s563 + $0xe0] sm:$0xff] %v2776
          %2819 = vst [vmem:[%s563 + $0xe8] sm:$0xff] %v2779
          %2820 = vst [vmem:[%s563 + $0xf0] sm:$0xff] %v2784
          %2821 = vst [vmem:[%s563 + $0xf8] sm:$0xff] %v2787
        $region88: #{tpu_custom_call.1} parent=59 // pred_fallthru
          _
        %v2822 = vld [vmem:[#allocation2] sm:$0xff]
        %v2823 = vld [vmem:[#allocation2 + $0x8] sm:$0xff]
        %v2824 = vld [vmem:[#allocation2 + $0x10] sm:$0xff]
        %v2825 = vld [vmem:[#allocation2 + $0x18] sm:$0xff]
        %v2826 = vld [vmem:[#allocation2 + $0x20] sm:$0xff]
        %v2827 = vld [vmem:[#allocation2 + $0x28] sm:$0xff]
        %v2828 = vld [vmem:[#allocation2 + $0x30] sm:$0xff]
        %v2829 = vld [vmem:[#allocation2 + $0x38] sm:$0xff]
        %v2830 = vld [vmem:[#allocation2 + $0x40] sm:$0xff]
        %v2831 = vld [vmem:[#allocation2 + $0x48] sm:$0xff]
        %v2832 = vld [vmem:[#allocation2 + $0x50] sm:$0xff]
        %v2833 = vld [vmem:[#allocation2 + $0x58] sm:$0xff]
        %v2834 = vld [vmem:[#allocation2 + $0x60] sm:$0xff]
        %v2835 = vld [vmem:[#allocation2 + $0x68] sm:$0xff]
        %v2836 = vld [vmem:[#allocation2 + $0x70] sm:$0xff]
        %v2837 = vld [vmem:[#allocation2 + $0x78] sm:$0xff]
        %v2838 = vld [vmem:[#allocation2 + $0x80] sm:$0xff]
        %v2839 = vld [vmem:[#allocation2 + $0x88] sm:$0xff]
        %v2840 = vld [vmem:[#allocation2 + $0x90] sm:$0xff]
        %v2841 = vld [vmem:[#allocation2 + $0x98] sm:$0xff]
        %v2842 = vld [vmem:[#allocation2 + $0xa0] sm:$0xff]
        %v2843 = vld [vmem:[#allocation2 + $0xa8] sm:$0xff]
        %v2844 = vld [vmem:[#allocation2 + $0xb0] sm:$0xff]
        %v2845 = vld [vmem:[#allocation2 + $0xb8] sm:$0xff]
        %v2846 = vld [vmem:[#allocation2 + $0xc0] sm:$0xff]
        %v2847 = vld [vmem:[#allocation2 + $0xc8] sm:$0xff]
        %v2848 = vld [vmem:[#allocation2 + $0xd0] sm:$0xff]
        %v2849 = vld [vmem:[#allocation2 + $0xd8] sm:$0xff]
        %v2850 = vld [vmem:[#allocation2 + $0xe0] sm:$0xff]
        %v2851 = vld [vmem:[#allocation2 + $0xe8] sm:$0xff]
        %v2852 = vld [vmem:[#allocation2 + $0xf0] sm:$0xff]
        %v2853 = vld [vmem:[#allocation2 + $0xf8] sm:$0xff]
        %v2854 = vld [vmem:[%s489] sm:$0xff]
        %v2855 = vld [vmem:[%s489 + $0x8] sm:$0xff]
        %v2856 = vld [vmem:[%s489 + $0x10] sm:$0xff]
        %v2857 = vld [vmem:[%s489 + $0x18] sm:$0xff]
        %v2858 = vld [vmem:[%s489 + $0x20] sm:$0xff]
        %v2859 = vld [vmem:[%s489 + $0x28] sm:$0xff]
        %v2860 = vld [vmem:[%s489 + $0x30] sm:$0xff]
        %v2861 = vld [vmem:[%s489 + $0x38] sm:$0xff]
        %v2862 = vld [vmem:[%s489 + $0x40] sm:$0xff]
        %v2863 = vld [vmem:[%s489 + $0x48] sm:$0xff]
        %v2864 = vld [vmem:[%s489 + $0x50] sm:$0xff]
        %v2865 = vld [vmem:[%s489 + $0x58] sm:$0xff]
        %v2866 = vld [vmem:[%s489 + $0x60] sm:$0xff]
        %v2867 = vld [vmem:[%s489 + $0x68] sm:$0xff]
        %v2868 = vld [vmem:[%s489 + $0x70] sm:$0xff]
        %v2869 = vld [vmem:[%s489 + $0x78] sm:$0xff]
        %v2870 = vld [vmem:[%s489 + $0x80] sm:$0xff]
        %v2871 = vld [vmem:[%s489 + $0x88] sm:$0xff]
        %v2872 = vld [vmem:[%s489 + $0x90] sm:$0xff]
        %v2873 = vld [vmem:[%s489 + $0x98] sm:$0xff]
        %v2874 = vld [vmem:[%s489 + $0xa0] sm:$0xff]
        %v2875 = vld [vmem:[%s489 + $0xa8] sm:$0xff]
        %v2876 = vld [vmem:[%s489 + $0xb0] sm:$0xff]
        %v2877 = vld [vmem:[%s489 + $0xb8] sm:$0xff]
        %v2878 = vld [vmem:[%s489 + $0xc0] sm:$0xff]
        %v2879 = vld [vmem:[%s489 + $0xc8] sm:$0xff]
        %v2880 = vld [vmem:[%s489 + $0xd0] sm:$0xff]
        %v2881 = vld [vmem:[%s489 + $0xd8] sm:$0xff]
        %v2882 = vld [vmem:[%s489 + $0xe0] sm:$0xff]
        %v2883 = vld [vmem:[%s489 + $0xe8] sm:$0xff]
        %v2884 = vld [vmem:[%s489 + $0xf0] sm:$0xff]
        %v2885 = vld [vmem:[%s489 + $0xf8] sm:$0xff]
        %v2886 = vld [vmem:[%s489 + $0x100] sm:$0xff]
        %v2887 = vld [vmem:[%s489 + $0x108] sm:$0xff]
        %v2888 = vld [vmem:[%s489 + $0x110] sm:$0xff]
        %v2889 = vld [vmem:[%s489 + $0x118] sm:$0xff]
        %v2890 = vld [vmem:[%s489 + $0x120] sm:$0xff]
        %v2891 = vld [vmem:[%s489 + $0x128] sm:$0xff]
        %v2892 = vld [vmem:[%s489 + $0x130] sm:$0xff]
        %v2893 = vld [vmem:[%s489 + $0x138] sm:$0xff]
        %v2894 = vld [vmem:[%s489 + $0x140] sm:$0xff]
        %v2895 = vld [vmem:[%s489 + $0x148] sm:$0xff]
        %v2896 = vld [vmem:[%s489 + $0x150] sm:$0xff]
        %v2897 = vld [vmem:[%s489 + $0x158] sm:$0xff]
        %v2898 = vld [vmem:[%s489 + $0x160] sm:$0xff]
        %v2899 = vld [vmem:[%s489 + $0x168] sm:$0xff]
        %v2900 = vld [vmem:[%s489 + $0x170] sm:$0xff]
        %v2901 = vld [vmem:[%s489 + $0x178] sm:$0xff]
        %v2902 = vld [vmem:[%s489 + $0x180] sm:$0xff]
        %v2903 = vld [vmem:[%s489 + $0x188] sm:$0xff]
        %v2904 = vld [vmem:[%s489 + $0x190] sm:$0xff]
        %v2905 = vld [vmem:[%s489 + $0x198] sm:$0xff]
        %v2906 = vld [vmem:[%s489 + $0x1a0] sm:$0xff]
        %v2907 = vld [vmem:[%s489 + $0x1a8] sm:$0xff]
        %v2908 = vld [vmem:[%s489 + $0x1b0] sm:$0xff]
        %v2909 = vld [vmem:[%s489 + $0x1b8] sm:$0xff]
        %v2910 = vld [vmem:[%s489 + $0x1c0] sm:$0xff]
        %v2911 = vld [vmem:[%s489 + $0x1c8] sm:$0xff]
        %v2912 = vld [vmem:[%s489 + $0x1d0] sm:$0xff]
        %v2913 = vld [vmem:[%s489 + $0x1d8] sm:$0xff]
        %v2914 = vld [vmem:[%s489 + $0x1e0] sm:$0xff]
        %v2915 = vld [vmem:[%s489 + $0x1e8] sm:$0xff]
        %v2916 = vld [vmem:[%s489 + $0x1f0] sm:$0xff]
        %v2917 = vld [vmem:[%s489 + $0x1f8] sm:$0xff]
        %v2918 = vld [vmem:[%s569] sm:$0xf]
        %v2920 = vlaneseq
        %v2921 = vshrl.u32 %v2920, 7
        %v2922 = vsub.s32 0, %v2921
        %v2923 = vrot.slane %v2918, %v2922
        %v2924 = vlaneseq
        %v2925 = vshrl.u32 %v2924, 7
        %v2926 = vsub.s32 1, %v2925
        %v2927 = vrot.slane %v2918, %v2926
        %v2928 = vlaneseq
        %v2929 = vshrl.u32 %v2928, 7
        %v2930 = vsub.s32 2, %v2929
        %v2931 = vrot.slane %v2918, %v2930
        %v2932 = vlaneseq
        %v2933 = vshrl.u32 %v2932, 7
        %v2934 = vsub.s32 3, %v2933
        %v2935 = vrot.slane %v2918, %v2934
        %v3004 = vunpack.c.l.b16 %v2854
        %v3005 = vunpack.c.h.b16 %v2854
        %v3006 = vunpack.c.l.b16 %v2855
        %v3007 = vunpack.c.h.b16 %v2855
        %v3008 = vunpack.c.l.b16 %v2856
        %v3009 = vunpack.c.h.b16 %v2856
        %v3010 = vunpack.c.l.b16 %v2857
        %v3011 = vunpack.c.h.b16 %v2857
        %v3012 = vunpack.c.l.b16 %v2858
        %v3013 = vunpack.c.h.b16 %v2858
        %v3014 = vunpack.c.l.b16 %v2859
        %v3015 = vunpack.c.h.b16 %v2859
        %v3016 = vunpack.c.l.b16 %v2860
        %v3017 = vunpack.c.h.b16 %v2860
        %v3018 = vunpack.c.l.b16 %v2861
        %v3019 = vunpack.c.h.b16 %v2861
        %v3020 = vunpack.c.l.b16 %v2862
        %v3021 = vunpack.c.h.b16 %v2862
        %v3022 = vunpack.c.l.b16 %v2863
        %v3023 = vunpack.c.h.b16 %v2863
        %v3024 = vunpack.c.l.b16 %v2864
        %v3025 = vunpack.c.h.b16 %v2864
        %v3026 = vunpack.c.l.b16 %v2865
        %v3027 = vunpack.c.h.b16 %v2865
        %v3028 = vunpack.c.l.b16 %v2866
        %v3029 = vunpack.c.h.b16 %v2866
        %v3030 = vunpack.c.l.b16 %v2867
        %v3031 = vunpack.c.h.b16 %v2867
        %v3032 = vunpack.c.l.b16 %v2868
        %v3033 = vunpack.c.h.b16 %v2868
        %v3034 = vunpack.c.l.b16 %v2869
        %v3035 = vunpack.c.h.b16 %v2869
        %v3036 = vunpack.c.l.b16 %v2870
        %v3037 = vunpack.c.h.b16 %v2870
        %v3038 = vunpack.c.l.b16 %v2871
        %v3039 = vunpack.c.h.b16 %v2871
        %v3040 = vunpack.c.l.b16 %v2872
        %v3041 = vunpack.c.h.b16 %v2872
        %v3042 = vunpack.c.l.b16 %v2873
        %v3043 = vunpack.c.h.b16 %v2873
        %v3044 = vunpack.c.l.b16 %v2874
        %v3045 = vunpack.c.h.b16 %v2874
        %v3046 = vunpack.c.l.b16 %v2875
        %v3047 = vunpack.c.h.b16 %v2875
        %v3048 = vunpack.c.l.b16 %v2876
        %v3049 = vunpack.c.h.b16 %v2876
        %v3050 = vunpack.c.l.b16 %v2877
        %v3051 = vunpack.c.h.b16 %v2877
        %v3052 = vunpack.c.l.b16 %v2878
        %v3053 = vunpack.c.h.b16 %v2878
        %v3054 = vunpack.c.l.b16 %v2879
        %v3055 = vunpack.c.h.b16 %v2879
        %v3056 = vunpack.c.l.b16 %v2880
        %v3057 = vunpack.c.h.b16 %v2880
        %v3058 = vunpack.c.l.b16 %v2881
        %v3059 = vunpack.c.h.b16 %v2881
        %v3060 = vunpack.c.l.b16 %v2882
        %v3061 = vunpack.c.h.b16 %v2882
        %v3062 = vunpack.c.l.b16 %v2883
        %v3063 = vunpack.c.h.b16 %v2883
        %v3064 = vunpack.c.l.b16 %v2884
        %v3065 = vunpack.c.h.b16 %v2884
        %v3066 = vunpack.c.l.b16 %v2885
        %v3067 = vunpack.c.h.b16 %v2885
        %v3068 = vunpack.c.l.b16 %v2886
        %v3069 = vunpack.c.h.b16 %v2886
        %v3070 = vunpack.c.l.b16 %v2887
        %v3071 = vunpack.c.h.b16 %v2887
        %v3072 = vunpack.c.l.b16 %v2888
        %v3073 = vunpack.c.h.b16 %v2888
        %v3074 = vunpack.c.l.b16 %v2889
        %v3075 = vunpack.c.h.b16 %v2889
        %v3076 = vunpack.c.l.b16 %v2890
        %v3077 = vunpack.c.h.b16 %v2890
        %v3078 = vunpack.c.l.b16 %v2891
        %v3079 = vunpack.c.h.b16 %v2891
        %v3080 = vunpack.c.l.b16 %v2892
        %v3081 = vunpack.c.h.b16 %v2892
        %v3082 = vunpack.c.l.b16 %v2893
        %v3083 = vunpack.c.h.b16 %v2893
        %v3084 = vunpack.c.l.b16 %v2894
        %v3085 = vunpack.c.h.b16 %v2894
        %v3086 = vunpack.c.l.b16 %v2895
        %v3087 = vunpack.c.h.b16 %v2895
        %v3088 = vunpack.c.l.b16 %v2896
        %v3089 = vunpack.c.h.b16 %v2896
        %v3090 = vunpack.c.l.b16 %v2897
        %v3091 = vunpack.c.h.b16 %v2897
        %v3092 = vunpack.c.l.b16 %v2898
        %v3093 = vunpack.c.h.b16 %v2898
        %v3094 = vunpack.c.l.b16 %v2899
        %v3095 = vunpack.c.h.b16 %v2899
        %v3096 = vunpack.c.l.b16 %v2900
        %v3097 = vunpack.c.h.b16 %v2900
        %v3098 = vunpack.c.l.b16 %v2901
        %v3099 = vunpack.c.h.b16 %v2901
        %v3100 = vunpack.c.l.b16 %v2902
        %v3101 = vunpack.c.h.b16 %v2902
        %v3102 = vunpack.c.l.b16 %v2903
        %v3103 = vunpack.c.h.b16 %v2903
        %v3104 = vunpack.c.l.b16 %v2904
        %v3105 = vunpack.c.h.b16 %v2904
        %v3106 = vunpack.c.l.b16 %v2905
        %v3107 = vunpack.c.h.b16 %v2905
        %v3108 = vunpack.c.l.b16 %v2906
        %v3109 = vunpack.c.h.b16 %v2906
        %v3110 = vunpack.c.l.b16 %v2907
        %v3111 = vunpack.c.h.b16 %v2907
        %v3112 = vunpack.c.l.b16 %v2908
        %v3113 = vunpack.c.h.b16 %v2908
        %v3114 = vunpack.c.l.b16 %v2909
        %v3115 = vunpack.c.h.b16 %v2909
        %v3116 = vunpack.c.l.b16 %v2910
        %v3117 = vunpack.c.h.b16 %v2910
        %v3118 = vunpack.c.l.b16 %v2911
        %v3119 = vunpack.c.h.b16 %v2911
        %v3120 = vunpack.c.l.b16 %v2912
        %v3121 = vunpack.c.h.b16 %v2912
        %v3122 = vunpack.c.l.b16 %v2913
        %v3123 = vunpack.c.h.b16 %v2913
        %v3124 = vunpack.c.l.b16 %v2914
        %v3125 = vunpack.c.h.b16 %v2914
        %v3126 = vunpack.c.l.b16 %v2915
        %v3127 = vunpack.c.h.b16 %v2915
        %v3128 = vunpack.c.l.b16 %v2916
        %v3129 = vunpack.c.h.b16 %v2916
        %v3130 = vunpack.c.l.b16 %v2917
        %v3131 = vunpack.c.h.b16 %v2917
        %v3132 = vpack.c.b16 %v3008, %v3004
        %v3133 = vpack.c.b16 %v3009, %v3005
        %v3134 = vpack.c.b16 %v3010, %v3006
        %v3135 = vpack.c.b16 %v3011, %v3007
        %v3136 = vpack.c.b16 %v3016, %v3012
        %v3137 = vpack.c.b16 %v3017, %v3013
        %v3138 = vpack.c.b16 %v3018, %v3014
        %v3139 = vpack.c.b16 %v3019, %v3015
        %v3140 = vpack.c.b16 %v3024, %v3020
        %v3141 = vpack.c.b16 %v3025, %v3021
        %v3142 = vpack.c.b16 %v3026, %v3022
        %v3143 = vpack.c.b16 %v3027, %v3023
        %v3144 = vpack.c.b16 %v3032, %v3028
        %v3145 = vpack.c.b16 %v3033, %v3029
        %v3146 = vpack.c.b16 %v3034, %v3030
        %v3147 = vpack.c.b16 %v3035, %v3031
        %v3148 = vpack.c.b16 %v3040, %v3036
        %v3149 = vpack.c.b16 %v3041, %v3037
        %v3150 = vpack.c.b16 %v3042, %v3038
        %v3151 = vpack.c.b16 %v3043, %v3039
        %v3152 = vpack.c.b16 %v3048, %v3044
        %v3153 = vpack.c.b16 %v3049, %v3045
        %v3154 = vpack.c.b16 %v3050, %v3046
        %v3155 = vpack.c.b16 %v3051, %v3047
        %v3156 = vpack.c.b16 %v3056, %v3052
        %v3157 = vpack.c.b16 %v3057, %v3053
        %v3158 = vpack.c.b16 %v3058, %v3054
        %v3159 = vpack.c.b16 %v3059, %v3055
        %v3160 = vpack.c.b16 %v3064, %v3060
        %v3161 = vpack.c.b16 %v3065, %v3061
        %v3162 = vpack.c.b16 %v3066, %v3062
        %v3163 = vpack.c.b16 %v3067, %v3063
        %v3164 = vpack.c.b16 %v3072, %v3068
        %v3165 = vpack.c.b16 %v3073, %v3069
        %v3166 = vpack.c.b16 %v3074, %v3070
        %v3167 = vpack.c.b16 %v3075, %v3071
        %v3168 = vpack.c.b16 %v3080, %v3076
        %v3169 = vpack.c.b16 %v3081, %v3077
        %v3170 = vpack.c.b16 %v3082, %v3078
        %v3171 = vpack.c.b16 %v3083, %v3079
        %v3172 = vpack.c.b16 %v3088, %v3084
        %v3173 = vpack.c.b16 %v3089, %v3085
        %v3174 = vpack.c.b16 %v3090, %v3086
        %v3175 = vpack.c.b16 %v3091, %v3087
        %v3176 = vpack.c.b16 %v3096, %v3092
        %v3177 = vpack.c.b16 %v3097, %v3093
        %v3178 = vpack.c.b16 %v3098, %v3094
        %v3179 = vpack.c.b16 %v3099, %v3095
        %v3180 = vpack.c.b16 %v3104, %v3100
        %v3181 = vpack.c.b16 %v3105, %v3101
        %v3182 = vpack.c.b16 %v3106, %v3102
        %v3183 = vpack.c.b16 %v3107, %v3103
        %v3184 = vpack.c.b16 %v3112, %v3108
        %v3185 = vpack.c.b16 %v3113, %v3109
        %v3186 = vpack.c.b16 %v3114, %v3110
        %v3187 = vpack.c.b16 %v3115, %v3111
        %v3188 = vpack.c.b16 %v3120, %v3116
        %v3189 = vpack.c.b16 %v3121, %v3117
        %v3190 = vpack.c.b16 %v3122, %v3118
        %v3191 = vpack.c.b16 %v3123, %v3119
        %v3192 = vpack.c.b16 %v3128, %v3124
        %v3193 = vpack.c.b16 %v3129, %v3125
        %v3194 = vpack.c.b16 %v3130, %v3126
        %v3195 = vpack.c.b16 %v3131, %v3127
        %3260 = vmatprep.subr.bf16.mxu0 %v3133
        %3261 = vmatpush1.bf16.msra.mxu0 %v3132
        %3262 = vmatprep.subr.bf16.mxu0 %v3137
        %3263 = vmatpush1.bf16.msra.mxu0 %v3136
        %3264 = vmatprep.subr.bf16.mxu0 %v3141
        %3265 = vmatpush1.bf16.msra.mxu0 %v3140
        %3266 = vmatprep.subr.bf16.mxu0 %v3145
        %3267 = vmatpush1.bf16.msra.mxu0 %v3144
        %3268 = vmatprep.subr.bf16.mxu0 %v3149
        %3269 = vmatpush1.bf16.msra.mxu0 %v3148
        %3270 = vmatprep.subr.bf16.mxu0 %v3153
        %3271 = vmatpush1.bf16.msra.mxu0 %v3152
        %3272 = vmatprep.subr.bf16.mxu0 %v3157
        %3273 = vmatpush1.bf16.msra.mxu0 %v3156
        %3274 = vmatprep.subr.bf16.mxu0 %v3161
        %3275 = vmatpush1.bf16.msra.mxu0 %v3160
        %3276 = vmatprep.subr.bf16.mxu0 %v3165
        %3277 = vmatpush1.bf16.msra.mxu0 %v3164
        %3278 = vmatprep.subr.bf16.mxu0 %v3169
        %3279 = vmatpush1.bf16.msra.mxu0 %v3168
        %3280 = vmatprep.subr.bf16.mxu0 %v3173
        %3281 = vmatpush1.bf16.msra.mxu0 %v3172
        %3282 = vmatprep.subr.bf16.mxu0 %v3177
        %3283 = vmatpush1.bf16.msra.mxu0 %v3176
        %3284 = vmatprep.subr.bf16.mxu0 %v3181
        %3285 = vmatpush1.bf16.msra.mxu0 %v3180
        %3286 = vmatprep.subr.bf16.mxu0 %v3185
        %3287 = vmatpush1.bf16.msra.mxu0 %v3184
        %3288 = vmatprep.subr.bf16.mxu0 %v3189
        %3289 = vmatpush1.bf16.msra.mxu0 %v3188
        %3290 = vmatprep.subr.bf16.mxu0 %v3193
        %3291 = vmatpush1.bf16.msra.mxu0 %v3192
        %3292 = vmatprep.mubr.bf16.mxu0 %v2823
        %3293 = vmatmul.mubr.bf16.gmra.mrb[0].mxu0 %v2822
        %v3294 = vpop.f32.mrb[0].mxu0
        %v3295 = vadd.f32 %v2923, %v3294
        %v3296 = vpop.f32.mrb[0].mxu0
        %v3297 = vadd.f32 %v2927, %v3296
        %v3298 = vpop.f32.mrb[0].mxu0
        %v3299 = vadd.f32 %v2923, %v3298
        %v3300 = vpop.f32.mrb[0].mxu0
        %v3301 = vadd.f32 %v2927, %v3300
        %3302 = vmatprep.mubr.bf16.mxu0 %v2825
        %3303 = vmatmul.mubr.bf16.gmra.mrb[0].mxu0 %v2824
        %v3304 = vpop.f32.mrb[0].mxu0
        %v3305 = vadd.f32 %v2923, %v3304
        %v3306 = vpop.f32.mrb[0].mxu0
        %v3307 = vadd.f32 %v2927, %v3306
        %v3308 = vpop.f32.mrb[0].mxu0
        %v3309 = vadd.f32 %v2923, %v3308
        %v3310 = vpop.f32.mrb[0].mxu0
        %v3311 = vadd.f32 %v2927, %v3310
        %3312 = vmatprep.mubr.bf16.mxu0 %v2827
        %3313 = vmatmul.mubr.bf16.gmra.mrb[0].mxu0 %v2826
        %v3314 = vpop.f32.mrb[0].mxu0
        %v3315 = vadd.f32 %v2923, %v3314
        %v3316 = vpop.f32.mrb[0].mxu0
        %v3317 = vadd.f32 %v2927, %v3316
        %v3318 = vpop.f32.mrb[0].mxu0
        %v3319 = vadd.f32 %v2923, %v3318
        %v3320 = vpop.f32.mrb[0].mxu0
        %v3321 = vadd.f32 %v2927, %v3320
        %3322 = vmatprep.mubr.bf16.mxu0 %v2829
        %3323 = vmatmul.mubr.bf16.gmra.mrb[0].mxu0 %v2828
        %v3324 = vpop.f32.mrb[0].mxu0
        %v3325 = vadd.f32 %v2923, %v3324
        %v3326 = vpop.f32.mrb[0].mxu0
        %v3327 = vadd.f32 %v2927, %v3326
        %v3328 = vpop.f32.mrb[0].mxu0
        %v3329 = vadd.f32 %v2923, %v3328
        %v3330 = vpop.f32.mrb[0].mxu0
        %v3331 = vadd.f32 %v2927, %v3330
        %3332 = vmatprep.mubr.bf16.mxu0 %v2831
        %3333 = vmatmul.mubr.bf16.gmra.mrb[0].mxu0 %v2830
        %v3334 = vpop.f32.mrb[0].mxu0
        %v3335 = vadd.f32 %v2923, %v3334
        %v3336 = vpop.f32.mrb[0].mxu0
        %v3337 = vadd.f32 %v2927, %v3336
        %v3338 = vpop.f32.mrb[0].mxu0
        %v3339 = vadd.f32 %v2923, %v3338
        %v3340 = vpop.f32.mrb[0].mxu0
        %v3341 = vadd.f32 %v2927, %v3340
        %3342 = vmatprep.mubr.bf16.mxu0 %v2833
        %3343 = vmatmul.mubr.bf16.gmra.mrb[0].mxu0 %v2832
        %v3344 = vpop.f32.mrb[0].mxu0
        %v3345 = vadd.f32 %v2923, %v3344
        %v3346 = vpop.f32.mrb[0].mxu0
        %v3347 = vadd.f32 %v2927, %v3346
        %v3348 = vpop.f32.mrb[0].mxu0
        %v3349 = vadd.f32 %v2923, %v3348
        %v3350 = vpop.f32.mrb[0].mxu0
        %v3351 = vadd.f32 %v2927, %v3350
        %3352 = vmatprep.mubr.bf16.mxu0 %v2835
        %3353 = vmatmul.mubr.bf16.gmra.mrb[0].mxu0 %v2834
        %v3354 = vpop.f32.mrb[0].mxu0
        %v3355 = vadd.f32 %v2923, %v3354
        %v3356 = vpop.f32.mrb[0].mxu0
        %v3357 = vadd.f32 %v2927, %v3356
        %v3358 = vpop.f32.mrb[0].mxu0
        %v3359 = vadd.f32 %v2923, %v3358
        %v3360 = vpop.f32.mrb[0].mxu0
        %v3361 = vadd.f32 %v2927, %v3360
        %3362 = vmatprep.mubr.bf16.mxu0 %v2837
        %3363 = vmatmul.mubr.bf16.gmra.mrb[0].mxu0 %v2836
        %v3364 = vpop.f32.mrb[0].mxu0
        %v3365 = vadd.f32 %v2923, %v3364
        %v3366 = vpop.f32.mrb[0].mxu0
        %v3367 = vadd.f32 %v2927, %v3366
        %v3368 = vpop.f32.mrb[0].mxu0
        %v3369 = vadd.f32 %v2923, %v3368
        %v3370 = vpop.f32.mrb[0].mxu0
        %v3371 = vadd.f32 %v2927, %v3370
        %3372 = vmatprep.mubr.bf16.mxu0 %v2839
        %3373 = vmatmul.mubr.bf16.gmra.mrb[0].mxu0 %v2838
        %v3374 = vpop.f32.mrb[0].mxu0
        %v3375 = vadd.f32 %v2923, %v3374
        %v3376 = vpop.f32.mrb[0].mxu0
        %v3377 = vadd.f32 %v2927, %v3376
        %v3378 = vpop.f32.mrb[0].mxu0
        %v3379 = vadd.f32 %v2923, %v3378
        %v3380 = vpop.f32.mrb[0].mxu0
        %v3381 = vadd.f32 %v2927, %v3380
        %3382 = vmatprep.mubr.bf16.mxu0 %v2841
        %3383 = vmatmul.mubr.bf16.gmra.mrb[0].mxu0 %v2840
        %v3384 = vpop.f32.mrb[0].mxu0
        %v3385 = vadd.f32 %v2923, %v3384
        %v3386 = vpop.f32.mrb[0].mxu0
        %v3387 = vadd.f32 %v2927, %v3386
        %v3388 = vpop.f32.mrb[0].mxu0
        %v3389 = vadd.f32 %v2923, %v3388
        %v3390 = vpop.f32.mrb[0].mxu0
        %v3391 = vadd.f32 %v2927, %v3390
        %3392 = vmatprep.mubr.bf16.mxu0 %v2843
        %3393 = vmatmul.mubr.bf16.gmra.mrb[0].mxu0 %v2842
        %v3394 = vpop.f32.mrb[0].mxu0
        %v3395 = vadd.f32 %v2923, %v3394
        %v3396 = vpop.f32.mrb[0].mxu0
        %v3397 = vadd.f32 %v2927, %v3396
        %v3398 = vpop.f32.mrb[0].mxu0
        %v3399 = vadd.f32 %v2923, %v3398
        %v3400 = vpop.f32.mrb[0].mxu0
        %v3401 = vadd.f32 %v2927, %v3400
        %3402 = vmatprep.mubr.bf16.mxu0 %v2845
        %3403 = vmatmul.mubr.bf16.gmra.mrb[0].mxu0 %v2844
        %v3404 = vpop.f32.mrb[0].mxu0
        %v3405 = vadd.f32 %v2923, %v3404
        %v3406 = vpop.f32.mrb[0].mxu0
        %v3407 = vadd.f32 %v2927, %v3406
        %v3408 = vpop.f32.mrb[0].mxu0
        %v3409 = vadd.f32 %v2923, %v3408
        %v3410 = vpop.f32.mrb[0].mxu0
        %v3411 = vadd.f32 %v2927, %v3410
        %3412 = vmatprep.mubr.bf16.mxu0 %v2847
        %3413 = vmatmul.mubr.bf16.gmra.mrb[0].mxu0 %v2846
        %v3414 = vpop.f32.mrb[0].mxu0
        %v3415 = vadd.f32 %v2923, %v3414
        %v3416 = vpop.f32.mrb[0].mxu0
        %v3417 = vadd.f32 %v2927, %v3416
        %v3418 = vpop.f32.mrb[0].mxu0
        %v3419 = vadd.f32 %v2923, %v3418
        %v3420 = vpop.f32.mrb[0].mxu0
        %v3421 = vadd.f32 %v2927, %v3420
        %3422 = vmatprep.mubr.bf16.mxu0 %v2849
        %3423 = vmatmul.mubr.bf16.gmra.mrb[0].mxu0 %v2848
        %v3424 = vpop.f32.mrb[0].mxu0
        %v3425 = vadd.f32 %v2923, %v3424
        %v3426 = vpop.f32.mrb[0].mxu0
        %v3427 = vadd.f32 %v2927, %v3426
        %v3428 = vpop.f32.mrb[0].mxu0
        %v3429 = vadd.f32 %v2923, %v3428
        %v3430 = vpop.f32.mrb[0].mxu0
        %v3431 = vadd.f32 %v2927, %v3430
        %3432 = vmatprep.mubr.bf16.mxu0 %v2851
        %3433 = vmatmul.mubr.bf16.gmra.mrb[0].mxu0 %v2850
        %v3434 = vpop.f32.mrb[0].mxu0
        %v3435 = vadd.f32 %v2923, %v3434
        %v3436 = vpop.f32.mrb[0].mxu0
        %v3437 = vadd.f32 %v2927, %v3436
        %v3438 = vpop.f32.mrb[0].mxu0
        %v3439 = vadd.f32 %v2923, %v3438
        %v3440 = vpop.f32.mrb[0].mxu0
        %v3441 = vadd.f32 %v2927, %v3440
        %3442 = vmatprep.mubr.bf16.mxu0 %v2853
        %3443 = vmatmul.mubr.bf16.gmra.mrb[0].mxu0 %v2852
        %v3444 = vpop.f32.mrb[0].mxu0
        %v3445 = vadd.f32 %v2923, %v3444
        %v3446 = vpop.f32.mrb[0].mxu0
        %v3447 = vadd.f32 %v2927, %v3446
        %v3448 = vpop.f32.mrb[0].mxu0
        %v3449 = vadd.f32 %v2923, %v3448
        %v3450 = vpop.f32.mrb[0].mxu0
        %v3451 = vadd.f32 %v2927, %v3450
        %3452 = vdwg.mxu0
        %3453 = vmatprep.subr.bf16.mxu0 %v3135
        %3454 = vmatpush1.bf16.msra.mxu0 %v3134
        %3455 = vmatprep.subr.bf16.mxu0 %v3139
        %3456 = vmatpush1.bf16.msra.mxu0 %v3138
        %3457 = vmatprep.subr.bf16.mxu0 %v3143
        %3458 = vmatpush1.bf16.msra.mxu0 %v3142
        %3459 = vmatprep.subr.bf16.mxu0 %v3147
        %3460 = vmatpush1.bf16.msra.mxu0 %v3146
        %3461 = vmatprep.subr.bf16.mxu0 %v3151
        %3462 = vmatpush1.bf16.msra.mxu0 %v3150
        %3463 = vmatprep.subr.bf16.mxu0 %v3155
        %3464 = vmatpush1.bf16.msra.mxu0 %v3154
        %3465 = vmatprep.subr.bf16.mxu0 %v3159
        %3466 = vmatpush1.bf16.msra.mxu0 %v3158
        %3467 = vmatprep.subr.bf16.mxu0 %v3163
        %3468 = vmatpush1.bf16.msra.mxu0 %v3162
        %3469 = vmatprep.subr.bf16.mxu0 %v3167
        %3470 = vmatpush1.bf16.msra.mxu0 %v3166
        %3471 = vmatprep.subr.bf16.mxu0 %v3171
        %3472 = vmatpush1.bf16.msra.mxu0 %v3170
        %3473 = vmatprep.subr.bf16.mxu0 %v3175
        %3474 = vmatpush1.bf16.msra.mxu0 %v3174
        %3475 = vmatprep.subr.bf16.mxu0 %v3179
        %3476 = vmatpush1.bf16.msra.mxu0 %v3178
        %3477 = vmatprep.subr.bf16.mxu0 %v3183
        %3478 = vmatpush1.bf16.msra.mxu0 %v3182
        %3479 = vmatprep.subr.bf16.mxu0 %v3187
        %3480 = vmatpush1.bf16.msra.mxu0 %v3186
        %3481 = vmatprep.subr.bf16.mxu0 %v3191
        %3482 = vmatpush1.bf16.msra.mxu0 %v3190
        %3483 = vmatprep.subr.bf16.mxu0 %v3195
        %3484 = vmatpush1.bf16.msra.mxu0 %v3194
        %3485 = vmatprep.mubr.bf16.mxu0 %v2823
        %3486 = vmatmul.mubr.bf16.gmra.mrb[0].mxu0 %v2822
        %v3487 = vpop.f32.mrb[0].mxu0
        %v3488 = vadd.f32 %v2931, %v3487
        %v3489 = vpop.f32.mrb[0].mxu0
        %v3490 = vadd.f32 %v2935, %v3489
        %v3491 = vpop.f32.mrb[0].mxu0
        %v3492 = vadd.f32 %v2931, %v3491
        %v3493 = vpop.f32.mrb[0].mxu0
        %v3494 = vadd.f32 %v2935, %v3493
        %3495 = vmatprep.mubr.bf16.mxu0 %v2825
        %3496 = vmatmul.mubr.bf16.gmra.mrb[0].mxu0 %v2824
        %v3497 = vpop.f32.mrb[0].mxu0
        %v3498 = vadd.f32 %v2931, %v3497
        %v3499 = vpop.f32.mrb[0].mxu0
        %v3500 = vadd.f32 %v2935, %v3499
        %v3501 = vpop.f32.mrb[0].mxu0
        %v3502 = vadd.f32 %v2931, %v3501
        %v3503 = vpop.f32.mrb[0].mxu0
        %v3504 = vadd.f32 %v2935, %v3503
        %3505 = vmatprep.mubr.bf16.mxu0 %v2827
        %3506 = vmatmul.mubr.bf16.gmra.mrb[0].mxu0 %v2826
        %v3507 = vpop.f32.mrb[0].mxu0
        %v3508 = vadd.f32 %v2931, %v3507
        %v3509 = vpop.f32.mrb[0].mxu0
        %v3510 = vadd.f32 %v2935, %v3509
        %v3511 = vpop.f32.mrb[0].mxu0
        %v3512 = vadd.f32 %v2931, %v3511
        %v3513 = vpop.f32.mrb[0].mxu0
        %v3514 = vadd.f32 %v2935, %v3513
        %3515 = vmatprep.mubr.bf16.mxu0 %v2829
        %3516 = vmatmul.mubr.bf16.gmra.mrb[0].mxu0 %v2828
        %v3517 = vpop.f32.mrb[0].mxu0
        %v3518 = vadd.f32 %v2931, %v3517
        %v3519 = vpop.f32.mrb[0].mxu0
        %v3520 = vadd.f32 %v2935, %v3519
        %v3521 = vpop.f32.mrb[0].mxu0
        %v3522 = vadd.f32 %v2931, %v3521
        %v3523 = vpop.f32.mrb[0].mxu0
        %v3524 = vadd.f32 %v2935, %v3523
        %3525 = vmatprep.mubr.bf16.mxu0 %v2831
        %3526 = vmatmul.mubr.bf16.gmra.mrb[0].mxu0 %v2830
        %v3527 = vpop.f32.mrb[0].mxu0
        %v3528 = vadd.f32 %v2931, %v3527
        %v3529 = vpop.f32.mrb[0].mxu0
        %v3530 = vadd.f32 %v2935, %v3529
        %v3531 = vpop.f32.mrb[0].mxu0
        %v3532 = vadd.f32 %v2931, %v3531
        %v3533 = vpop.f32.mrb[0].mxu0
        %v3534 = vadd.f32 %v2935, %v3533
        %3535 = vmatprep.mubr.bf16.mxu0 %v2833
        %3536 = vmatmul.mubr.bf16.gmra.mrb[0].mxu0 %v2832
        %v3537 = vpop.f32.mrb[0].mxu0
        %v3538 = vadd.f32 %v2931, %v3537
        %v3539 = vpop.f32.mrb[0].mxu0
        %v3540 = vadd.f32 %v2935, %v3539
        %v3541 = vpop.f32.mrb[0].mxu0
        %v3542 = vadd.f32 %v2931, %v3541
        %v3543 = vpop.f32.mrb[0].mxu0
        %v3544 = vadd.f32 %v2935, %v3543
        %3545 = vmatprep.mubr.bf16.mxu0 %v2835
        %3546 = vmatmul.mubr.bf16.gmra.mrb[0].mxu0 %v2834
        %v3547 = vpop.f32.mrb[0].mxu0
        %v3548 = vadd.f32 %v2931, %v3547
        %v3549 = vpop.f32.mrb[0].mxu0
        %v3550 = vadd.f32 %v2935, %v3549
        %v3551 = vpop.f32.mrb[0].mxu0
        %v3552 = vadd.f32 %v2931, %v3551
        %v3553 = vpop.f32.mrb[0].mxu0
        %v3554 = vadd.f32 %v2935, %v3553
        %3555 = vmatprep.mubr.bf16.mxu0 %v2837
        %3556 = vmatmul.mubr.bf16.gmra.mrb[0].mxu0 %v2836
        %v3557 = vpop.f32.mrb[0].mxu0
        %v3558 = vadd.f32 %v2931, %v3557
        %v3559 = vpop.f32.mrb[0].mxu0
        %v3560 = vadd.f32 %v2935, %v3559
        %v3561 = vpop.f32.mrb[0].mxu0
        %v3562 = vadd.f32 %v2931, %v3561
        %v3563 = vpop.f32.mrb[0].mxu0
        %v3564 = vadd.f32 %v2935, %v3563
        %3565 = vmatprep.mubr.bf16.mxu0 %v2839
        %3566 = vmatmul.mubr.bf16.gmra.mrb[0].mxu0 %v2838
        %v3567 = vpop.f32.mrb[0].mxu0
        %v3568 = vadd.f32 %v2931, %v3567
        %v3569 = vpop.f32.mrb[0].mxu0
        %v3570 = vadd.f32 %v2935, %v3569
        %v3571 = vpop.f32.mrb[0].mxu0
        %v3572 = vadd.f32 %v2931, %v3571
        %v3573 = vpop.f32.mrb[0].mxu0
        %v3574 = vadd.f32 %v2935, %v3573
        %3575 = vmatprep.mubr.bf16.mxu0 %v2841
        %3576 = vmatmul.mubr.bf16.gmra.mrb[0].mxu0 %v2840
        %v3577 = vpop.f32.mrb[0].mxu0
        %v3578 = vadd.f32 %v2931, %v3577
        %v3579 = vpop.f32.mrb[0].mxu0
        %v3580 = vadd.f32 %v2935, %v3579
        %v3581 = vpop.f32.mrb[0].mxu0
        %v3582 = vadd.f32 %v2931, %v3581
        %v3583 = vpop.f32.mrb[0].mxu0
        %v3584 = vadd.f32 %v2935, %v3583
        %3585 = vmatprep.mubr.bf16.mxu0 %v2843
        %3586 = vmatmul.mubr.bf16.gmra.mrb[0].mxu0 %v2842
        %v3587 = vpop.f32.mrb[0].mxu0
        %v3588 = vadd.f32 %v2931, %v3587
        %v3589 = vpop.f32.mrb[0].mxu0
        %v3590 = vadd.f32 %v2935, %v3589
        %v3591 = vpop.f32.mrb[0].mxu0
        %v3592 = vadd.f32 %v2931, %v3591
        %v3593 = vpop.f32.mrb[0].mxu0
        %v3594 = vadd.f32 %v2935, %v3593
        %3595 = vmatprep.mubr.bf16.mxu0 %v2845
        %3596 = vmatmul.mubr.bf16.gmra.mrb[0].mxu0 %v2844
        %v3597 = vpop.f32.mrb[0].mxu0
        %v3598 = vadd.f32 %v2931, %v3597
        %v3599 = vpop.f32.mrb[0].mxu0
        %v3600 = vadd.f32 %v2935, %v3599
        %v3601 = vpop.f32.mrb[0].mxu0
        %v3602 = vadd.f32 %v2931, %v3601
        %v3603 = vpop.f32.mrb[0].mxu0
        %v3604 = vadd.f32 %v2935, %v3603
        %3605 = vmatprep.mubr.bf16.mxu0 %v2847
        %3606 = vmatmul.mubr.bf16.gmra.mrb[0].mxu0 %v2846
        %v3607 = vpop.f32.mrb[0].mxu0
        %v3608 = vadd.f32 %v2931, %v3607
        %v3609 = vpop.f32.mrb[0].mxu0
        %v3610 = vadd.f32 %v2935, %v3609
        %v3611 = vpop.f32.mrb[0].mxu0
        %v3612 = vadd.f32 %v2931, %v3611
        %v3613 = vpop.f32.mrb[0].mxu0
        %v3614 = vadd.f32 %v2935, %v3613
        %3615 = vmatprep.mubr.bf16.mxu0 %v2849
        %3616 = vmatmul.mubr.bf16.gmra.mrb[0].mxu0 %v2848
        %v3617 = vpop.f32.mrb[0].mxu0
        %v3618 = vadd.f32 %v2931, %v3617
        %v3619 = vpop.f32.mrb[0].mxu0
        %v3620 = vadd.f32 %v2935, %v3619
        %v3621 = vpop.f32.mrb[0].mxu0
        %v3622 = vadd.f32 %v2931, %v3621
        %v3623 = vpop.f32.mrb[0].mxu0
        %v3624 = vadd.f32 %v2935, %v3623
        %3625 = vmatprep.mubr.bf16.mxu0 %v2851
        %3626 = vmatmul.mubr.bf16.gmra.mrb[0].mxu0 %v2850
        %v3627 = vpop.f32.mrb[0].mxu0
        %v3628 = vadd.f32 %v2931, %v3627
        %v3629 = vpop.f32.mrb[0].mxu0
        %v3630 = vadd.f32 %v2935, %v3629
        %v3631 = vpop.f32.mrb[0].mxu0
        %v3632 = vadd.f32 %v2931, %v3631
        %v3633 = vpop.f32.mrb[0].mxu0
        %v3634 = vadd.f32 %v2935, %v3633
        %3635 = vmatprep.mubr.bf16.mxu0 %v2853
        %3636 = vmatmul.mubr.bf16.gmra.mrb[0].mxu0 %v2852
        %v3637 = vpop.f32.mrb[0].mxu0
        %v3638 = vadd.f32 %v2931, %v3637
        %v3639 = vpop.f32.mrb[0].mxu0
        %v3640 = vadd.f32 %v2935, %v3639
        %v3641 = vpop.f32.mrb[0].mxu0
        %v3642 = vadd.f32 %v2931, %v3641
        %v3643 = vpop.f32.mrb[0].mxu0
        %v3644 = vadd.f32 %v2935, %v3643
        %3645 = vdwg.mxu0
        %v3646 = vpack.c.bf16 %v3299, %v3295
        %v3647 = vpack.c.bf16 %v3301, %v3297
        %v3648 = vpack.c.bf16 %v3492, %v3488
        %v3649 = vpack.c.bf16 %v3494, %v3490
        %v3650 = vpack.c.bf16 %v3309, %v3305
        %v3651 = vpack.c.bf16 %v3311, %v3307
        %v3652 = vpack.c.bf16 %v3502, %v3498
        %v3653 = vpack.c.bf16 %v3504, %v3500
        %v3654 = vpack.c.bf16 %v3319, %v3315
        %v3655 = vpack.c.bf16 %v3321, %v3317
        %v3656 = vpack.c.bf16 %v3512, %v3508
        %v3657 = vpack.c.bf16 %v3514, %v3510
        %v3658 = vpack.c.bf16 %v3329, %v3325
        %v3659 = vpack.c.bf16 %v3331, %v3327
        %v3660 = vpack.c.bf16 %v3522, %v3518
        %v3661 = vpack.c.bf16 %v3524, %v3520
        %v3662 = vpack.c.bf16 %v3339, %v3335
        %v3663 = vpack.c.bf16 %v3341, %v3337
        %v3664 = vpack.c.bf16 %v3532, %v3528
        %v3665 = vpack.c.bf16 %v3534, %v3530
        %v3666 = vpack.c.bf16 %v3349, %v3345
        %v3667 = vpack.c.bf16 %v3351, %v3347
        %v3668 = vpack.c.bf16 %v3542, %v3538
        %v3669 = vpack.c.bf16 %v3544, %v3540
        %v3670 = vpack.c.bf16 %v3359, %v3355
        %v3671 = vpack.c.bf16 %v3361, %v3357
        %v3672 = vpack.c.bf16 %v3552, %v3548
        %v3673 = vpack.c.bf16 %v3554, %v3550
        %v3674 = vpack.c.bf16 %v3369, %v3365
        %v3675 = vpack.c.bf16 %v3371, %v3367
        %v3676 = vpack.c.bf16 %v3562, %v3558
        %v3677 = vpack.c.bf16 %v3564, %v3560
        %v3678 = vpack.c.bf16 %v3379, %v3375
        %v3679 = vpack.c.bf16 %v3381, %v3377
        %v3680 = vpack.c.bf16 %v3572, %v3568
        %v3681 = vpack.c.bf16 %v3574, %v3570
        %v3682 = vpack.c.bf16 %v3389, %v3385
        %v3683 = vpack.c.bf16 %v3391, %v3387
        %v3684 = vpack.c.bf16 %v3582, %v3578
        %v3685 = vpack.c.bf16 %v3584, %v3580
        %v3686 = vpack.c.bf16 %v3399, %v3395
        %v3687 = vpack.c.bf16 %v3401, %v3397
        %v3688 = vpack.c.bf16 %v3592, %v3588
        %v3689 = vpack.c.bf16 %v3594, %v3590
        %v3690 = vpack.c.bf16 %v3409, %v3405
        %v3691 = vpack.c.bf16 %v3411, %v3407
        %v3692 = vpack.c.bf16 %v3602, %v3598
        %v3693 = vpack.c.bf16 %v3604, %v3600
        %v3694 = vpack.c.bf16 %v3419, %v3415
        %v3695 = vpack.c.bf16 %v3421, %v3417
        %v3696 = vpack.c.bf16 %v3612, %v3608
        %v3697 = vpack.c.bf16 %v3614, %v3610
        %v3698 = vpack.c.bf16 %v3429, %v3425
        %v3699 = vpack.c.bf16 %v3431, %v3427
        %v3700 = vpack.c.bf16 %v3622, %v3618
        %v3701 = vpack.c.bf16 %v3624, %v3620
        %v3702 = vpack.c.bf16 %v3439, %v3435
        %v3703 = vpack.c.bf16 %v3441, %v3437
        %v3704 = vpack.c.bf16 %v3632, %v3628
        %v3705 = vpack.c.bf16 %v3634, %v3630
        %v3706 = vpack.c.bf16 %v3449, %v3445
        %v3707 = vpack.c.bf16 %v3451, %v3447
        %v3708 = vpack.c.bf16 %v3642, %v3638
        %v3709 = vpack.c.bf16 %v3644, %v3640
        %v3774 = vunpack.c.l.b16 %v3646
        %v3775 = vunpack.c.l.b16 %v3647
        %v3776 = vunpack.c.l.b16 %v3648
        %v3777 = vunpack.c.l.b16 %v3649
        %v3778 = vunpack.c.h.b16 %v3646
        %v3779 = vunpack.c.h.b16 %v3647
        %v3780 = vunpack.c.h.b16 %v3648
        %v3781 = vunpack.c.h.b16 %v3649
        %v3782 = vunpack.c.l.b16 %v3650
        %v3783 = vunpack.c.l.b16 %v3651
        %v3784 = vunpack.c.l.b16 %v3652
        %v3785 = vunpack.c.l.b16 %v3653
        %v3786 = vunpack.c.h.b16 %v3650
        %v3787 = vunpack.c.h.b16 %v3651
        %v3788 = vunpack.c.h.b16 %v3652
        %v3789 = vunpack.c.h.b16 %v3653
        %v3790 = vunpack.c.l.b16 %v3654
        %v3791 = vunpack.c.l.b16 %v3655
        %v3792 = vunpack.c.l.b16 %v3656
        %v3793 = vunpack.c.l.b16 %v3657
        %v3794 = vunpack.c.h.b16 %v3654
        %v3795 = vunpack.c.h.b16 %v3655
        %v3796 = vunpack.c.h.b16 %v3656
        %v3797 = vunpack.c.h.b16 %v3657
        %v3798 = vunpack.c.l.b16 %v3658
        %v3799 = vunpack.c.l.b16 %v3659
        %v3800 = vunpack.c.l.b16 %v3660
        %v3801 = vunpack.c.l.b16 %v3661
        %v3802 = vunpack.c.h.b16 %v3658
        %v3803 = vunpack.c.h.b16 %v3659
        %v3804 = vunpack.c.h.b16 %v3660
        %v3805 = vunpack.c.h.b16 %v3661
        %v3806 = vunpack.c.l.b16 %v3662
        %v3807 = vunpack.c.l.b16 %v3663
        %v3808 = vunpack.c.l.b16 %v3664
        %v3809 = vunpack.c.l.b16 %v3665
        %v3810 = vunpack.c.h.b16 %v3662
        %v3811 = vunpack.c.h.b16 %v3663
        %v3812 = vunpack.c.h.b16 %v3664
        %v3813 = vunpack.c.h.b16 %v3665
        %v3814 = vunpack.c.l.b16 %v3666
        %v3815 = vunpack.c.l.b16 %v3667
        %v3816 = vunpack.c.l.b16 %v3668
        %v3817 = vunpack.c.l.b16 %v3669
        %v3818 = vunpack.c.h.b16 %v3666
        %v3819 = vunpack.c.h.b16 %v3667
        %v3820 = vunpack.c.h.b16 %v3668
        %v3821 = vunpack.c.h.b16 %v3669
        %v3822 = vunpack.c.l.b16 %v3670
        %v3823 = vunpack.c.l.b16 %v3671
        %v3824 = vunpack.c.l.b16 %v3672
        %v3825 = vunpack.c.l.b16 %v3673
        %v3826 = vunpack.c.h.b16 %v3670
        %v3827 = vunpack.c.h.b16 %v3671
        %v3828 = vunpack.c.h.b16 %v3672
        %v3829 = vunpack.c.h.b16 %v3673
        %v3830 = vunpack.c.l.b16 %v3674
        %v3831 = vunpack.c.l.b16 %v3675
        %v3832 = vunpack.c.l.b16 %v3676
        %v3833 = vunpack.c.l.b16 %v3677
        %v3834 = vunpack.c.h.b16 %v3674
        %v3835 = vunpack.c.h.b16 %v3675
        %v3836 = vunpack.c.h.b16 %v3676
        %v3837 = vunpack.c.h.b16 %v3677
        %v3838 = vunpack.c.l.b16 %v3678
        %v3839 = vunpack.c.l.b16 %v3679
        %v3840 = vunpack.c.l.b16 %v3680
        %v3841 = vunpack.c.l.b16 %v3681
        %v3842 = vunpack.c.h.b16 %v3678
        %v3843 = vunpack.c.h.b16 %v3679
        %v3844 = vunpack.c.h.b16 %v3680
        %v3845 = vunpack.c.h.b16 %v3681
        %v3846 = vunpack.c.l.b16 %v3682
        %v3847 = vunpack.c.l.b16 %v3683
        %v3848 = vunpack.c.l.b16 %v3684
        %v3849 = vunpack.c.l.b16 %v3685
        %v3850 = vunpack.c.h.b16 %v3682
        %v3851 = vunpack.c.h.b16 %v3683
        %v3852 = vunpack.c.h.b16 %v3684
        %v3853 = vunpack.c.h.b16 %v3685
        %v3854 = vunpack.c.l.b16 %v3686
        %v3855 = vunpack.c.l.b16 %v3687
        %v3856 = vunpack.c.l.b16 %v3688
        %v3857 = vunpack.c.l.b16 %v3689
        %v3858 = vunpack.c.h.b16 %v3686
        %v3859 = vunpack.c.h.b16 %v3687
        %v3860 = vunpack.c.h.b16 %v3688
        %v3861 = vunpack.c.h.b16 %v3689
        %v3862 = vunpack.c.l.b16 %v3690
        %v3863 = vunpack.c.l.b16 %v3691
        %v3864 = vunpack.c.l.b16 %v3692
        %v3865 = vunpack.c.l.b16 %v3693
        %v3866 = vunpack.c.h.b16 %v3690
        %v3867 = vunpack.c.h.b16 %v3691
        %v3868 = vunpack.c.h.b16 %v3692
        %v3869 = vunpack.c.h.b16 %v3693
        %v3870 = vunpack.c.l.b16 %v3694
        %v3871 = vunpack.c.l.b16 %v3695
        %v3872 = vunpack.c.l.b16 %v3696
        %v3873 = vunpack.c.l.b16 %v3697
        %v3874 = vunpack.c.h.b16 %v3694
        %v3875 = vunpack.c.h.b16 %v3695
        %v3876 = vunpack.c.h.b16 %v3696
        %v3877 = vunpack.c.h.b16 %v3697
        %v3878 = vunpack.c.l.b16 %v3698
        %v3879 = vunpack.c.l.b16 %v3699
        %v3880 = vunpack.c.l.b16 %v3700
        %v3881 = vunpack.c.l.b16 %v3701
        %v3882 = vunpack.c.h.b16 %v3698
        %v3883 = vunpack.c.h.b16 %v3699
        %v3884 = vunpack.c.h.b16 %v3700
        %v3885 = vunpack.c.h.b16 %v3701
        %v3886 = vunpack.c.l.b16 %v3702
        %v3887 = vunpack.c.l.b16 %v3703
        %v3888 = vunpack.c.l.b16 %v3704
        %v3889 = vunpack.c.l.b16 %v3705
        %v3890 = vunpack.c.h.b16 %v3702
        %v3891 = vunpack.c.h.b16 %v3703
        %v3892 = vunpack.c.h.b16 %v3704
        %v3893 = vunpack.c.h.b16 %v3705
        %v3894 = vunpack.c.l.b16 %v3706
        %v3895 = vunpack.c.l.b16 %v3707
        %v3896 = vunpack.c.l.b16 %v3708
        %v3897 = vunpack.c.l.b16 %v3709
        %v3898 = vunpack.c.h.b16 %v3706
        %v3899 = vunpack.c.h.b16 %v3707
        %v3900 = vunpack.c.h.b16 %v3708
        %v3901 = vunpack.c.h.b16 %v3709
        %v3902 = vpack.c.b16 %v3775, %v3774
        %v3903 = vpack.c.b16 %v3777, %v3776
        %v3904 = vpack.c.b16 %v3779, %v3778
        %v3905 = vpack.c.b16 %v3781, %v3780
        %v3906 = vpack.c.b16 %v3783, %v3782
        %v3907 = vpack.c.b16 %v3785, %v3784
        %v3908 = vpack.c.b16 %v3787, %v3786
        %v3909 = vpack.c.b16 %v3789, %v3788
        %v3910 = vpack.c.b16 %v3791, %v3790
        %v3911 = vpack.c.b16 %v3793, %v3792
        %v3912 = vpack.c.b16 %v3795, %v3794
        %v3913 = vpack.c.b16 %v3797, %v3796
        %v3914 = vpack.c.b16 %v3799, %v3798
        %v3915 = vpack.c.b16 %v3801, %v3800
        %v3916 = vpack.c.b16 %v3803, %v3802
        %v3917 = vpack.c.b16 %v3805, %v3804
        %v3918 = vpack.c.b16 %v3807, %v3806
        %v3919 = vpack.c.b16 %v3809, %v3808
        %v3920 = vpack.c.b16 %v3811, %v3810
        %v3921 = vpack.c.b16 %v3813, %v3812
        %v3922 = vpack.c.b16 %v3815, %v3814
        %v3923 = vpack.c.b16 %v3817, %v3816
        %v3924 = vpack.c.b16 %v3819, %v3818
        %v3925 = vpack.c.b16 %v3821, %v3820
        %v3926 = vpack.c.b16 %v3823, %v3822
        %v3927 = vpack.c.b16 %v3825, %v3824
        %v3928 = vpack.c.b16 %v3827, %v3826
        %v3929 = vpack.c.b16 %v3829, %v3828
        %v3930 = vpack.c.b16 %v3831, %v3830
        %v3931 = vpack.c.b16 %v3833, %v3832
        %v3932 = vpack.c.b16 %v3835, %v3834
        %v3933 = vpack.c.b16 %v3837, %v3836
        %v3934 = vpack.c.b16 %v3839, %v3838
        %v3935 = vpack.c.b16 %v3841, %v3840
        %v3936 = vpack.c.b16 %v3843, %v3842
        %v3937 = vpack.c.b16 %v3845, %v3844
        %v3938 = vpack.c.b16 %v3847, %v3846
        %v3939 = vpack.c.b16 %v3849, %v3848
        %v3940 = vpack.c.b16 %v3851, %v3850
        %v3941 = vpack.c.b16 %v3853, %v3852
        %v3942 = vpack.c.b16 %v3855, %v3854
        %v3943 = vpack.c.b16 %v3857, %v3856
        %v3944 = vpack.c.b16 %v3859, %v3858
        %v3945 = vpack.c.b16 %v3861, %v3860
        %v3946 = vpack.c.b16 %v3863, %v3862
        %v3947 = vpack.c.b16 %v3865, %v3864
        %v3948 = vpack.c.b16 %v3867, %v3866
        %v3949 = vpack.c.b16 %v3869, %v3868
        %v3950 = vpack.c.b16 %v3871, %v3870
        %v3951 = vpack.c.b16 %v3873, %v3872
        %v3952 = vpack.c.b16 %v3875, %v3874
        %v3953 = vpack.c.b16 %v3877, %v3876
        %v3954 = vpack.c.b16 %v3879, %v3878
        %v3955 = vpack.c.b16 %v3881, %v3880
        %v3956 = vpack.c.b16 %v3883, %v3882
        %v3957 = vpack.c.b16 %v3885, %v3884
        %v3958 = vpack.c.b16 %v3887, %v3886
        %v3959 = vpack.c.b16 %v3889, %v3888
        %v3960 = vpack.c.b16 %v3891, %v3890
        %v3961 = vpack.c.b16 %v3893, %v3892
        %v3962 = vpack.c.b16 %v3895, %v3894
        %v3963 = vpack.c.b16 %v3897, %v3896
        %v3964 = vpack.c.b16 %v3899, %v3898
        %v3965 = vpack.c.b16 %v3901, %v3900
        %4030 = vst [vmem:[%s556] sm:$0xff] %v3902
        %4031 = vst [vmem:[%s556 + $0x8] sm:$0xff] %v3903
        %4032 = vst [vmem:[%s556 + $0x10] sm:$0xff] %v3904
        %4033 = vst [vmem:[%s556 + $0x18] sm:$0xff] %v3905
        %4034 = vst [vmem:[%s556 + $0x20] sm:$0xff] %v3906
        %4035 = vst [vmem:[%s556 + $0x28] sm:$0xff] %v3907
        %4036 = vst [vmem:[%s556 + $0x30] sm:$0xff] %v3908
        %4037 = vst [vmem:[%s556 + $0x38] sm:$0xff] %v3909
        %4038 = vst [vmem:[%s556 + $0x40] sm:$0xff] %v3910
        %4039 = vst [vmem:[%s556 + $0x48] sm:$0xff] %v3911
        %4040 = vst [vmem:[%s556 + $0x50] sm:$0xff] %v3912
        %4041 = vst [vmem:[%s556 + $0x58] sm:$0xff] %v3913
        %4042 = vst [vmem:[%s556 + $0x60] sm:$0xff] %v3914
        %4043 = vst [vmem:[%s556 + $0x68] sm:$0xff] %v3915
        %4044 = vst [vmem:[%s556 + $0x70] sm:$0xff] %v3916
        %4045 = vst [vmem:[%s556 + $0x78] sm:$0xff] %v3917
        %4046 = vst [vmem:[%s556 + $0x80] sm:$0xff] %v3918
        %4047 = vst [vmem:[%s556 + $0x88] sm:$0xff] %v3919
        %4048 = vst [vmem:[%s556 + $0x90] sm:$0xff] %v3920
        %4049 = vst [vmem:[%s556 + $0x98] sm:$0xff] %v3921
        %4050 = vst [vmem:[%s556 + $0xa0] sm:$0xff] %v3922
        %4051 = vst [vmem:[%s556 + $0xa8] sm:$0xff] %v3923
        %4052 = vst [vmem:[%s556 + $0xb0] sm:$0xff] %v3924
        %4053 = vst [vmem:[%s556 + $0xb8] sm:$0xff] %v3925
        %4054 = vst [vmem:[%s556 + $0xc0] sm:$0xff] %v3926
        %4055 = vst [vmem:[%s556 + $0xc8] sm:$0xff] %v3927
        %4056 = vst [vmem:[%s556 + $0xd0] sm:$0xff] %v3928
        %4057 = vst [vmem:[%s556 + $0xd8] sm:$0xff] %v3929
        %4058 = vst [vmem:[%s556 + $0xe0] sm:$0xff] %v3930
        %4059 = vst [vmem:[%s556 + $0xe8] sm:$0xff] %v3931
        %4060 = vst [vmem:[%s556 + $0xf0] sm:$0xff] %v3932
        %4061 = vst [vmem:[%s556 + $0xf8] sm:$0xff] %v3933
        %4062 = vst [vmem:[%s556 + $0x100] sm:$0xff] %v3934
        %4063 = vst [vmem:[%s556 + $0x108] sm:$0xff] %v3935
        %4064 = vst [vmem:[%s556 + $0x110] sm:$0xff] %v3936
        %4065 = vst [vmem:[%s556 + $0x118] sm:$0xff] %v3937
        %4066 = vst [vmem:[%s556 + $0x120] sm:$0xff] %v3938
        %4067 = vst [vmem:[%s556 + $0x128] sm:$0xff] %v3939
        %4068 = vst [vmem:[%s556 + $0x130] sm:$0xff] %v3940
        %4069 = vst [vmem:[%s556 + $0x138] sm:$0xff] %v3941
        %4070 = vst [vmem:[%s556 + $0x140] sm:$0xff] %v3942
        %4071 = vst [vmem:[%s556 + $0x148] sm:$0xff] %v3943
        %4072 = vst [vmem:[%s556 + $0x150] sm:$0xff] %v3944
        %4073 = vst [vmem:[%s556 + $0x158] sm:$0xff] %v3945
        %4074 = vst [vmem:[%s556 + $0x160] sm:$0xff] %v3946
        %4075 = vst [vmem:[%s556 + $0x168] sm:$0xff] %v3947
        %4076 = vst [vmem:[%s556 + $0x170] sm:$0xff] %v3948
        %4077 = vst [vmem:[%s556 + $0x178] sm:$0xff] %v3949
        %4078 = vst [vmem:[%s556 + $0x180] sm:$0xff] %v3950
        %4079 = vst [vmem:[%s556 + $0x188] sm:$0xff] %v3951
        %4080 = vst [vmem:[%s556 + $0x190] sm:$0xff] %v3952
        %4081 = vst [vmem:[%s556 + $0x198] sm:$0xff] %v3953
        %4082 = vst [vmem:[%s556 + $0x1a0] sm:$0xff] %v3954
        %4083 = vst [vmem:[%s556 + $0x1a8] sm:$0xff] %v3955
        %4084 = vst [vmem:[%s556 + $0x1b0] sm:$0xff] %v3956
        %4085 = vst [vmem:[%s556 + $0x1b8] sm:$0xff] %v3957
        %4086 = vst [vmem:[%s556 + $0x1c0] sm:$0xff] %v3958
        %4087 = vst [vmem:[%s556 + $0x1c8] sm:$0xff] %v3959
        %4088 = vst [vmem:[%s556 + $0x1d0] sm:$0xff] %v3960
        %4089 = vst [vmem:[%s556 + $0x1d8] sm:$0xff] %v3961
        %4090 = vst [vmem:[%s556 + $0x1e0] sm:$0xff] %v3962
        %4091 = vst [vmem:[%s556 + $0x1e8] sm:$0xff] %v3963
        %4092 = vst [vmem:[%s556 + $0x1f0] sm:$0xff] %v3964
        %4093 = vst [vmem:[%s556 + $0x1f8] sm:$0xff] %v3965
        %s4094 = sand.u32 %s286, 1
        %s4095 = scalar_lea.sflag [#allocation5], %s4094
        %s4096 = sand.u32 %s286, 1
        %s4097 = smul.addr %s4096, 512
        %s4098 = scalar_lea.vmem [#allocation13], %s4097
        %s4099 = sand.u32 %s312, 1
        %s4100 = scalar_lea.sflag [#allocation15], %s4099
        %s4101 = sand.u32 %s312, 1
        %s4102 = smul.addr %s4101, 256
        %s4103 = scalar_lea.vmem [#allocation14], %s4102
        // Predicated region
        $region89: #{tpu_custom_call.1} parent=59 // pred_check
          %p4104 = pneg %p296
        $region90: #{tpu_custom_call.1} parent=59 // pred_check_branch
          %4106 = sbr.rel (%p4104) target = $region92
        $region91: #{tpu_custom_call.1} parent=59 // pred_region
          %s4107 = smul.u32 32, %s38
          %s4108 = smul.u32 4, %s39
          %s4110 = ssub.s32 8192, 8192
          %4111 = vsyncadd %s4095, %s4110
          %s4112 = smul.addr %s4107, 8
          %s4113 = sadd.s32 %s4108, %s4112
          %s4114 = smul.addr %s4113, 64
          %s4115 = scalar_lea.hbm %s10, %s4114
          %s4116 = sshll.u32 %s4098, 4
          %s4117 = int_to_ptr.vmem [resolvable:$true] %s4116
          %4122 = dma.vmem_to_hbm [thread:$0]  %s4117, 8192, %s4115, %s4095, 256, 512, 16
        $region92: #{tpu_custom_call.1} parent=59 // pred_fallthru
          _
        // Predicated region
        $region93: #{tpu_custom_call.1} parent=59 // pred_check
          %p4123 = pneg %p322
        $region94: #{tpu_custom_call.1} parent=59 // pred_check_branch
          %4125 = sbr.rel (%p4123) target = $region96
        $region95: #{tpu_custom_call.1} parent=59 // pred_region
          %s4126 = smul.u32 32, %s38
          %s4128 = ssub.s32 4096, 4096
          %4129 = vsyncadd %s4100, %s4128
          %s4130 = smul.addr %s4126, 128
          %s4131 = scalar_lea.hbm %s11, %s4130
          %s4132 = sshll.u32 %s4103, 4
          %s4133 = int_to_ptr.vmem [resolvable:$true] %s4132
          %4138 = dma.vmem_to_hbm [thread:$0]  %s4133, 4096, %s4131, %s4100, 128, 128, 8
        $region96: #{tpu_custom_call.1} parent=59 // pred_fallthru
          _
      $region60: #{tpu_custom_call.1} parent=5 // pred_fallthru
        _
      %p4139 = scmp.le.s32.totalorder 2, %s29
      // Predicated region
      $region97: #{tpu_custom_call.1} parent=5 // pred_check
        %p4140 = pneg %p4139
      $region98: #{tpu_custom_call.1} parent=5 // pred_check_branch
        %4142 = sbr.rel (%p4140) target = $region100
      $region99: #{tpu_custom_call.1} parent=5 // pred_region
        %s4143 = ssub.s32 %s29, 2
        // Predicated region
        $region101: #{tpu_custom_call.1} parent=99 // pred_check
          %p4144 = pneg %p302
        $region102: #{tpu_custom_call.1} parent=99 // pred_check_branch
          %4146 = sbr.rel (%p4144) target = $region104
        $region103: #{tpu_custom_call.1} parent=99 // pred_region
          %s4147 = sand.u32 %s287, 1
          %s4148 = scalar_lea.sflag [#allocation5], %s4147
          %s4149 = sand.u32 %s287, 1
          %s4150 = smul.addr %s4149, 512
          %s4151 = scalar_lea.vmem [#allocation13], %s4150
          %4152 = dma.done %s4148, 8192
        $region104: #{tpu_custom_call.1} parent=99 // pred_fallthru
          _
        // Predicated region
        $region105: #{tpu_custom_call.1} parent=99 // pred_check
          %p4153 = pneg %p328
        $region106: #{tpu_custom_call.1} parent=99 // pred_check_branch
          %4155 = sbr.rel (%p4153) target = $region108
        $region107: #{tpu_custom_call.1} parent=99 // pred_region
          %s4156 = sand.u32 %s313, 1
          %s4157 = scalar_lea.sflag [#allocation15], %s4156
          %s4158 = sand.u32 %s313, 1
          %s4159 = smul.addr %s4158, 256
          %s4160 = scalar_lea.vmem [#allocation14], %s4159
          %4161 = dma.done %s4157, 4096
        $region108: #{tpu_custom_call.1} parent=99 // pred_fallthru
          _
      $region100: #{tpu_custom_call.1} parent=5 // pred_fallthru
        _
    $region6: #{tpu_custom_call.1} parent=1 // loop_footer
      %s33 = sadd.s32 1, %s29
    $region7: #{tpu_custom_call.1} parent=1 // loop_footer_branch
      %28 = sbr.rel target = $region3
    $region8: #{tpu_custom_call.1} parent=1 // loop_exit
      _
    %4162 = vsyncpa [#allocation4], 1
    %s4163 = scalar_lea.sflag [#allocation4], 1
    %4164 = vsyncpa %s4163, 1
    %4165 = vsyncpa [#allocation7], 1
    %4166 = vsyncpa [#allocation12], 1
    %4167 = vsyncpa [#allocation5], 1
    %s4168 = scalar_lea.sflag [#allocation5], 1
    %4169 = vsyncpa %s4168, 1
    %4170 = vsyncpa [#allocation15], 1
    %s4171 = scalar_lea.sflag [#allocation15], 1
    %4172 = vsyncpa %s4171, 1

</llo_original>
